<compile_context>
chip_gen: v6e
topology: v6e:2x2x1
jax: 0.10.0
libtpu: 0.0.40
codegen_flags: <defaults>
</compile_context>

<pallas_src>
import jax
import jax.numpy as jnp
import numpy as np
from jax.experimental import pallas as pl
from jax.experimental.pallas import tpu as pltpu


def _fire_kernel(x_ref, xh_ref, wsq_ref, bsq_ref, we1_ref, be1_ref,
                 we3_ref, be3_ref, out_ref, spad_ref):
    # x_ref:   (Nb, Ht, W, Cin)          input row tile
    # xh_ref:  (Nb, 2, W, Cin)           halo rows (above, below) of this tile
    # wsq_ref: (Cin, Csq) bf16   bsq_ref: (1, Csq) f32
    # we1_ref: (Csq, Ce1) bf16   be1_ref: (1, Ce1) f32
    # we3_ref: (9, Csq, Ce3) bf16 (tap k = ky*3+kx)   be3_ref: (1, Ce3) f32
    # out_ref: (Nb, Ht, W, Ce1+Ce3)
    # spad_ref:(Nb, Ht+2, W+2, Csq) bf16 VMEM scratch (zero-bordered s)
    Nb, Ht, W, Cin = x_ref.shape
    Csq = wsq_ref.shape[1]
    Ce1 = we1_ref.shape[1]
    Ce3 = we3_ref.shape[2]
    M = Nb * Ht * W

    r = pl.program_id(1)
    n_row = pl.num_programs(1)

    # ---- squeeze 1x1 conv + relu on the main rows (bf16 MXU, f32 acc) ----
    x2 = x_ref[...].reshape(M, Cin).astype(jnp.bfloat16)
    s = jnp.dot(x2, wsq_ref[...], preferred_element_type=jnp.float32)
    s = jnp.maximum(s + bsq_ref[...], 0.0).astype(jnp.bfloat16)     # (M, Csq)

    # ---- squeeze on the 2 halo rows (recomputed; zeroed outside image) ----
    xh = xh_ref[...].reshape(Nb * 2 * W, Cin).astype(jnp.bfloat16)
    sh = jnp.dot(xh, wsq_ref[...], preferred_element_type=jnp.float32)
    sh = jnp.maximum(sh + bsq_ref[...], 0.0).reshape(Nb, 2, W, Csq)
    top_ok = (r > 0).astype(sh.dtype)
    bot_ok = (r < n_row - 1).astype(sh.dtype)
    s_top = (sh[:, 0:1] * top_ok).astype(jnp.bfloat16)              # (Nb,1,W,Csq)
    s_bot = (sh[:, 1:2] * bot_ok).astype(jnp.bfloat16)

    # ---- fill the zero-bordered bf16 scratch (fully rewritten every step) --
    zcol = jnp.zeros((Nb, Ht + 2, 1, Csq), jnp.bfloat16)
    spad_ref[:, :, 0:1, :] = zcol                    # left  padding column
    spad_ref[:, :, W + 1:W + 2, :] = zcol            # right padding column
    spad_ref[:, 0:1, 1:W + 1, :] = s_top             # top halo row
    spad_ref[:, Ht + 1:Ht + 2, 1:W + 1, :] = s_bot   # bottom halo row
    spad_ref[:, 1:Ht + 1, 1:W + 1, :] = s.reshape(Nb, Ht, W, Csq)

    # ---- expand: e1 (exact centre matmul) + e3 (9 accumulating matmuls) ----
    # Each tap reads a lane-aligned shifted window of the scratch; no per-tap
    # store/reload, no lane-offset stores, no zero-padded MXU columns.
    e1 = None
    acc = None
    for ky in range(3):
        for kx in range(3):
            k = ky * 3 + kx
            win = spad_ref[:, ky:ky + Ht, kx:kx + W, :].reshape(M, Csq)
            d = jnp.dot(win, we3_ref[k], preferred_element_type=jnp.float32)
            acc = d if acc is None else acc + d
            if k == 4:  # centre tap == unshifted squeeze activation
                e1 = jnp.dot(win, we1_ref[...],
                             preferred_element_type=jnp.float32)

    e1 = jnp.maximum(e1 + be1_ref[...], 0.0)
    e3 = jnp.maximum(acc + be3_ref[...], 0.0)

    # Two channel-slice stores into the VMEM out block (HBM writeback is one
    # block DMA regardless); avoids an in-kernel lane concatenate/relayout.
    out_ref[:, :, :, :Ce1] = e1.reshape(Nb, Ht, W, Ce1).astype(out_ref.dtype)
    out_ref[:, :, :, Ce1:] = e3.reshape(Nb, Ht, W, Ce3).astype(out_ref.dtype)


def _pick_tiles(N, H, W, Cin, Csq, Cout, x_item, out_item,
                vmem_budget_bytes, target_steps):
    """VMEM-budget-driven (batch block, row tile) selection."""
    def divisors(n):
        return [d for d in range(1, n + 1) if n % d == 0]

    def vmem_need(bn, ht):
        xb = bn * ht * W * Cin * x_item              # input row-tile block
        xh = bn * 2 * W * Cin * x_item               # halo block
        ob = bn * ht * W * Cout * out_item           # output block
        sp = bn * (ht + 2) * (W + 2) * Csq * 2       # bf16 s scratch (single)
        wt = (Cin * Csq + Csq * Cout + 9 * Csq * Cout) * 2 + (Csq + Cout) * 4
        return 2 * (xb + xh + ob) + sp + wt          # double-buffered I/O

    bn_opts = sorted(divisors(N), reverse=True)
    ht_opts = sorted(divisors(H), reverse=True)
    bn, ht = 1, min(ht_opts)
    found = False
    for b in bn_opts:
        for h in ht_opts:
            if vmem_need(b, h) <= vmem_budget_bytes:
                bn, ht = b, h
                found = True
                break
        if found:
            break
    # TODO(synk): if even (1, smallest ht) exceeds the budget (huge W*Cin),
    # add a width/channel tiling axis as well.

    def steps(b, h):
        return (N // b) * (H // h)

    # Keep >= target_steps grid steps so the pipeline and (on v7x) both
    # TensorCores have work; shrink rows first (down to 8), then batch.
    while steps(bn, ht) < target_steps:
        if ht > 8 and ht % 2 == 0:
            ht //= 2
        elif bn > 1:
            bn = max(d for d in divisors(bn) if d < bn)
        elif ht > 1 and ht % 2 == 0:
            ht //= 2
        else:
            break
    return bn, ht, vmem_need(bn, ht)


def fire_forward_nhwc(x_nhwc, wsq, bsq, we1, be1, we3, be3, *,
                      out_dtype=None,
                      vmem_budget_bytes=48 * 1024 * 1024,
                      target_steps=4):
    """Fire forward, NHWC in / NHWC out (preferred: no layout transposes).

    x may be f32 or bf16; MXU operands are always bf16 with f32 accumulation.
    Pass out_dtype=jnp.bfloat16 in a bf16 end-to-end model to halve writeback.
    """
    N, H, W, Cin = x_nhwc.shape
    Csq = wsq.shape[1]
    Ce1 = we1.shape[1]
    Ce3 = we3.shape[2]
    Cout = Ce1 + Ce3
    out_dtype = x_nhwc.dtype if out_dtype is None else out_dtype

    x_item = jnp.dtype(x_nhwc.dtype).itemsize
    out_item = jnp.dtype(out_dtype).itemsize
    block_n, ht, need = _pick_tiles(N, H, W, Cin, Csq, Cout, x_item, out_item,
                                    vmem_budget_bytes, target_steps)
    n_row_tiles = H // ht

    # 1-row halo above/below each row tile, gathered once (static indices);
    # out-of-image rows are zeroed inside the kernel (matches SAME padding).
    tiles = np.arange(n_row_tiles)
    top_idx = np.maximum(tiles * ht - 1, 0)
    bot_idx = np.minimum((tiles + 1) * ht, H - 1)
    halo_rows = np.stack([top_idx, bot_idx], axis=1).reshape(-1)
    x_halo = x_nhwc[:, halo_rows]                    # (N, n_row_tiles*2, W, Cin)

    vmem_limit = int(min(max(need + (8 << 20), 32 << 20), 128 << 20))

    out = pl.pallas_call(
        _fire_kernel,
        out_shape=jax.ShapeDtypeStruct((N, H, W, Cout), out_dtype),
        grid_spec=pltpu.PrefetchScalarGridSpec(
            num_scalar_prefetch=0,
            grid=(N // block_n, n_row_tiles),
            in_specs=[
                pl.BlockSpec((block_n, ht, W, Cin), lambda b, r: (b, r, 0, 0)),
                pl.BlockSpec((block_n, 2, W, Cin), lambda b, r: (b, r, 0, 0)),
                pl.BlockSpec((Cin, Csq), lambda b, r: (0, 0)),
                pl.BlockSpec((1, Csq), lambda b, r: (0, 0)),
                pl.BlockSpec((Csq, Ce1), lambda b, r: (0, 0)),
                pl.BlockSpec((1, Ce1), lambda b, r: (0, 0)),
                pl.BlockSpec((9, Csq, Ce3), lambda b, r: (0, 0, 0)),
                pl.BlockSpec((1, Ce3), lambda b, r: (0, 0)),
            ],
            out_specs=pl.BlockSpec((block_n, ht, W, Cout),
                                   lambda b, r: (b, r, 0, 0)),
            scratch_shapes=[
                pltpu.VMEM((block_n, ht + 2, W + 2, Csq), jnp.bfloat16)],
        ),
        compiler_params=pltpu.CompilerParams(
            dimension_semantics=("parallel", "parallel"),
            vmem_limit_bytes=vmem_limit),
    )(
        x_nhwc,
        x_halo,
        wsq.astype(jnp.bfloat16),
        bsq.reshape(1, Csq).astype(jnp.float32),
        we1.astype(jnp.bfloat16),
        be1.reshape(1, Ce1).astype(jnp.float32),
        we3.reshape(9, Csq, Ce3).astype(jnp.bfloat16),
        be3.reshape(1, Ce3).astype(jnp.float32),
    )
    return out


def fire_forward(x_nchw, wsq, bsq, we1, be1, we3, be3):
    """PyTorch-interface wrapper: NCHW in / NCHW out (test-only).

    In a real model keep activations NHWC end-to-end and call
    `fire_forward_nhwc` directly to avoid these HBM round-trip transposes.
    """
    x = jnp.transpose(x_nchw, (0, 2, 3, 1))                    # NCHW -> NHWC
    out_nhwc = fire_forward_nhwc(x, wsq, bsq, we1, be1, we3, be3)
    return jnp.transpose(out_nhwc, (0, 3, 1, 2))               # NHWC -> NCHW


def fire_reference(x_nchw, wsq, bsq, we1, be1, we3, be3):
    """Pure-JAX f32 reference (matches the PyTorch Fire forward)."""
    x = jnp.transpose(x_nchw, (0, 2, 3, 1))                    # NHWC
    s = jax.nn.relu(jnp.einsum('nhwc,co->nhwo', x, wsq) + bsq.reshape(-1))
    e1 = jax.nn.relu(jnp.einsum('nhwc,co->nhwo', s, we1) + be1.reshape(-1))
    Csq, Ce3 = we3.shape[1], we3.shape[2]
    w3 = we3.reshape(3, 3, Csq, Ce3)                           # HWIO
    e3 = jax.lax.conv_general_dilated(
        s, w3, window_strides=(1, 1), padding='SAME',
        dimension_numbers=('NHWC', 'HWIO', 'NHWC')) + be3.reshape(-1)
    e3 = jax.nn.relu(e3)
    out = jnp.concatenate([e1, e3], axis=-1)
    return jnp.transpose(out, (0, 3, 1, 2))


if __name__ == "__main__":
    # Small shapes consistent with the module: Fire(inputs=4, o_sq1x1=4,
    # o_ex1x1=8, o_ex3x3=8), input x: [N=2, C=4, H=16, W=16].
    N, Cin, H, W = 2, 4, 16, 16
    Csq, Ce1, Ce3 = 4, 8, 8

    key = jax.random.PRNGKey(0)
    kx, k1, k2, k3, k4, k5, k6 = jax.random.split(key, 7)

    x = jax.random.normal(kx, (N, Cin, H, W), dtype=jnp.float32)

    # Channel-matmul weight layout: [Cin, Cout]; 3x3 taps in ky*3+kx order.
    wsq = jax.random.normal(k1, (Cin, Csq), dtype=jnp.float32) * 0.1
    bsq = jax.random.normal(k2, (1, Csq), dtype=jnp.float32) * 0.1
    we1 = jax.random.normal(k3, (Csq, Ce1), dtype=jnp.float32) * 0.1
    be1 = jax.random.normal(k4, (1, Ce1), dtype=jnp.float32) * 0.1
    we3 = jax.random.normal(k5, (9, Csq, Ce3), dtype=jnp.float32) * 0.1
    be3 = jax.random.normal(k6, (1, Ce3), dtype=jnp.float32) * 0.1

    out = fire_forward(x, wsq, bsq, we1, be1, we3, be3)
    out = jax.block_until_ready(out)

    ref = fire_reference(x, wsq, bsq, we1, be1, we3, be3)
    ref = jax.block_until_ready(ref)

    assert out.shape == (N, Ce1 + Ce3, H, W), out.shape
    # Tolerance relaxed vs the f32 reference: MXU operands are bf16
    # (f32 accumulation); observed error ~1e-3.
    assert np.allclose(np.asarray(out), np.asarray(ref), atol=1e-2, rtol=1e-2)

    print("KERNEL_OK")
</pallas_src>

<mosaic_0001>
module attributes {stable_mosaic.version = 11 : i64} {
  func.func @_fire_kernel(%arg0: i32, %arg1: i32, %arg2: memref<1x8x16x4xf32, #tpu.memory_space<vmem>>, %arg3: memref<1x2x16x4xf32, #tpu.memory_space<vmem>>, %arg4: memref<4x4xbf16, #tpu.memory_space<vmem>>, %arg5: memref<1x4xf32, #tpu.memory_space<vmem>>, %arg6: memref<4x8xbf16, #tpu.memory_space<vmem>>, %arg7: memref<1x8xf32, #tpu.memory_space<vmem>>, %arg8: memref<9x4x8xbf16, #tpu.memory_space<vmem>>, %arg9: memref<1x8xf32, #tpu.memory_space<vmem>>, %arg10: memref<1x8x16x16xf32, #tpu.memory_space<vmem>>, %arg11: memref<1x10x18x4xbf16, #tpu.memory_space<vmem>>) attributes {dimension_semantics = [#tpu.dimension_semantics<parallel>, #tpu.dimension_semantics<parallel>], iteration_bounds = array<i64: 2, 2>, scalar_prefetch = 0 : i64, scratch_operands = 1 : i64, tpu.core_type = #tpu.core_type<tc>, window_params = [{transform_indices = @transform_0, window_bounds = array<i64: 1, 8, 16, 4>}, {transform_indices = @transform_1, window_bounds = array<i64: 1, 2, 16, 4>}, {pipeline_mode = #tpu.pipeline_mode<synchronous>, transform_indices = @transform_2, window_bounds = array<i64: 4, 4>}, {pipeline_mode = #tpu.pipeline_mode<synchronous>, transform_indices = @transform_3, window_bounds = array<i64: 1, 4>}, {pipeline_mode = #tpu.pipeline_mode<synchronous>, transform_indices = @transform_4, window_bounds = array<i64: 4, 8>}, {pipeline_mode = #tpu.pipeline_mode<synchronous>, transform_indices = @transform_5, window_bounds = array<i64: 1, 8>}, {pipeline_mode = #tpu.pipeline_mode<synchronous>, transform_indices = @transform_6, window_bounds = array<i64: 9, 4, 8>}, {pipeline_mode = #tpu.pipeline_mode<synchronous>, transform_indices = @transform_7, window_bounds = array<i64: 1, 8>}, {transform_indices = @transform_8, window_bounds = array<i64: 1, 8, 16, 16>}]} {
    %c0 = arith.constant 0 : index
    %c0_0 = arith.constant 0 : index
    %c0_1 = arith.constant 0 : index
    %c0_2 = arith.constant 0 : index
    %0 = vector.load %arg2[%c0, %c0_0, %c0_1, %c0_2] : memref<1x8x16x4xf32, #tpu.memory_space<vmem>>, vector<1x8x16x4xf32>
    %1 = vector.shape_cast %0 : vector<1x8x16x4xf32> to vector<128x4xf32>
    %2 = arith.truncf %1 : vector<128x4xf32> to vector<128x4xbf16>
    %c0_3 = arith.constant 0 : index
    %c0_4 = arith.constant 0 : index
    %3 = vector.load %arg4[%c0_3, %c0_4] : memref<4x4xbf16, #tpu.memory_space<vmem>>, vector<4x4xbf16>
    %cst = arith.constant dense<0.000000e+00> : vector<128x4xf32>
    %4 = tpu.matmul %2, %3, %cst {dimension_numbers = #tpu.dot_dimension_numbers<[1], [0], [0], [1], [0, 0, 1, 1], [], []>} : vector<128x4xbf16>, vector<4x4xbf16>, vector<128x4xf32> -> vector<128x4xf32>
    %c0_5 = arith.constant 0 : index
    %c0_6 = arith.constant 0 : index
    %5 = vector.load %arg5[%c0_5, %c0_6] : memref<1x4xf32, #tpu.memory_space<vmem>>, vector<1x4xf32>
    %6 = vector.broadcast %5 : vector<1x4xf32> to vector<128x4xf32>
    %7 = arith.addf %4, %6 : vector<128x4xf32>
    %cst_7 = arith.constant 0.000000e+00 : f32
    %8 = vector.broadcast %cst_7 : f32 to vector<128x4xf32>
    %9 = arith.maximumf %7, %8 : vector<128x4xf32>
    %10 = arith.truncf %9 : vector<128x4xf32> to vector<128x4xbf16>
    %c0_8 = arith.constant 0 : index
    %c0_9 = arith.constant 0 : index
    %c0_10 = arith.constant 0 : index
    %c0_11 = arith.constant 0 : index
    %11 = vector.load %arg3[%c0_8, %c0_9, %c0_10, %c0_11] : memref<1x2x16x4xf32, #tpu.memory_space<vmem>>, vector<1x2x16x4xf32>
    %12 = vector.shape_cast %11 : vector<1x2x16x4xf32> to vector<32x4xf32>
    %13 = arith.truncf %12 : vector<32x4xf32> to vector<32x4xbf16>
    %c0_12 = arith.constant 0 : index
    %c0_13 = arith.constant 0 : index
    %14 = vector.load %arg4[%c0_12, %c0_13] : memref<4x4xbf16, #tpu.memory_space<vmem>>, vector<4x4xbf16>
    %cst_14 = arith.constant dense<0.000000e+00> : vector<32x4xf32>
    %15 = tpu.matmul %13, %14, %cst_14 {dimension_numbers = #tpu.dot_dimension_numbers<[1], [0], [0], [1], [0, 0, 1, 1], [], []>} : vector<32x4xbf16>, vector<4x4xbf16>, vector<32x4xf32> -> vector<32x4xf32>
    %c0_15 = arith.constant 0 : index
    %c0_16 = arith.constant 0 : index
    %16 = vector.load %arg5[%c0_15, %c0_16] : memref<1x4xf32, #tpu.memory_space<vmem>>, vector<1x4xf32>
    %17 = vector.broadcast %16 : vector<1x4xf32> to vector<32x4xf32>
    %18 = arith.addf %15, %17 : vector<32x4xf32>
    %cst_17 = arith.constant 0.000000e+00 : f32
    %19 = vector.broadcast %cst_17 : f32 to vector<32x4xf32>
    %20 = arith.maximumf %18, %19 : vector<32x4xf32>
    %21 = vector.shape_cast %20 : vector<32x4xf32> to vector<1x2x16x4xf32>
    %c0_i32 = arith.constant 0 : i32
    %22 = arith.cmpi sgt, %arg1, %c0_i32 : i32
    %23 = arith.extui %22 : i1 to i32
    %24 = arith.sitofp %23 : i32 to f32
    %c1_i32 = arith.constant 1 : i32
    %25 = arith.cmpi slt, %arg1, %c1_i32 : i32
    %26 = arith.extui %25 : i1 to i32
    %27 = arith.sitofp %26 : i32 to f32
    %28 = vector.extract_strided_slice %21 {offsets = [0, 0, 0, 0], sizes = [1, 1, 16, 4], strides = [1, 1, 1, 1]} : vector<1x2x16x4xf32> to vector<1x1x16x4xf32>
    %29 = vector.broadcast %24 : f32 to vector<1x1x16x4xf32>
    %30 = arith.mulf %28, %29 : vector<1x1x16x4xf32>
    %31 = arith.truncf %30 : vector<1x1x16x4xf32> to vector<1x1x16x4xbf16>
    %32 = vector.extract_strided_slice %21 {offsets = [0, 1, 0, 0], sizes = [1, 1, 16, 4], strides = [1, 1, 1, 1]} : vector<1x2x16x4xf32> to vector<1x1x16x4xf32>
    %33 = vector.broadcast %27 : f32 to vector<1x1x16x4xf32>
    %34 = arith.mulf %32, %33 : vector<1x1x16x4xf32>
    %35 = arith.truncf %34 : vector<1x1x16x4xf32> to vector<1x1x16x4xbf16>
    %cst_18 = arith.constant 0.000000e+00 : bf16
    %36 = vector.broadcast %cst_18 : bf16 to vector<1x10x1x4xbf16>
    %c0_19 = arith.constant 0 : index
    %c0_20 = arith.constant 0 : index
    %c0_21 = arith.constant 0 : index
    %c0_22 = arith.constant 0 : index
    %37 = vector.load %arg11[%c0_19, %c0_20, %c0_21, %c0_22] : memref<1x10x18x4xbf16, #tpu.memory_space<vmem>>, vector<1x10x1x4xbf16>
    tpu.vector_store %arg11[%c0_19, %c0_20, %c0_21, %c0_22], %36 {strides = array<i32>} : memref<1x10x18x4xbf16, #tpu.memory_space<vmem>>, vector<1x10x1x4xbf16>,
    %c0_23 = arith.constant 0 : index
    %c0_24 = arith.constant 0 : index
    %c17 = arith.constant 17 : index
    %c0_25 = arith.constant 0 : index
    %38 = vector.load %arg11[%c0_23, %c0_24, %c17, %c0_25] : memref<1x10x18x4xbf16, #tpu.memory_space<vmem>>, vector<1x10x1x4xbf16>
    tpu.vector_store %arg11[%c0_23, %c0_24, %c17, %c0_25], %36 {strides = array<i32>} : memref<1x10x18x4xbf16, #tpu.memory_space<vmem>>, vector<1x10x1x4xbf16>,
    %c0_26 = arith.constant 0 : index
    %c0_27 = arith.constant 0 : index
    %c1 = arith.constant 1 : index
    %c0_28 = arith.constant 0 : index
    %39 = vector.load %arg11[%c0_26, %c0_27, %c1, %c0_28] : memref<1x10x18x4xbf16, #tpu.memory_space<vmem>>, vector<1x1x16x4xbf16>
    tpu.vector_store %arg11[%c0_26, %c0_27, %c1, %c0_28], %31 {strides = array<i32>} : memref<1x10x18x4xbf16, #tpu.memory_space<vmem>>, vector<1x1x16x4xbf16>,
    %c0_29 = arith.constant 0 : index
    %c9 = arith.constant 9 : index
    %c1_30 = arith.constant 1 : index
    %c0_31 = arith.constant 0 : index
    %40 = vector.load %arg11[%c0_29, %c9, %c1_30, %c0_31] : memref<1x10x18x4xbf16, #tpu.memory_space<vmem>>, vector<1x1x16x4xbf16>
    tpu.vector_store %arg11[%c0_29, %c9, %c1_30, %c0_31], %35 {strides = array<i32>} : memref<1x10x18x4xbf16, #tpu.memory_space<vmem>>, vector<1x1x16x4xbf16>,
    %41 = vector.shape_cast %10 : vector<128x4xbf16> to vector<1x8x16x4xbf16>
    %c0_32 = arith.constant 0 : index
    %c1_33 = arith.constant 1 : index
    %c1_34 = arith.constant 1 : index
    %c0_35 = arith.constant 0 : index
    %42 = vector.load %arg11[%c0_32, %c1_33, %c1_34, %c0_35] : memref<1x10x18x4xbf16, #tpu.memory_space<vmem>>, vector<1x8x16x4xbf16>
    tpu.vector_store %arg11[%c0_32, %c1_33, %c1_34, %c0_35], %41 {strides = array<i32>} : memref<1x10x18x4xbf16, #tpu.memory_space<vmem>>, vector<1x8x16x4xbf16>,
    %c0_36 = arith.constant 0 : index
    %c0_37 = arith.constant 0 : index
    %c0_38 = arith.constant 0 : index
    %c0_39 = arith.constant 0 : index
    %43 = vector.load %arg11[%c0_36, %c0_37, %c0_38, %c0_39] : memref<1x10x18x4xbf16, #tpu.memory_space<vmem>>, vector<1x8x16x4xbf16>
    %44 = vector.shape_cast %43 : vector<1x8x16x4xbf16> to vector<128x4xbf16>
    %c0_40 = arith.constant 0 : index
    %c0_41 = arith.constant 0 : index
    %c0_42 = arith.constant 0 : index
    %45 = vector.load %arg8[%c0_40, %c0_41, %c0_42] : memref<9x4x8xbf16, #tpu.memory_space<vmem>>, vector<1x4x8xbf16>
    %46 = vector.shape_cast %45 : vector<1x4x8xbf16> to vector<4x8xbf16>
    %cst_43 = arith.constant dense<0.000000e+00> : vector<128x8xf32>
    %47 = tpu.matmul %44, %46, %cst_43 {dimension_numbers = #tpu.dot_dimension_numbers<[1], [0], [0], [1], [0, 0, 1, 1], [], []>} : vector<128x4xbf16>, vector<4x8xbf16>, vector<128x8xf32> -> vector<128x8xf32>
    %c0_44 = arith.constant 0 : index
    %c0_45 = arith.constant 0 : index
    %c1_46 = arith.constant 1 : index
    %c0_47 = arith.constant 0 : index
    %48 = vector.load %arg11[%c0_44, %c0_45, %c1_46, %c0_47] : memref<1x10x18x4xbf16, #tpu.memory_space<vmem>>, vector<1x8x16x4xbf16>
    %49 = vector.shape_cast %48 : vector<1x8x16x4xbf16> to vector<128x4xbf16>
    %c1_48 = arith.constant 1 : index
    %c0_49 = arith.constant 0 : index
    %c0_50 = arith.constant 0 : index
    %50 = vector.load %arg8[%c1_48, %c0_49, %c0_50] : memref<9x4x8xbf16, #tpu.memory_space<vmem>>, vector<1x4x8xbf16>
    %51 = vector.shape_cast %50 : vector<1x4x8xbf16> to vector<4x8xbf16>
    %cst_51 = arith.constant dense<0.000000e+00> : vector<128x8xf32>
    %52 = tpu.matmul %49, %51, %cst_51 {dimension_numbers = #tpu.dot_dimension_numbers<[1], [0], [0], [1], [0, 0, 1, 1], [], []>} : vector<128x4xbf16>, vector<4x8xbf16>, vector<128x8xf32> -> vector<128x8xf32>
    %53 = arith.addf %47, %52 : vector<128x8xf32>
    %c0_52 = arith.constant 0 : index
    %c0_53 = arith.constant 0 : index
    %c2 = arith.constant 2 : index
    %c0_54 = arith.constant 0 : index
    %54 = vector.load %arg11[%c0_52, %c0_53, %c2, %c0_54] : memref<1x10x18x4xbf16, #tpu.memory_space<vmem>>, vector<1x8x16x4xbf16>
    %55 = vector.shape_cast %54 : vector<1x8x16x4xbf16> to vector<128x4xbf16>
    %c2_55 = arith.constant 2 : index
    %c0_56 = arith.constant 0 : index
    %c0_57 = arith.constant 0 : index
    %56 = vector.load %arg8[%c2_55, %c0_56, %c0_57] : memref<9x4x8xbf16, #tpu.memory_space<vmem>>, vector<1x4x8xbf16>
    %57 = vector.shape_cast %56 : vector<1x4x8xbf16> to vector<4x8xbf16>
    %cst_58 = arith.constant dense<0.000000e+00> : vector<128x8xf32>
    %58 = tpu.matmul %55, %57, %cst_58 {dimension_numbers = #tpu.dot_dimension_numbers<[1], [0], [0], [1], [0, 0, 1, 1], [], []>} : vector<128x4xbf16>, vector<4x8xbf16>, vector<128x8xf32> -> vector<128x8xf32>
    %59 = arith.addf %53, %58 : vector<128x8xf32>
    %c0_59 = arith.constant 0 : index
    %c1_60 = arith.constant 1 : index
    %c0_61 = arith.constant 0 : index
    %c0_62 = arith.constant 0 : index
    %60 = vector.load %arg11[%c0_59, %c1_60, %c0_61, %c0_62] : memref<1x10x18x4xbf16, #tpu.memory_space<vmem>>, vector<1x8x16x4xbf16>
    %61 = vector.shape_cast %60 : vector<1x8x16x4xbf16> to vector<128x4xbf16>
    %c3 = arith.constant 3 : index
    %c0_63 = arith.constant 0 : index
    %c0_64 = arith.constant 0 : index
    %62 = vector.load %arg8[%c3, %c0_63, %c0_64] : memref<9x4x8xbf16, #tpu.memory_space<vmem>>, vector<1x4x8xbf16>
    %63 = vector.shape_cast %62 : vector<1x4x8xbf16> to vector<4x8xbf16>
    %cst_65 = arith.constant dense<0.000000e+00> : vector<128x8xf32>
    %64 = tpu.matmul %61, %63, %cst_65 {dimension_numbers = #tpu.dot_dimension_numbers<[1], [0], [0], [1], [0, 0, 1, 1], [], []>} : vector<128x4xbf16>, vector<4x8xbf16>, vector<128x8xf32> -> vector<128x8xf32>
    %65 = arith.addf %59, %64 : vector<128x8xf32>
    %c0_66 = arith.constant 0 : index
    %c1_67 = arith.constant 1 : index
    %c1_68 = arith.constant 1 : index
    %c0_69 = arith.constant 0 : index
    %66 = vector.load %arg11[%c0_66, %c1_67, %c1_68, %c0_69] : memref<1x10x18x4xbf16, #tpu.memory_space<vmem>>, vector<1x8x16x4xbf16>
    %67 = vector.shape_cast %66 : vector<1x8x16x4xbf16> to vector<128x4xbf16>
    %c4 = arith.constant 4 : index
    %c0_70 = arith.constant 0 : index
    %c0_71 = arith.constant 0 : index
    %68 = vector.load %arg8[%c4, %c0_70, %c0_71] : memref<9x4x8xbf16, #tpu.memory_space<vmem>>, vector<1x4x8xbf16>
    %69 = vector.shape_cast %68 : vector<1x4x8xbf16> to vector<4x8xbf16>
    %cst_72 = arith.constant dense<0.000000e+00> : vector<128x8xf32>
    %70 = tpu.matmul %67, %69, %cst_72 {dimension_numbers = #tpu.dot_dimension_numbers<[1], [0], [0], [1], [0, 0, 1, 1], [], []>} : vector<128x4xbf16>, vector<4x8xbf16>, vector<128x8xf32> -> vector<128x8xf32>
    %71 = arith.addf %65, %70 : vector<128x8xf32>
    %c0_73 = arith.constant 0 : index
    %c0_74 = arith.constant 0 : index
    %72 = vector.load %arg6[%c0_73, %c0_74] : memref<4x8xbf16, #tpu.memory_space<vmem>>, vector<4x8xbf16>
    %cst_75 = arith.constant dense<0.000000e+00> : vector<128x8xf32>
    %73 = tpu.matmul %67, %72, %cst_75 {dimension_numbers = #tpu.dot_dimension_numbers<[1], [0], [0], [1], [0, 0, 1, 1], [], []>} : vector<128x4xbf16>, vector<4x8xbf16>, vector<128x8xf32> -> vector<128x8xf32>
    %c0_76 = arith.constant 0 : index
    %c1_77 = arith.constant 1 : index
    %c2_78 = arith.constant 2 : index
    %c0_79 = arith.constant 0 : index
    %74 = vector.load %arg11[%c0_76, %c1_77, %c2_78, %c0_79] : memref<1x10x18x4xbf16, #tpu.memory_space<vmem>>, vector<1x8x16x4xbf16>
    %75 = vector.shape_cast %74 : vector<1x8x16x4xbf16> to vector<128x4xbf16>
    %c5 = arith.constant 5 : index
    %c0_80 = arith.constant 0 : index
    %c0_81 = arith.constant 0 : index
    %76 = vector.load %arg8[%c5, %c0_80, %c0_81] : memref<9x4x8xbf16, #tpu.memory_space<vmem>>, vector<1x4x8xbf16>
    %77 = vector.shape_cast %76 : vector<1x4x8xbf16> to vector<4x8xbf16>
    %cst_82 = arith.constant dense<0.000000e+00> : vector<128x8xf32>
    %78 = tpu.matmul %75, %77, %cst_82 {dimension_numbers = #tpu.dot_dimension_numbers<[1], [0], [0], [1], [0, 0, 1, 1], [], []>} : vector<128x4xbf16>, vector<4x8xbf16>, vector<128x8xf32> -> vector<128x8xf32>
    %79 = arith.addf %71, %78 : vector<128x8xf32>
    %c0_83 = arith.constant 0 : index
    %c2_84 = arith.constant 2 : index
    %c0_85 = arith.constant 0 : index
    %c0_86 = arith.constant 0 : index
    %80 = vector.load %arg11[%c0_83, %c2_84, %c0_85, %c0_86] : memref<1x10x18x4xbf16, #tpu.memory_space<vmem>>, vector<1x8x16x4xbf16>
    %81 = vector.shape_cast %80 : vector<1x8x16x4xbf16> to vector<128x4xbf16>
    %c6 = arith.constant 6 : index
    %c0_87 = arith.constant 0 : index
    %c0_88 = arith.constant 0 : index
    %82 = vector.load %arg8[%c6, %c0_87, %c0_88] : memref<9x4x8xbf16, #tpu.memory_space<vmem>>, vector<1x4x8xbf16>
    %83 = vector.shape_cast %82 : vector<1x4x8xbf16> to vector<4x8xbf16>
    %cst_89 = arith.constant dense<0.000000e+00> : vector<128x8xf32>
    %84 = tpu.matmul %81, %83, %cst_89 {dimension_numbers = #tpu.dot_dimension_numbers<[1], [0], [0], [1], [0, 0, 1, 1], [], []>} : vector<128x4xbf16>, vector<4x8xbf16>, vector<128x8xf32> -> vector<128x8xf32>
    %85 = arith.addf %79, %84 : vector<128x8xf32>
    %c0_90 = arith.constant 0 : index
    %c2_91 = arith.constant 2 : index
    %c1_92 = arith.constant 1 : index
    %c0_93 = arith.constant 0 : index
    %86 = vector.load %arg11[%c0_90, %c2_91, %c1_92, %c0_93] : memref<1x10x18x4xbf16, #tpu.memory_space<vmem>>, vector<1x8x16x4xbf16>
    %87 = vector.shape_cast %86 : vector<1x8x16x4xbf16> to vector<128x4xbf16>
    %c7 = arith.constant 7 : index
    %c0_94 = arith.constant 0 : index
    %c0_95 = arith.constant 0 : index
    %88 = vector.load %arg8[%c7, %c0_94, %c0_95] : memref<9x4x8xbf16, #tpu.memory_space<vmem>>, vector<1x4x8xbf16>
    %89 = vector.shape_cast %88 : vector<1x4x8xbf16> to vector<4x8xbf16>
    %cst_96 = arith.constant dense<0.000000e+00> : vector<128x8xf32>
    %90 = tpu.matmul %87, %89, %cst_96 {dimension_numbers = #tpu.dot_dimension_numbers<[1], [0], [0], [1], [0, 0, 1, 1], [], []>} : vector<128x4xbf16>, vector<4x8xbf16>, vector<128x8xf32> -> vector<128x8xf32>
    %91 = arith.addf %85, %90 : vector<128x8xf32>
    %c0_97 = arith.constant 0 : index
    %c2_98 = arith.constant 2 : index
    %c2_99 = arith.constant 2 : index
    %c0_100 = arith.constant 0 : index
    %92 = vector.load %arg11[%c0_97, %c2_98, %c2_99, %c0_100] : memref<1x10x18x4xbf16, #tpu.memory_space<vmem>>, vector<1x8x16x4xbf16>
    %93 = vector.shape_cast %92 : vector<1x8x16x4xbf16> to vector<128x4xbf16>
    %c8 = arith.constant 8 : index
    %c0_101 = arith.constant 0 : index
    %c0_102 = arith.constant 0 : index
    %94 = vector.load %arg8[%c8, %c0_101, %c0_102] : memref<9x4x8xbf16, #tpu.memory_space<vmem>>, vector<1x4x8xbf16>
    %95 = vector.shape_cast %94 : vector<1x4x8xbf16> to vector<4x8xbf16>
    %cst_103 = arith.constant dense<0.000000e+00> : vector<128x8xf32>
    %96 = tpu.matmul %93, %95, %cst_103 {dimension_numbers = #tpu.dot_dimension_numbers<[1], [0], [0], [1], [0, 0, 1, 1], [], []>} : vector<128x4xbf16>, vector<4x8xbf16>, vector<128x8xf32> -> vector<128x8xf32>
    %97 = arith.addf %91, %96 : vector<128x8xf32>
    %c0_104 = arith.constant 0 : index
    %c0_105 = arith.constant 0 : index
    %98 = vector.load %arg7[%c0_104, %c0_105] : memref<1x8xf32, #tpu.memory_space<vmem>>, vector<1x8xf32>
    %99 = vector.broadcast %98 : vector<1x8xf32> to vector<128x8xf32>
    %100 = arith.addf %73, %99 : vector<128x8xf32>
    %cst_106 = arith.constant 0.000000e+00 : f32
    %101 = vector.broadcast %cst_106 : f32 to vector<128x8xf32>
    %102 = arith.maximumf %100, %101 : vector<128x8xf32>
    %c0_107 = arith.constant 0 : index
    %c0_108 = arith.constant 0 : index
    %103 = vector.load %arg9[%c0_107, %c0_108] : memref<1x8xf32, #tpu.memory_space<vmem>>, vector<1x8xf32>
    %104 = vector.broadcast %103 : vector<1x8xf32> to vector<128x8xf32>
    %105 = arith.addf %97, %104 : vector<128x8xf32>
    %cst_109 = arith.constant 0.000000e+00 : f32
    %106 = vector.broadcast %cst_109 : f32 to vector<128x8xf32>
    %107 = arith.maximumf %105, %106 : vector<128x8xf32>
    %108 = vector.shape_cast %102 : vector<128x8xf32> to vector<1x8x16x8xf32>
    %c0_110 = arith.constant 0 : index
    %c0_111 = arith.constant 0 : index
    %c0_112 = arith.constant 0 : index
    %c0_113 = arith.constant 0 : index
    %109 = vector.load %arg10[%c0_110, %c0_111, %c0_112, %c0_113] : memref<1x8x16x16xf32, #tpu.memory_space<vmem>>, vector<1x8x16x8xf32>
    tpu.vector_store %arg10[%c0_110, %c0_111, %c0_112, %c0_113], %108 {strides = array<i32>} : memref<1x8x16x16xf32, #tpu.memory_space<vmem>>, vector<1x8x16x8xf32>,
    %110 = vector.shape_cast %107 : vector<128x8xf32> to vector<1x8x16x8xf32>
    %c0_114 = arith.constant 0 : index
    %c0_115 = arith.constant 0 : index
    %c0_116 = arith.constant 0 : index
    %c8_117 = arith.constant 8 : index
    %111 = vector.load %arg10[%c0_114, %c0_115, %c0_116, %c8_117] : memref<1x8x16x16xf32, #tpu.memory_space<vmem>>, vector<1x8x16x8xf32>
    tpu.vector_store %arg10[%c0_114, %c0_115, %c0_116, %c8_117], %110 {strides = array<i32>} : memref<1x8x16x16xf32, #tpu.memory_space<vmem>>, vector<1x8x16x8xf32>,
    return
  }
  func.func @transform_0(%arg0: i32, %arg1: i32) -> (i32, i32, i32, i32) {
    %c0_i32 = arith.constant 0 : i32
    %c0_i32_0 = arith.constant 0 : i32
    %c0_i32_1 = arith.constant 0 : i32
    return %arg0, %arg1, %c0_i32, %c0_i32_0 : i32, i32, i32, i32
  }
  func.func @transform_1(%arg0: i32, %arg1: i32) -> (i32, i32, i32, i32) {
    %c0_i32 = arith.constant 0 : i32
    %c0_i32_0 = arith.constant 0 : i32
    %c0_i32_1 = arith.constant 0 : i32
    return %arg0, %arg1, %c0_i32, %c0_i32_0 : i32, i32, i32, i32
  }
  func.func @transform_2(%arg0: i32, %arg1: i32) -> (i32, i32) {
    %c0_i32 = arith.constant 0 : i32
    %c0_i32_0 = arith.constant 0 : i32
    %c0_i32_1 = arith.constant 0 : i32
    return %c0_i32, %c0_i32_0 : i32, i32
  }
  func.func @transform_3(%arg0: i32, %arg1: i32) -> (i32, i32) {
    %c0_i32 = arith.constant 0 : i32
    %c0_i32_0 = arith.constant 0 : i32
    %c0_i32_1 = arith.constant 0 : i32
    return %c0_i32, %c0_i32_0 : i32, i32
  }
  func.func @transform_4(%arg0: i32, %arg1: i32) -> (i32, i32) {
    %c0_i32 = arith.constant 0 : i32
    %c0_i32_0 = arith.constant 0 : i32
    %c0_i32_1 = arith.constant 0 : i32
    return %c0_i32, %c0_i32_0 : i32, i32
  }
  func.func @transform_5(%arg0: i32, %arg1: i32) -> (i32, i32) {
    %c0_i32 = arith.constant 0 : i32
    %c0_i32_0 = arith.constant 0 : i32
    %c0_i32_1 = arith.constant 0 : i32
    return %c0_i32, %c0_i32_0 : i32, i32
  }
  func.func @transform_6(%arg0: i32, %arg1: i32) -> (i32, i32, i32) {
    %c0_i32 = arith.constant 0 : i32
    %c0_i32_0 = arith.constant 0 : i32
    %c0_i32_1 = arith.constant 0 : i32
    %c0_i32_2 = arith.constant 0 : i32
    return %c0_i32, %c0_i32_0, %c0_i32_1 : i32, i32, i32
  }
  func.func @transform_7(%arg0: i32, %arg1: i32) -> (i32, i32) {
    %c0_i32 = arith.constant 0 : i32
    %c0_i32_0 = arith.constant 0 : i32
    %c0_i32_1 = arith.constant 0 : i32
    return %c0_i32, %c0_i32_0 : i32, i32
  }
  func.func @transform_8(%arg0: i32, %arg1: i32) -> (i32, i32, i32, i32) {
    %c0_i32 = arith.constant 0 : i32
    %c0_i32_0 = arith.constant 0 : i32
    %c0_i32_1 = arith.constant 0 : i32
    return %arg0, %arg1, %c0_i32, %c0_i32_0 : i32, i32, i32, i32
  }
}

</mosaic_0001>

<llo_original>
// kernel: tpu_custom_call.1
$region0: #{tpu_custom_call.1}
  #allocation0 [shape = 'u32[]', space=smem, size = 0x4, offset = 0x4, fixed_abs, tag = 'smem constant byte address 0x4 - core index']
  #allocation1 [shape = 'u32[144,128]{1,0:T(1,128)}', space=vmem, size = 0x12000, scoped, tag = 'internal scratch']
  #allocation2 [shape = 'bf16[1,10,18,4]{3,2,1,0:T(8,128)(2,1)}', space=vmem, size = 0xf000, scoped, tag = 'scratch operand']
  %s0 = inlined_call_operand.vmem [shape: f32[2,16,16,4], index: 0, kind: input, shape index: {}]
  %s1 = inlined_call_operand.vmem [shape: f32[2,4,16,4], index: 1, kind: input, shape index: {}]
  %s2 = inlined_call_operand.vmem [shape: bf16[4,4], index: 2, kind: input, shape index: {}]
  %s3 = inlined_call_operand.vmem [shape: f32[1,4], index: 3, kind: input, shape index: {}]
  %s4 = inlined_call_operand.vmem [shape: bf16[4,8], index: 4, kind: input, shape index: {}]
  %s5 = inlined_call_operand.vmem [shape: f32[1,8], index: 5, kind: input, shape index: {}]
  %s6 = inlined_call_operand.vmem [shape: bf16[9,4,8], index: 6, kind: input, shape index: {}]
  %s7 = inlined_call_operand.vmem [shape: f32[1,8], index: 7, kind: input, shape index: {}]
  %s8 = inlined_call_operand.hbm [shape: f32[2,16,16,16], index: 8, kind: output, shape index: {}]
  %s9 = sld [smem:[#allocation0]]
  $region65: #{tpu_custom_call.1} parent=0
    _
  %s11 = ssub.s32 1, %s9
  %s12 = scalar_select 0, %s11, %s9
  $region1: #{tpu_custom_call.1} parent=0
    #allocation3 [shape = 'u8[131072]{0}', space=vmem, size = 0x20000, scoped, tag = 'output window, operand 0']
    #allocation4 [shape = 's32[2]{0}', space=sflag, size = 0x8, scoped, tag = 'scoped memory for tpu_custom_call.1']
    %13 = vsyncpa [#allocation4], 0
    %s14 = scalar_lea.sflag [#allocation4], 1
    %15 = vsyncpa %s14, 0
    loop: start=0, step=1, limit=6
    $region2: #{tpu_custom_call.1} parent=1 // loop_pre_header
      _
    $region3: #{tpu_custom_call.1} parent=1 // loop_header
      %s17 = sphi 0, %s21
      %p18 = scmp.ge.s32.totalorder %s17, 6
      %s24 = sphi 0, %s36
      %s25 = sphi 0, %s32
      %s26 = sphi 0, %s24
      %s27 = sphi 0, %s25
      %s28 = sphi 0, %s26
      %s29 = sphi 0, %s27
      %s41 = sphi 0, %s43
      %s44 = sphi 0, %s41
      %s45 = sphi 0, %s44
      %s61 = sphi 0, %s45
      %s69 = sphi 0, %s71
      %s72 = sphi 0, %s69
      %s73 = sphi 0, %s72
      %s89 = sphi 0, %s73
      %s93 = sphi 0, %s93
      %s95 = sphi 0, %s93
      %s96 = sphi 0, %s95
      %s110 = sphi 0, %s96
      %s114 = sphi 0, %s114
      %s116 = sphi 0, %s114
      %s117 = sphi 0, %s116
      %s131 = sphi 0, %s117
      %s135 = sphi 0, %s135
      %s137 = sphi 0, %s135
      %s138 = sphi 0, %s137
      %s152 = sphi 0, %s138
      %s156 = sphi 0, %s156
      %s158 = sphi 0, %s156
      %s159 = sphi 0, %s158
      %s173 = sphi 0, %s159
      %s177 = sphi 0, %s177
      %s179 = sphi 0, %s177
      %s180 = sphi 0, %s179
      %s194 = sphi 0, %s180
      %s198 = sphi 0, %s198
      %s200 = sphi 0, %s198
      %s201 = sphi 0, %s200
      %s215 = sphi 0, %s201
      %s223 = sphi 0, %s225
      %s226 = sphi 0, %s223
      %s227 = sphi 0, %s226
      %s243 = sphi 0, %s227
    $region4: #{tpu_custom_call.1} parent=1 // loop_header_branch
      %20 = sbr.rel (%p18) target = $region8
    $region5: #{tpu_custom_call.1} parent=1 // loop_body
      %s22 = ssub.s32 %s17, 1
      %s23 = ssub.s32 %s17, 2
      %s30 = sadd.s32 1, %s25
      %p31 = scmp.ge.s32.totalorder %s30, 2
      %s32 = scalar_select %p31, 0, %s30
      %s33 = sadd.s32 1, %s24
      %s34 = scalar_select %p31, %s33, %s24
      %p35 = scmp.ge.s32.totalorder %s34, 2
      %s36 = scalar_select %p35, 0, %s34
      %s37 = ssub.s32 %s24, %s36
      %s38 = ssub.s32 %s25, %s32
      %s39 = sor.u32 %s37, %s38
      %p40 = scmp.eq.s32.totalorder %s39, 0
      %s42 = sadd.s32 %s41, 1
      %s43 = scalar_select %p40, %s41, %s42
      %p46 = pneg %p40
      %p47 = scmp.eq.s32.totalorder %s17, 3
      %p48 = por %p46, %p47
      %p49 = scmp.ne.s32.totalorder %s41, %s44
      %p50 = scmp.eq.s32.totalorder %s17, 0
      %p51 = por %p49, %p50
      %p52 = scmp.ne.s32.totalorder %s41, %s44
      %p53 = scmp.eq.s32.totalorder %s22, 3
      %p54 = por %p52, %p53
      %p55 = scmp.ne.s32.totalorder %s44, %s45
      %p56 = scmp.eq.s32.totalorder %s22, 0
      %p57 = por %p55, %p56
      %p58 = scmp.ne.s32.totalorder %s44, %s45
      %p59 = scmp.eq.s32.totalorder %s23, 3
      %p60 = por %p58, %p59
      %p62 = scmp.ne.s32.totalorder %s45, %s61
      %p63 = scmp.eq.s32.totalorder %s23, 0
      %p64 = por %p62, %p63
      %s65 = ssub.s32 %s24, %s36
      %s66 = ssub.s32 %s25, %s32
      %s67 = sor.u32 %s65, %s66
      %p68 = scmp.eq.s32.totalorder %s67, 0
      %s70 = sadd.s32 %s69, 1
      %s71 = scalar_select %p68, %s69, %s70
      %p74 = pneg %p68
      %p75 = scmp.eq.s32.totalorder %s17, 3
      %p76 = por %p74, %p75
      %p77 = scmp.ne.s32.totalorder %s69, %s72
      %p78 = scmp.eq.s32.totalorder %s17, 0
      %p79 = por %p77, %p78
      %p80 = scmp.ne.s32.totalorder %s69, %s72
      %p81 = scmp.eq.s32.totalorder %s22, 3
      %p82 = por %p80, %p81
      %p83 = scmp.ne.s32.totalorder %s72, %s73
      %p84 = scmp.eq.s32.totalorder %s22, 0
      %p85 = por %p83, %p84
      %p86 = scmp.ne.s32.totalorder %s72, %s73
      %p87 = scmp.eq.s32.totalorder %s23, 3
      %p88 = por %p86, %p87
      %p90 = scmp.ne.s32.totalorder %s73, %s89
      %p91 = scmp.eq.s32.totalorder %s23, 0
      %p92 = por %p90, %p91
      %s94 = sadd.s32 %s93, 1
      %p97 = scmp.eq.s32.totalorder %s17, 3
      %p98 = scmp.ne.s32.totalorder %s93, %s95
      %p99 = scmp.eq.s32.totalorder %s17, 0
      %p100 = por %p98, %p99
      %p101 = scmp.ne.s32.totalorder %s93, %s95
      %p102 = scmp.eq.s32.totalorder %s22, 3
      %p103 = por %p101, %p102
      %p104 = scmp.ne.s32.totalorder %s95, %s96
      %p105 = scmp.eq.s32.totalorder %s22, 0
      %p106 = por %p104, %p105
      %p107 = scmp.ne.s32.totalorder %s95, %s96
      %p108 = scmp.eq.s32.totalorder %s23, 3
      %p109 = por %p107, %p108
      %p111 = scmp.ne.s32.totalorder %s96, %s110
      %p112 = scmp.eq.s32.totalorder %s23, 0
      %p113 = por %p111, %p112
      %s115 = sadd.s32 %s114, 1
      %p118 = scmp.eq.s32.totalorder %s17, 3
      %p119 = scmp.ne.s32.totalorder %s114, %s116
      %p120 = scmp.eq.s32.totalorder %s17, 0
      %p121 = por %p119, %p120
      %p122 = scmp.ne.s32.totalorder %s114, %s116
      %p123 = scmp.eq.s32.totalorder %s22, 3
      %p124 = por %p122, %p123
      %p125 = scmp.ne.s32.totalorder %s116, %s117
      %p126 = scmp.eq.s32.totalorder %s22, 0
      %p127 = por %p125, %p126
      %p128 = scmp.ne.s32.totalorder %s116, %s117
      %p129 = scmp.eq.s32.totalorder %s23, 3
      %p130 = por %p128, %p129
      %p132 = scmp.ne.s32.totalorder %s117, %s131
      %p133 = scmp.eq.s32.totalorder %s23, 0
      %p134 = por %p132, %p133
      %s136 = sadd.s32 %s135, 1
      %p139 = scmp.eq.s32.totalorder %s17, 3
      %p140 = scmp.ne.s32.totalorder %s135, %s137
      %p141 = scmp.eq.s32.totalorder %s17, 0
      %p142 = por %p140, %p141
      %p143 = scmp.ne.s32.totalorder %s135, %s137
      %p144 = scmp.eq.s32.totalorder %s22, 3
      %p145 = por %p143, %p144
      %p146 = scmp.ne.s32.totalorder %s137, %s138
      %p147 = scmp.eq.s32.totalorder %s22, 0
      %p148 = por %p146, %p147
      %p149 = scmp.ne.s32.totalorder %s137, %s138
      %p150 = scmp.eq.s32.totalorder %s23, 3
      %p151 = por %p149, %p150
      %p153 = scmp.ne.s32.totalorder %s138, %s152
      %p154 = scmp.eq.s32.totalorder %s23, 0
      %p155 = por %p153, %p154
      %s157 = sadd.s32 %s156, 1
      %p160 = scmp.eq.s32.totalorder %s17, 3
      %p161 = scmp.ne.s32.totalorder %s156, %s158
      %p162 = scmp.eq.s32.totalorder %s17, 0
      %p163 = por %p161, %p162
      %p164 = scmp.ne.s32.totalorder %s156, %s158
      %p165 = scmp.eq.s32.totalorder %s22, 3
      %p166 = por %p164, %p165
      %p167 = scmp.ne.s32.totalorder %s158, %s159
      %p168 = scmp.eq.s32.totalorder %s22, 0
      %p169 = por %p167, %p168
      %p170 = scmp.ne.s32.totalorder %s158, %s159
      %p171 = scmp.eq.s32.totalorder %s23, 3
      %p172 = por %p170, %p171
      %p174 = scmp.ne.s32.totalorder %s159, %s173
      %p175 = scmp.eq.s32.totalorder %s23, 0
      %p176 = por %p174, %p175
      %s178 = sadd.s32 %s177, 1
      %p181 = scmp.eq.s32.totalorder %s17, 3
      %p182 = scmp.ne.s32.totalorder %s177, %s179
      %p183 = scmp.eq.s32.totalorder %s17, 0
      %p184 = por %p182, %p183
      %p185 = scmp.ne.s32.totalorder %s177, %s179
      %p186 = scmp.eq.s32.totalorder %s22, 3
      %p187 = por %p185, %p186
      %p188 = scmp.ne.s32.totalorder %s179, %s180
      %p189 = scmp.eq.s32.totalorder %s22, 0
      %p190 = por %p188, %p189
      %p191 = scmp.ne.s32.totalorder %s179, %s180
      %p192 = scmp.eq.s32.totalorder %s23, 3
      %p193 = por %p191, %p192
      %p195 = scmp.ne.s32.totalorder %s180, %s194
      %p196 = scmp.eq.s32.totalorder %s23, 0
      %p197 = por %p195, %p196
      %s199 = sadd.s32 %s198, 1
      %p202 = scmp.eq.s32.totalorder %s17, 3
      %p203 = scmp.ne.s32.totalorder %s198, %s200
      %p204 = scmp.eq.s32.totalorder %s17, 0
      %p205 = por %p203, %p204
      %p206 = scmp.ne.s32.totalorder %s198, %s200
      %p207 = scmp.eq.s32.totalorder %s22, 3
      %p208 = por %p206, %p207
      %p209 = scmp.ne.s32.totalorder %s200, %s201
      %p210 = scmp.eq.s32.totalorder %s22, 0
      %p211 = por %p209, %p210
      %p212 = scmp.ne.s32.totalorder %s200, %s201
      %p213 = scmp.eq.s32.totalorder %s23, 3
      %p214 = por %p212, %p213
      %p216 = scmp.ne.s32.totalorder %s201, %s215
      %p217 = scmp.eq.s32.totalorder %s23, 0
      %p218 = por %p216, %p217
      %s219 = ssub.s32 %s24, %s36
      %s220 = ssub.s32 %s25, %s32
      %s221 = sor.u32 %s219, %s220
      %p222 = scmp.eq.s32.totalorder %s221, 0
      %s224 = sadd.s32 %s223, 1
      %s225 = scalar_select %p222, %s223, %s224
      %p228 = pneg %p222
      %p229 = scmp.eq.s32.totalorder %s17, 3
      %p230 = por %p228, %p229
      %p231 = scmp.ne.s32.totalorder %s223, %s226
      %p232 = scmp.eq.s32.totalorder %s17, 0
      %p233 = por %p231, %p232
      %p234 = scmp.ne.s32.totalorder %s223, %s226
      %p235 = scmp.eq.s32.totalorder %s22, 3
      %p236 = por %p234, %p235
      %p237 = scmp.ne.s32.totalorder %s226, %s227
      %p238 = scmp.eq.s32.totalorder %s22, 0
      %p239 = por %p237, %p238
      %p240 = scmp.ne.s32.totalorder %s226, %s227
      %p241 = scmp.eq.s32.totalorder %s23, 3
      %p242 = por %p240, %p241
      %p244 = scmp.ne.s32.totalorder %s227, %s243
      %p245 = scmp.eq.s32.totalorder %s23, 0
      %p246 = por %p244, %p245
      %p247 = scmp.le.s32.totalorder 1, %s17
      %p248 = scmp.lt.s32.totalorder %s17, 5
      %p249 = pnand %p247, %p248
      %p250 = pneg %p249
      // Predicated region
      $region9: #{tpu_custom_call.1} parent=5 // pred_check
        _
      $region10: #{tpu_custom_call.1} parent=5 // pred_check_branch
        %252 = sbr.rel (%p249) target = $region12
      $region11: #{tpu_custom_call.1} parent=5 // pred_region
        %s253 = ssub.s32 %s17, 1
        // Predicated region
        $region13: #{tpu_custom_call.1} parent=11 // pred_check
          %p254 = pneg %p106
        $region14: #{tpu_custom_call.1} parent=11 // pred_check_branch
          %256 = sbr.rel (%p254) target = $region16
        $region15: #{tpu_custom_call.1} parent=11 // pred_region
          _
        $region16: #{tpu_custom_call.1} parent=11 // pred_fallthru
          _
        // Predicated region
        $region17: #{tpu_custom_call.1} parent=11 // pred_check
          %p257 = pneg %p127
        $region18: #{tpu_custom_call.1} parent=11 // pred_check_branch
          %259 = sbr.rel (%p257) target = $region20
        $region19: #{tpu_custom_call.1} parent=11 // pred_region
          _
        $region20: #{tpu_custom_call.1} parent=11 // pred_fallthru
          _
        // Predicated region
        $region21: #{tpu_custom_call.1} parent=11 // pred_check
          %p260 = pneg %p148
        $region22: #{tpu_custom_call.1} parent=11 // pred_check_branch
          %262 = sbr.rel (%p260) target = $region24
        $region23: #{tpu_custom_call.1} parent=11 // pred_region
          _
        $region24: #{tpu_custom_call.1} parent=11 // pred_fallthru
          _
        // Predicated region
        $region25: #{tpu_custom_call.1} parent=11 // pred_check
          %p263 = pneg %p169
        $region26: #{tpu_custom_call.1} parent=11 // pred_check_branch
          %265 = sbr.rel (%p263) target = $region28
        $region27: #{tpu_custom_call.1} parent=11 // pred_region
          _
        $region28: #{tpu_custom_call.1} parent=11 // pred_fallthru
          _
        // Predicated region
        $region29: #{tpu_custom_call.1} parent=11 // pred_check
          %p266 = pneg %p190
        $region30: #{tpu_custom_call.1} parent=11 // pred_check_branch
          %268 = sbr.rel (%p266) target = $region32
        $region31: #{tpu_custom_call.1} parent=11 // pred_region
          _
        $region32: #{tpu_custom_call.1} parent=11 // pred_fallthru
          _
        // Predicated region
        $region33: #{tpu_custom_call.1} parent=11 // pred_check
          %p269 = pneg %p211
        $region34: #{tpu_custom_call.1} parent=11 // pred_check_branch
          %271 = sbr.rel (%p269) target = $region36
        $region35: #{tpu_custom_call.1} parent=11 // pred_region
          _
        $region36: #{tpu_custom_call.1} parent=11 // pred_fallthru
          _
      $region12: #{tpu_custom_call.1} parent=5 // pred_fallthru
        _
      %p272 = scmp.lt.s32.totalorder %s17, 4
      // Predicated region
      $region37: #{tpu_custom_call.1} parent=5 // pred_check
        %p273 = pneg %p272
      $region38: #{tpu_custom_call.1} parent=5 // pred_check_branch
        %275 = sbr.rel (%p273) target = $region40
      $region39: #{tpu_custom_call.1} parent=5 // pred_region
        // Predicated region
        $region41: #{tpu_custom_call.1} parent=39 // pred_check
          %p276 = pneg %p51
        $region42: #{tpu_custom_call.1} parent=39 // pred_check_branch
          %278 = sbr.rel (%p276) target = $region44
        $region43: #{tpu_custom_call.1} parent=39 // pred_region
          %s279 = smul.u32 8, %s25
          %p280 = scmp.lt.s32.totalorder %s24, 1
          %s281 = scalar_select %p280, %s24, 1
          %p282 = scmp.lt.s32.totalorder %s279, 15
          %s283 = scalar_select %p282, %s279, 15
          %s284 = smul.addr %s283, 2
          %s285 = smul.addr %s281, 32
          %s286 = sadd.s32 %s284, %s285
          %s287 = smul.addr %s286, 8
          %s288 = scalar_lea.vmem %s0, %s287
          %s289 = smul.u32 8, %s25
        $region44: #{tpu_custom_call.1} parent=39 // pred_fallthru
          _
        // Predicated region
        $region45: #{tpu_custom_call.1} parent=39 // pred_check
          %p290 = pneg %p79
        $region46: #{tpu_custom_call.1} parent=39 // pred_check_branch
          %292 = sbr.rel (%p290) target = $region48
        $region47: #{tpu_custom_call.1} parent=39 // pred_region
          %s293 = smul.u32 2, %s25
          %p294 = scmp.lt.s32.totalorder %s24, 1
          %s295 = scalar_select %p294, %s24, 1
          %p296 = scmp.lt.s32.totalorder %s293, 3
          %s297 = scalar_select %p296, %s293, 3
          %s298 = smul.addr %s297, 2
          %s299 = smul.addr %s295, 8
          %s300 = sadd.s32 %s298, %s299
          %s301 = smul.addr %s300, 8
          %s302 = scalar_lea.vmem %s1, %s301
          %s303 = smul.u32 2, %s25
        $region48: #{tpu_custom_call.1} parent=39 // pred_fallthru
          _
      $region40: #{tpu_custom_call.1} parent=5 // pred_fallthru
        _
      %p304 = scmp.le.s32.totalorder 1, %s17
      %p305 = scmp.lt.s32.totalorder %s17, 5
      %p306 = pnand %p304, %p305
      %p307 = pneg %p306
      // Predicated region
      $region49: #{tpu_custom_call.1} parent=5 // pred_check
        _
      $region50: #{tpu_custom_call.1} parent=5 // pred_check_branch
        %309 = sbr.rel (%p306) target = $region52
      $region51: #{tpu_custom_call.1} parent=5 // pred_region
        %s310 = ssub.s32 %s17, 1
        %s311 = smul.u32 8, %s27
        %p312 = scmp.lt.s32.totalorder %s26, 1
        %s313 = scalar_select %p312, %s26, 1
        %p314 = scmp.lt.s32.totalorder %s311, 15
        %s315 = scalar_select %p314, %s311, 15
        %s316 = smul.addr %s315, 2
        %s317 = smul.addr %s313, 32
        %s318 = sadd.s32 %s316, %s317
        %s319 = smul.addr %s318, 8
        %s320 = scalar_lea.vmem %s0, %s319
        %p321 = pneg %p57
        %p322 = pneg %p54
        %s323 = smul.u32 2, %s27
        %p324 = scmp.lt.s32.totalorder %s26, 1
        %s325 = scalar_select %p324, %s26, 1
        %p326 = scmp.lt.s32.totalorder %s323, 3
        %s327 = scalar_select %p326, %s323, 3
        %s328 = smul.addr %s327, 2
        %s329 = smul.addr %s325, 8
        %s330 = sadd.s32 %s328, %s329
        %s331 = smul.addr %s330, 8
        %s332 = scalar_lea.vmem %s1, %s331
        %p333 = pneg %p85
        %p334 = pneg %p82
        %p335 = pneg %p106
        %p336 = pneg %p103
        %p337 = pneg %p127
        %p338 = pneg %p124
        %p339 = pneg %p148
        %p340 = pneg %p145
        %p341 = pneg %p169
        %p342 = pneg %p166
        %p343 = pneg %p190
        %p344 = pneg %p187
        %p345 = pneg %p211
        %p346 = pneg %p208
        %p347 = pneg %p239
        %p348 = pneg %p236
        %s349 = sand.u32 %s226, 1
        %s350 = scalar_lea.sflag [#allocation4], %s349
        %s351 = sand.u32 %s226, 1
        %s352 = smul.addr %s351, 128
        %s353 = scalar_lea.vmem [#allocation3], %s352
        %s354 = smul.u32 8, %s27
        %p355 = scmp.lt.s32.totalorder %s26, 1
        %s356 = scalar_select %p355, %s26, 1
        %p357 = scmp.lt.s32.totalorder %s354, 15
        %s358 = scalar_select %p357, %s354, 15
        %s359 = smul.addr %s358, 2
        %s360 = smul.addr %s356, 32
        %s361 = sadd.s32 %s359, %s360
        %s362 = smul.addr %s361, 8
        %s363 = scalar_lea.vmem %s0, %s362
        %s364 = smul.u32 8, %s27
        %s365 = smul.u32 2, %s27
        %p366 = scmp.lt.s32.totalorder %s26, 1
        %s367 = scalar_select %p366, %s26, 1
        %p368 = scmp.lt.s32.totalorder %s365, 3
        %s369 = scalar_select %p368, %s365, 3
        %s370 = smul.addr %s369, 2
        %s371 = smul.addr %s367, 8
        %s372 = sadd.s32 %s370, %s371
        %s373 = smul.addr %s372, 8
        %s374 = scalar_lea.vmem %s1, %s373
        %s375 = smul.u32 2, %s27
        %s376 = smul.u32 8, %s27
        %v378 = vld [vmem:[%s363] sm:$0xff]
        %v379 = vld [vmem:[%s363 + $0x8] sm:$0xff]
        %v380 = vld [vmem:[%s363 + $0x10] sm:$0xff]
        %v381 = vld [vmem:[%s363 + $0x18] sm:$0xff]
        %v382 = vld [vmem:[%s363 + $0x20] sm:$0xff]
        %v383 = vld [vmem:[%s363 + $0x28] sm:$0xff]
        %v384 = vld [vmem:[%s363 + $0x30] sm:$0xff]
        %v385 = vld [vmem:[%s363 + $0x38] sm:$0xff]
        %v386 = vld [vmem:[%s363 + $0x40] sm:$0xff]
        %v387 = vld [vmem:[%s363 + $0x48] sm:$0xff]
        %v388 = vld [vmem:[%s363 + $0x50] sm:$0xff]
        %v389 = vld [vmem:[%s363 + $0x58] sm:$0xff]
        %v390 = vld [vmem:[%s363 + $0x60] sm:$0xff]
        %v391 = vld [vmem:[%s363 + $0x68] sm:$0xff]
        %v392 = vld [vmem:[%s363 + $0x70] sm:$0xff]
        %v393 = vld [vmem:[%s363 + $0x78] sm:$0xff]
        %v394 = vpack.c.bf16 %v379, %v378
        %v395 = vpack.c.bf16 %v381, %v380
        %v396 = vpack.c.bf16 %v383, %v382
        %v397 = vpack.c.bf16 %v385, %v384
        %v398 = vpack.c.bf16 %v387, %v386
        %v399 = vpack.c.bf16 %v389, %v388
        %v400 = vpack.c.bf16 %v391, %v390
        %v401 = vpack.c.bf16 %v393, %v392
        %v402 = vld [vmem:[%s2] sm:$0x3]
        %v403 = vld [vmem:[%s3] sm:$0x1]
        %v405 = vlaneseq
        %v406 = vshrl.u32 %v405, 7
        %v407 = vsub.s32 0, %v406
        %v408 = vrot.slane %v403, %v407
        %vm410 = vcmask 31744
        %v412 = vsel %vm410, %v394, 0
        %v415 = vsel %vm410, %v395, 0
        %v418 = vsel %vm410, %v396, 0
        %v421 = vsel %vm410, %v397, 0
        %v424 = vsel %vm410, %v398, 0
        %v427 = vsel %vm410, %v399, 0
        %v430 = vsel %vm410, %v400, 0
        %v433 = vsel %vm410, %v401, 0
        %vm435 = vcmask 1041408
        %v437 = vsel %vm435, %v402, 0
        %439 = vmatprep.subr.bf16.mxu0 0
        %440 = vmatpush1.bf16.msra.mxu0 0
        %441 = vmatprep.subr.bf16.mxu0 0
        %442 = vmatpush1.bf16.msra.mxu0 0
        %443 = vmatprep.subr.bf16.mxu0 0
        %444 = vmatpush1.bf16.msra.mxu0 0
        %445 = vmatprep.subr.bf16.mxu0 0
        %446 = vmatpush1.bf16.msra.mxu0 0
        %447 = vmatprep.subr.bf16.mxu0 0
        %448 = vmatpush1.bf16.msra.mxu0 0
        %449 = vmatprep.subr.bf16.mxu0 0
        %450 = vmatpush1.bf16.msra.mxu0 0
        %451 = vmatprep.subr.bf16.mxu0 0
        %452 = vmatpush1.bf16.msra.mxu0 0
        %453 = vmatprep.subr.bf16.mxu0 0
        %454 = vmatpush1.bf16.msra.mxu0 %v437
        %455 = vmatprep.subr.bf16.mxu0 0
        %456 = vmatpush2.bf16.msra.mxu0 0
        %457 = vmatprep.subr.bf16.mxu0 0
        %458 = vmatpush2.bf16.msra.mxu0 0
        %459 = vmatprep.subr.bf16.mxu0 0
        %460 = vmatpush2.bf16.msra.mxu0 0
        %461 = vmatprep.subr.bf16.mxu0 0
        %462 = vmatpush2.bf16.msra.mxu0 0
        %463 = vmatprep.subr.bf16.mxu0 0
        %464 = vmatpush2.bf16.msra.mxu0 0
        %465 = vmatprep.subr.bf16.mxu0 0
        %466 = vmatpush2.bf16.msra.mxu0 0
        %467 = vmatprep.subr.bf16.mxu0 0
        %468 = vmatpush2.bf16.msra.mxu0 0
        %469 = vmatprep.subr.bf16.mxu0 0
        %470 = vmatpush2.bf16.msra.mxu0 0
        %471 = vmatprep.mubr.bf16.mxu0 0
        %472 = vmatmul.mubr.bf16.gmra.mxu0 %v412
        %v473 = vpop.f32.mrf.mxu0
        %v474 = vadd.f32 %v408, %v473
        %v475 = vpop.f32.mrf.mxu0
        %v476 = vpop.f32.mrf.mxu0
        %v477 = vadd.f32 %v408, %v476
        %v478 = vpop.f32.mrf.mxu0
        %479 = vmatprep.mubr.bf16.mxu0 0
        %480 = vmatmul.mubr.bf16.gmra.mxu0 %v415
        %v481 = vpop.f32.mrf.mxu0
        %v482 = vadd.f32 %v408, %v481
        %v483 = vpop.f32.mrf.mxu0
        %v484 = vpop.f32.mrf.mxu0
        %v485 = vadd.f32 %v408, %v484
        %v486 = vpop.f32.mrf.mxu0
        %487 = vmatprep.mubr.bf16.mxu0 0
        %488 = vmatmul.mubr.bf16.gmra.mxu0 %v418
        %v489 = vpop.f32.mrf.mxu0
        %v490 = vadd.f32 %v408, %v489
        %v491 = vpop.f32.mrf.mxu0
        %v492 = vpop.f32.mrf.mxu0
        %v493 = vadd.f32 %v408, %v492
        %v494 = vpop.f32.mrf.mxu0
        %495 = vmatprep.mubr.bf16.mxu0 0
        %496 = vmatmul.mubr.bf16.gmra.mxu0 %v421
        %v497 = vpop.f32.mrf.mxu0
        %v498 = vadd.f32 %v408, %v497
        %v499 = vpop.f32.mrf.mxu0
        %v500 = vpop.f32.mrf.mxu0
        %v501 = vadd.f32 %v408, %v500
        %v502 = vpop.f32.mrf.mxu0
        %503 = vmatprep.mubr.bf16.mxu0 0
        %504 = vmatmul.mubr.bf16.gmra.mxu0 %v424
        %v505 = vpop.f32.mrf.mxu0
        %v506 = vadd.f32 %v408, %v505
        %v507 = vpop.f32.mrf.mxu0
        %v508 = vpop.f32.mrf.mxu0
        %v509 = vadd.f32 %v408, %v508
        %v510 = vpop.f32.mrf.mxu0
        %511 = vmatprep.mubr.bf16.mxu0 0
        %512 = vmatmul.mubr.bf16.gmra.mxu0 %v427
        %v513 = vpop.f32.mrf.mxu0
        %v514 = vadd.f32 %v408, %v513
        %v515 = vpop.f32.mrf.mxu0
        %v516 = vpop.f32.mrf.mxu0
        %v517 = vadd.f32 %v408, %v516
        %v518 = vpop.f32.mrf.mxu0
        %519 = vmatprep.mubr.bf16.mxu0 0
        %520 = vmatmul.mubr.bf16.gmra.mxu0 %v430
        %v521 = vpop.f32.mrf.mxu0
        %v522 = vadd.f32 %v408, %v521
        %v523 = vpop.f32.mrf.mxu0
        %v524 = vpop.f32.mrf.mxu0
        %v525 = vadd.f32 %v408, %v524
        %v526 = vpop.f32.mrf.mxu0
        %527 = vmatprep.mubr.bf16.mxu0 0
        %528 = vmatmul.mubr.bf16.gmra.mxu0 %v433
        %v529 = vpop.f32.mrf.mxu0
        %v530 = vadd.f32 %v408, %v529
        %v531 = vpop.f32.mrf.mxu0
        %v532 = vpop.f32.mrf.mxu0
        %v533 = vadd.f32 %v408, %v532
        %v534 = vpop.f32.mrf.mxu0
        %535 = vdwg.mxu0
        %v536 = vmax.f32 %v474, 0.0
        %v537 = vmax.f32 %v477, 0.0
        %v538 = vmax.f32 %v482, 0.0
        %v539 = vmax.f32 %v485, 0.0
        %v540 = vmax.f32 %v490, 0.0
        %v541 = vmax.f32 %v493, 0.0
        %v542 = vmax.f32 %v498, 0.0
        %v543 = vmax.f32 %v501, 0.0
        %v544 = vmax.f32 %v506, 0.0
        %v545 = vmax.f32 %v509, 0.0
        %v546 = vmax.f32 %v514, 0.0
        %v547 = vmax.f32 %v517, 0.0
        %v548 = vmax.f32 %v522, 0.0
        %v549 = vmax.f32 %v525, 0.0
        %v550 = vmax.f32 %v530, 0.0
        %v551 = vmax.f32 %v533, 0.0
        %v552 = vpack.c.bf16 %v537, %v536
        %v553 = vpack.c.bf16 %v539, %v538
        %v554 = vpack.c.bf16 %v541, %v540
        %v555 = vpack.c.bf16 %v543, %v542
        %v556 = vpack.c.bf16 %v545, %v544
        %v557 = vpack.c.bf16 %v547, %v546
        %v558 = vpack.c.bf16 %v549, %v548
        %v559 = vpack.c.bf16 %v551, %v550
        %v560 = vld [vmem:[%s374] sm:$0xff]
        %v561 = vld [vmem:[%s374 + $0x8] sm:$0xff]
        %v562 = vld [vmem:[%s374 + $0x10] sm:$0xff]
        %v563 = vld [vmem:[%s374 + $0x18] sm:$0xff]
        %v564 = vpack.c.bf16 %v561, %v560
        %v565 = vpack.c.bf16 %v563, %v562
        %v567 = vsel %vm410, %v564, 0
        %v570 = vsel %vm410, %v565, 0
        %572 = vmatprep.subr.bf16.mxu0 0
        %573 = vmatpush1.bf16.msra.mxu0 0
        %574 = vmatprep.subr.bf16.mxu0 0
        %575 = vmatpush1.bf16.msra.mxu0 0
        %576 = vmatprep.subr.bf16.mxu0 0
        %577 = vmatpush1.bf16.msra.mxu0 0
        %578 = vmatprep.subr.bf16.mxu0 0
        %579 = vmatpush1.bf16.msra.mxu0 0
        %580 = vmatprep.subr.bf16.mxu0 0
        %581 = vmatpush1.bf16.msra.mxu0 0
        %582 = vmatprep.subr.bf16.mxu0 0
        %583 = vmatpush1.bf16.msra.mxu0 0
        %584 = vmatprep.subr.bf16.mxu0 0
        %585 = vmatpush1.bf16.msra.mxu0 0
        %586 = vmatprep.subr.bf16.mxu0 0
        %587 = vmatpush1.bf16.msra.mxu0 %v437
        %588 = vmatprep.subr.bf16.mxu0 0
        %589 = vmatpush2.bf16.msra.mxu0 0
        %590 = vmatprep.subr.bf16.mxu0 0
        %591 = vmatpush2.bf16.msra.mxu0 0
        %592 = vmatprep.subr.bf16.mxu0 0
        %593 = vmatpush2.bf16.msra.mxu0 0
        %594 = vmatprep.subr.bf16.mxu0 0
        %595 = vmatpush2.bf16.msra.mxu0 0
        %596 = vmatprep.subr.bf16.mxu0 0
        %597 = vmatpush2.bf16.msra.mxu0 0
        %598 = vmatprep.subr.bf16.mxu0 0
        %599 = vmatpush2.bf16.msra.mxu0 0
        %600 = vmatprep.subr.bf16.mxu0 0
        %601 = vmatpush2.bf16.msra.mxu0 0
        %602 = vmatprep.subr.bf16.mxu0 0
        %603 = vmatpush2.bf16.msra.mxu0 0
        %604 = vmatprep.mubr.bf16.mxu0 0
        %605 = vmatmul.mubr.bf16.gmra.mxu0 %v567
        %v606 = vpop.f32.mrf.mxu0
        %v607 = vadd.f32 %v408, %v606
        %v608 = vpop.f32.mrf.mxu0
        %v609 = vpop.f32.mrf.mxu0
        %v610 = vadd.f32 %v408, %v609
        %v611 = vpop.f32.mrf.mxu0
        %612 = vmatprep.mubr.bf16.mxu0 0
        %613 = vmatmul.mubr.bf16.gmra.mxu0 %v570
        %v614 = vpop.f32.mrf.mxu0
        %v615 = vadd.f32 %v408, %v614
        %v616 = vpop.f32.mrf.mxu0
        %v617 = vpop.f32.mrf.mxu0
        %v618 = vadd.f32 %v408, %v617
        %v619 = vpop.f32.mrf.mxu0
        %620 = vdwg.mxu0
        %v621 = vmax.f32 %v607, 0.0
        %v622 = vmax.f32 %v610, 0.0
        %v623 = vmax.f32 %v615, 0.0
        %v624 = vmax.f32 %v618, 0.0
        %p625 = scmp.gt.s32.totalorder %s27, 0
        %s626 = scalar_select %p625, 1, 0
        %s627 = scvt.s32.f32 %s626
        %p628 = scmp.lt.s32.totalorder %s27, 1
        %s629 = scalar_select %p628, 1, 0
        %s630 = scvt.s32.f32 %s629
        %v631 = vstv %s627
        %v632 = vmul.f32 %v621, %v631
        %v633 = vmul.f32 %v622, %v631
        %v634 = vpack.c.bf16 %v633, %v632
        %v635 = vstv %s630
        %v636 = vmul.f32 %v623, %v635
        %v637 = vmul.f32 %v624, %v635
        %v638 = vpack.c.bf16 %v637, %v636
        %vm639 = vcmask 24576
        %vm640 = vsmask.f32 256
        %vm641 = vmand %vm639, %vm640
        %v642 = vld [vmem:[#allocation2] sm:$0x1]
        %v643 = vsel %vm641, 0, %v642
        %644 = vst [vmem:[#allocation2] sm:$0x1] %v643
        %v645 = vld [vmem:[#allocation2 + $0xc] sm:$0x1]
        %v646 = vsel %vm641, 0, %v645
        %647 = vst [vmem:[#allocation2 + $0xc] sm:$0x1] %v646
        %v648 = vld [vmem:[#allocation2 + $0x18] sm:$0x1]
        %v649 = vsel %vm641, 0, %v648
        %650 = vst [vmem:[#allocation2 + $0x18] sm:$0x1] %v649
        %v651 = vld [vmem:[#allocation2 + $0x24] sm:$0x1]
        %v652 = vsel %vm641, 0, %v651
        %653 = vst [vmem:[#allocation2 + $0x24] sm:$0x1] %v652
        %v654 = vld [vmem:[#allocation2 + $0x30] sm:$0x1]
        %v655 = vsel %vm641, 0, %v654
        %656 = vst [vmem:[#allocation2 + $0x30] sm:$0x1] %v655
        %v657 = vld [vmem:[#allocation2 + $0x3c] sm:$0x1]
        %v658 = vsel %vm641, 0, %v657
        %659 = vst [vmem:[#allocation2 + $0x3c] sm:$0x1] %v658
        %v660 = vld [vmem:[#allocation2 + $0x48] sm:$0x1]
        %v661 = vsel %vm641, 0, %v660
        %662 = vst [vmem:[#allocation2 + $0x48] sm:$0x1] %v661
        %v663 = vld [vmem:[#allocation2 + $0x54] sm:$0x1]
        %v664 = vsel %vm641, 0, %v663
        %665 = vst [vmem:[#allocation2 + $0x54] sm:$0x1] %v664
        %v666 = vld [vmem:[#allocation2 + $0x60] sm:$0x1]
        %v667 = vsel %vm641, 0, %v666
        %668 = vst [vmem:[#allocation2 + $0x60] sm:$0x1] %v667
        %v669 = vld [vmem:[#allocation2 + $0x6c] sm:$0x1]
        %v670 = vsel %vm641, 0, %v669
        %671 = vst [vmem:[#allocation2 + $0x6c] sm:$0x1] %v670
        %vm672 = vsmask.f32 7938
        %vm673 = vmand %vm639, %vm672
        %v674 = vld [vmem:[#allocation2 + $0x8] sm:$0x1]
        %v675 = vsel %vm673, 0, %v674
        %676 = vst [vmem:[#allocation2 + $0x8] sm:$0x1] %v675
        %v677 = vld [vmem:[#allocation2 + $0x14] sm:$0x1]
        %v678 = vsel %vm673, 0, %v677
        %679 = vst [vmem:[#allocation2 + $0x14] sm:$0x1] %v678
        %v680 = vld [vmem:[#allocation2 + $0x20] sm:$0x1]
        %v681 = vsel %vm673, 0, %v680
        %682 = vst [vmem:[#allocation2 + $0x20] sm:$0x1] %v681
        %v683 = vld [vmem:[#allocation2 + $0x2c] sm:$0x1]
        %v684 = vsel %vm673, 0, %v683
        %685 = vst [vmem:[#allocation2 + $0x2c] sm:$0x1] %v684
        %v686 = vld [vmem:[#allocation2 + $0x38] sm:$0x1]
        %v687 = vsel %vm673, 0, %v686
        %688 = vst [vmem:[#allocation2 + $0x38] sm:$0x1] %v687
        %v689 = vld [vmem:[#allocation2 + $0x44] sm:$0x1]
        %v690 = vsel %vm673, 0, %v689
        %691 = vst [vmem:[#allocation2 + $0x44] sm:$0x1] %v690
        %v692 = vld [vmem:[#allocation2 + $0x50] sm:$0x1]
        %v693 = vsel %vm673, 0, %v692
        %694 = vst [vmem:[#allocation2 + $0x50] sm:$0x1] %v693
        %v695 = vld [vmem:[#allocation2 + $0x5c] sm:$0x1]
        %v696 = vsel %vm673, 0, %v695
        %697 = vst [vmem:[#allocation2 + $0x5c] sm:$0x1] %v696
        %v698 = vld [vmem:[#allocation2 + $0x68] sm:$0x1]
        %v699 = vsel %vm673, 0, %v698
        %700 = vst [vmem:[#allocation2 + $0x68] sm:$0x1] %v699
        %v701 = vld [vmem:[#allocation2 + $0x74] sm:$0x1]
        %v702 = vsel %vm673, 0, %v701
        %703 = vst [vmem:[#allocation2 + $0x74] sm:$0x1] %v702
        %v705 = vunpack.c.l.b16 %v634
        %v706 = vunpack.c.h.b16 %v634
        %v707 = vpack.c.b16 %v705, %v705
        %v708 = vpack.c.b16 %v706, %v706
        %vm709 = vsmask.f32 4368
        %vm710 = vmor %vm640, %vm709
        %v712 = vshrl.u32 %v707, 16
        %v714 = vrot.slane %v712, 7
        %v715 = vshll.u32 %v707, 16
        %v717 = vor.u32 %v714, %v715
        %v718 = vrot.slane %v714, 4
        %v720 = vshrl.u32 %v708, 16
        %v722 = vrot.slane %v720, 7
        %v723 = vshll.u32 %v708, 16
        %v725 = vor.u32 %v722, %v723
        %v726 = vsel %vm710, %v718, %v725
        %v727 = vrot.slane %v722, 4
        %vm731 = vcmask 27648
        %vm732 = vmand %vm731, %vm672
        %v733 = vld [vmem:[#allocation2] sm:$0xf]
        %v734 = vsel %vm732, %v717, %v733
        %735 = vst [vmem:[#allocation2] sm:$0xf] %v734
        %vm736 = vcmask 27648
        %737 = vst.msk [vmem:[#allocation2 + $0x4] sm:$0xf] %vm736, %v726
        %v738 = vld [vmem:[#allocation2 + $0x8] sm:$0x1]
        %v739 = vsel %vm641, %v727, %v738
        %740 = vst [vmem:[#allocation2 + $0x8] sm:$0x1] %v739
        %v742 = vunpack.c.l.b16 %v638
        %v743 = vunpack.c.h.b16 %v638
        %v744 = vpack.c.b16 %v742, %v742
        %v745 = vpack.c.b16 %v743, %v743
        %v747 = vshrl.u32 %v744, 16
        %v749 = vrot.slane %v747, 7
        %v750 = vshll.u32 %v744, 16
        %v752 = vor.u32 %v749, %v750
        %v753 = vrot.slane %v749, 4
        %v755 = vshrl.u32 %v745, 16
        %v757 = vrot.slane %v755, 7
        %v758 = vshll.u32 %v745, 16
        %v760 = vor.u32 %v757, %v758
        %v761 = vsel %vm710, %v753, %v760
        %v762 = vrot.slane %v757, 4
        %s766 = scalar_lea.vmem [#allocation2], 108
        %v767 = vld [vmem:[%s766] sm:$0xf]
        %v768 = vsel %vm732, %v752, %v767
        %769 = vst [vmem:[%s766] sm:$0xf] %v768
        %770 = vst.msk [vmem:[%s766 + $0x4] sm:$0xf] %vm736, %v761
        %v771 = vld [vmem:[%s766 + $0x8] sm:$0x1]
        %v772 = vsel %vm641, %v762, %v771
        %773 = vst [vmem:[%s766 + $0x8] sm:$0x1] %v772
        %v782 = vunpack.c.l.b16 %v552
        %v783 = vunpack.c.h.b16 %v552
        %v784 = vunpack.c.l.b16 %v553
        %v785 = vunpack.c.h.b16 %v553
        %v786 = vunpack.c.l.b16 %v554
        %v787 = vunpack.c.h.b16 %v554
        %v788 = vunpack.c.l.b16 %v555
        %v789 = vunpack.c.h.b16 %v555
        %v790 = vunpack.c.l.b16 %v556
        %v791 = vunpack.c.h.b16 %v556
        %v792 = vunpack.c.l.b16 %v557
        %v793 = vunpack.c.h.b16 %v557
        %v794 = vunpack.c.l.b16 %v558
        %v795 = vunpack.c.h.b16 %v558
        %v796 = vunpack.c.l.b16 %v559
        %v797 = vunpack.c.h.b16 %v559
        %v798 = vpack.c.b16 %v782, %v782
        %v799 = vpack.c.b16 %v783, %v783
        %v800 = vpack.c.b16 %v784, %v784
        %v801 = vpack.c.b16 %v785, %v785
        %v802 = vpack.c.b16 %v786, %v786
        %v803 = vpack.c.b16 %v787, %v787
        %v804 = vpack.c.b16 %v788, %v788
        %v805 = vpack.c.b16 %v789, %v789
        %v806 = vpack.c.b16 %v790, %v790
        %v807 = vpack.c.b16 %v791, %v791
        %v808 = vpack.c.b16 %v792, %v792
        %v809 = vpack.c.b16 %v793, %v793
        %v810 = vpack.c.b16 %v794, %v794
        %v811 = vpack.c.b16 %v795, %v795
        %v812 = vpack.c.b16 %v796, %v796
        %v813 = vpack.c.b16 %v797, %v797
        %v815 = vshrl.u32 %v798, 16
        %v817 = vrot.slane %v815, 7
        %v818 = vshll.u32 %v798, 16
        %v820 = vor.u32 %v817, %v818
        %v821 = vrot.slane %v817, 4
        %v823 = vshrl.u32 %v799, 16
        %v825 = vrot.slane %v823, 7
        %v826 = vshll.u32 %v799, 16
        %v828 = vor.u32 %v825, %v826
        %v829 = vsel %vm710, %v821, %v828
        %v830 = vrot.slane %v825, 4
        %v832 = vshrl.u32 %v800, 16
        %v834 = vrot.slane %v832, 7
        %v835 = vshll.u32 %v800, 16
        %v837 = vor.u32 %v834, %v835
        %v838 = vrot.slane %v834, 4
        %v840 = vshrl.u32 %v801, 16
        %v842 = vrot.slane %v840, 7
        %v843 = vshll.u32 %v801, 16
        %v845 = vor.u32 %v842, %v843
        %v846 = vsel %vm710, %v838, %v845
        %v847 = vrot.slane %v842, 4
        %v849 = vshrl.u32 %v802, 16
        %v851 = vrot.slane %v849, 7
        %v852 = vshll.u32 %v802, 16
        %v854 = vor.u32 %v851, %v852
        %v855 = vrot.slane %v851, 4
        %v857 = vshrl.u32 %v803, 16
        %v859 = vrot.slane %v857, 7
        %v860 = vshll.u32 %v803, 16
        %v862 = vor.u32 %v859, %v860
        %v863 = vsel %vm710, %v855, %v862
        %v864 = vrot.slane %v859, 4
        %v866 = vshrl.u32 %v804, 16
        %v868 = vrot.slane %v866, 7
        %v869 = vshll.u32 %v804, 16
        %v871 = vor.u32 %v868, %v869
        %v872 = vrot.slane %v868, 4
        %v874 = vshrl.u32 %v805, 16
        %v876 = vrot.slane %v874, 7
        %v877 = vshll.u32 %v805, 16
        %v879 = vor.u32 %v876, %v877
        %v880 = vsel %vm710, %v872, %v879
        %v881 = vrot.slane %v876, 4
        %v883 = vshrl.u32 %v806, 16
        %v885 = vrot.slane %v883, 7
        %v886 = vshll.u32 %v806, 16
        %v888 = vor.u32 %v885, %v886
        %v889 = vrot.slane %v885, 4
        %v891 = vshrl.u32 %v807, 16
        %v893 = vrot.slane %v891, 7
        %v894 = vshll.u32 %v807, 16
        %v896 = vor.u32 %v893, %v894
        %v897 = vsel %vm710, %v889, %v896
        %v898 = vrot.slane %v893, 4
        %v900 = vshrl.u32 %v808, 16
        %v902 = vrot.slane %v900, 7
        %v903 = vshll.u32 %v808, 16
        %v905 = vor.u32 %v902, %v903
        %v906 = vrot.slane %v902, 4
        %v908 = vshrl.u32 %v809, 16
        %v910 = vrot.slane %v908, 7
        %v911 = vshll.u32 %v809, 16
        %v913 = vor.u32 %v910, %v911
        %v914 = vsel %vm710, %v906, %v913
        %v915 = vrot.slane %v910, 4
        %v917 = vshrl.u32 %v810, 16
        %v919 = vrot.slane %v917, 7
        %v920 = vshll.u32 %v810, 16
        %v922 = vor.u32 %v919, %v920
        %v923 = vrot.slane %v919, 4
        %v925 = vshrl.u32 %v811, 16
        %v927 = vrot.slane %v925, 7
        %v928 = vshll.u32 %v811, 16
        %v930 = vor.u32 %v927, %v928
        %v931 = vsel %vm710, %v923, %v930
        %v932 = vrot.slane %v927, 4
        %v934 = vshrl.u32 %v812, 16
        %v936 = vrot.slane %v934, 7
        %v937 = vshll.u32 %v812, 16
        %v939 = vor.u32 %v936, %v937
        %v940 = vrot.slane %v936, 4
        %v942 = vshrl.u32 %v813, 16
        %v944 = vrot.slane %v942, 7
        %v945 = vshll.u32 %v813, 16
        %v947 = vor.u32 %v944, %v945
        %v948 = vsel %vm710, %v940, %v947
        %v949 = vrot.slane %v944, 4
        %s974 = scalar_lea.vmem [#allocation2], 12
        %v975 = vld [vmem:[%s974] sm:$0xf]
        %v976 = vsel %vm732, %v820, %v975
        %977 = vst [vmem:[%s974] sm:$0xf] %v976
        %978 = vst.msk [vmem:[%s974 + $0x4] sm:$0xf] %vm736, %v829
        %v979 = vld [vmem:[%s974 + $0x8] sm:$0x1]
        %v980 = vsel %vm641, %v830, %v979
        %981 = vst [vmem:[%s974 + $0x8] sm:$0x1] %v980
        %v982 = vld [vmem:[%s974 + $0xc] sm:$0xf]
        %v983 = vsel %vm732, %v837, %v982
        %984 = vst [vmem:[%s974 + $0xc] sm:$0xf] %v983
        %985 = vst.msk [vmem:[%s974 + $0x10] sm:$0xf] %vm736, %v846
        %v986 = vld [vmem:[%s974 + $0x14] sm:$0x1]
        %v987 = vsel %vm641, %v847, %v986
        %988 = vst [vmem:[%s974 + $0x14] sm:$0x1] %v987
        %v989 = vld [vmem:[%s974 + $0x18] sm:$0xf]
        %v990 = vsel %vm732, %v854, %v989
        %991 = vst [vmem:[%s974 + $0x18] sm:$0xf] %v990
        %992 = vst.msk [vmem:[%s974 + $0x1c] sm:$0xf] %vm736, %v863
        %v993 = vld [vmem:[%s974 + $0x20] sm:$0x1]
        %v994 = vsel %vm641, %v864, %v993
        %995 = vst [vmem:[%s974 + $0x20] sm:$0x1] %v994
        %v996 = vld [vmem:[%s974 + $0x24] sm:$0xf]
        %v997 = vsel %vm732, %v871, %v996
        %998 = vst [vmem:[%s974 + $0x24] sm:$0xf] %v997
        %999 = vst.msk [vmem:[%s974 + $0x28] sm:$0xf] %vm736, %v880
        %v1000 = vld [vmem:[%s974 + $0x2c] sm:$0x1]
        %v1001 = vsel %vm641, %v881, %v1000
        %1002 = vst [vmem:[%s974 + $0x2c] sm:$0x1] %v1001
        %v1003 = vld [vmem:[%s974 + $0x30] sm:$0xf]
        %v1004 = vsel %vm732, %v888, %v1003
        %1005 = vst [vmem:[%s974 + $0x30] sm:$0xf] %v1004
        %1006 = vst.msk [vmem:[%s974 + $0x34] sm:$0xf] %vm736, %v897
        %v1007 = vld [vmem:[%s974 + $0x38] sm:$0x1]
        %v1008 = vsel %vm641, %v898, %v1007
        %1009 = vst [vmem:[%s974 + $0x38] sm:$0x1] %v1008
        %v1010 = vld [vmem:[%s974 + $0x3c] sm:$0xf]
        %v1011 = vsel %vm732, %v905, %v1010
        %1012 = vst [vmem:[%s974 + $0x3c] sm:$0xf] %v1011
        %1013 = vst.msk [vmem:[%s974 + $0x40] sm:$0xf] %vm736, %v914
        %v1014 = vld [vmem:[%s974 + $0x44] sm:$0x1]
        %v1015 = vsel %vm641, %v915, %v1014
        %1016 = vst [vmem:[%s974 + $0x44] sm:$0x1] %v1015
        %v1017 = vld [vmem:[%s974 + $0x48] sm:$0xf]
        %v1018 = vsel %vm732, %v922, %v1017
        %1019 = vst [vmem:[%s974 + $0x48] sm:$0xf] %v1018
        %1020 = vst.msk [vmem:[%s974 + $0x4c] sm:$0xf] %vm736, %v931
        %v1021 = vld [vmem:[%s974 + $0x50] sm:$0x1]
        %v1022 = vsel %vm641, %v932, %v1021
        %1023 = vst [vmem:[%s974 + $0x50] sm:$0x1] %v1022
        %v1024 = vld [vmem:[%s974 + $0x54] sm:$0xf]
        %v1025 = vsel %vm732, %v939, %v1024
        %1026 = vst [vmem:[%s974 + $0x54] sm:$0xf] %v1025
        %1027 = vst.msk [vmem:[%s974 + $0x58] sm:$0xf] %vm736, %v948
        %v1028 = vld [vmem:[%s974 + $0x5c] sm:$0x1]
        %v1029 = vsel %vm641, %v949, %v1028
        %1030 = vst [vmem:[%s974 + $0x5c] sm:$0x1] %v1029
        %v1031 = vld [vmem:[#allocation2] sm:$0xf]
        %v1032 = vld [vmem:[#allocation2 + $0x4] sm:$0xf]
        %v1033 = vld [vmem:[#allocation2 + $0xc] sm:$0xf]
        %v1034 = vld [vmem:[#allocation2 + $0x10] sm:$0xf]
        %v1035 = vld [vmem:[#allocation2 + $0x18] sm:$0xf]
        %v1036 = vld [vmem:[#allocation2 + $0x1c] sm:$0xf]
        %v1037 = vld [vmem:[#allocation2 + $0x24] sm:$0xf]
        %v1038 = vld [vmem:[#allocation2 + $0x28] sm:$0xf]
        %v1039 = vld [vmem:[#allocation2 + $0x30] sm:$0xf]
        %v1040 = vld [vmem:[#allocation2 + $0x34] sm:$0xf]
        %v1041 = vld [vmem:[#allocation2 + $0x3c] sm:$0xf]
        %v1042 = vld [vmem:[#allocation2 + $0x40] sm:$0xf]
        %v1043 = vld [vmem:[#allocation2 + $0x48] sm:$0xf]
        %v1044 = vld [vmem:[#allocation2 + $0x4c] sm:$0xf]
        %v1045 = vld [vmem:[#allocation2 + $0x54] sm:$0xf]
        %v1046 = vld [vmem:[#allocation2 + $0x58] sm:$0xf]
        %v1047 = vld [vmem:[%s6] sm:$0x3]
        %v1048 = vld [vmem:[#allocation2 + $0x8] sm:$0x1]
        %v1049 = vld [vmem:[#allocation2 + $0x14] sm:$0x1]
        %v1050 = vld [vmem:[#allocation2 + $0x20] sm:$0x1]
        %v1051 = vld [vmem:[#allocation2 + $0x2c] sm:$0x1]
        %v1052 = vld [vmem:[#allocation2 + $0x38] sm:$0x1]
        %v1053 = vld [vmem:[#allocation2 + $0x44] sm:$0x1]
        %v1054 = vld [vmem:[#allocation2 + $0x50] sm:$0x1]
        %v1055 = vld [vmem:[#allocation2 + $0x5c] sm:$0x1]
        %vm1056 = vsmask.f32 3328
        %vm1057 = vsmask.f32 7440
        %vm1058 = vmor %vm1056, %vm1057
        %v1060 = vshrl.u32 %v1031, 16
        %v1062 = vrot.slane %v1060, 4
        %v1063 = vshll.u32 %v1031, 16
        %v1065 = vrot.slane %v1063, 5
        %v1066 = vor.u32 %v1062, %v1065
        %v1067 = vrot.slane %v1066, 4
        %v1069 = vshll.u32 %v1032, 16
        %v1071 = vrot.slane %v1069, 5
        %v1072 = vsel %vm1058, %v1067, %v1071
        %v1073 = vshrl.u32 %v1032, 16
        %v1075 = vrot.slane %v1073, 4
        %v1076 = vor.u32 %v1075, %v1071
        %v1077 = vrot.slane %v1076, 4
        %v1079 = vshll.u32 %v1048, 16
        %v1081 = vrot.slane %v1079, 5
        %v1082 = vsel %vm1058, %v1077, %v1081
        %v1084 = vshrl.u32 %v1033, 16
        %v1086 = vrot.slane %v1084, 4
        %v1087 = vshll.u32 %v1033, 16
        %v1089 = vrot.slane %v1087, 5
        %v1090 = vor.u32 %v1086, %v1089
        %v1091 = vrot.slane %v1090, 4
        %v1093 = vshll.u32 %v1034, 16
        %v1095 = vrot.slane %v1093, 5
        %v1096 = vsel %vm1058, %v1091, %v1095
        %v1097 = vshrl.u32 %v1034, 16
        %v1099 = vrot.slane %v1097, 4
        %v1100 = vor.u32 %v1099, %v1095
        %v1101 = vrot.slane %v1100, 4
        %v1103 = vshll.u32 %v1049, 16
        %v1105 = vrot.slane %v1103, 5
        %v1106 = vsel %vm1058, %v1101, %v1105
        %v1108 = vshrl.u32 %v1035, 16
        %v1110 = vrot.slane %v1108, 4
        %v1111 = vshll.u32 %v1035, 16
        %v1113 = vrot.slane %v1111, 5
        %v1114 = vor.u32 %v1110, %v1113
        %v1115 = vrot.slane %v1114, 4
        %v1117 = vshll.u32 %v1036, 16
        %v1119 = vrot.slane %v1117, 5
        %v1120 = vsel %vm1058, %v1115, %v1119
        %v1121 = vshrl.u32 %v1036, 16
        %v1123 = vrot.slane %v1121, 4
        %v1124 = vor.u32 %v1123, %v1119
        %v1125 = vrot.slane %v1124, 4
        %v1127 = vshll.u32 %v1050, 16
        %v1129 = vrot.slane %v1127, 5
        %v1130 = vsel %vm1058, %v1125, %v1129
        %v1132 = vshrl.u32 %v1037, 16
        %v1134 = vrot.slane %v1132, 4
        %v1135 = vshll.u32 %v1037, 16
        %v1137 = vrot.slane %v1135, 5
        %v1138 = vor.u32 %v1134, %v1137
        %v1139 = vrot.slane %v1138, 4
        %v1141 = vshll.u32 %v1038, 16
        %v1143 = vrot.slane %v1141, 5
        %v1144 = vsel %vm1058, %v1139, %v1143
        %v1145 = vshrl.u32 %v1038, 16
        %v1147 = vrot.slane %v1145, 4
        %v1148 = vor.u32 %v1147, %v1143
        %v1149 = vrot.slane %v1148, 4
        %v1151 = vshll.u32 %v1051, 16
        %v1153 = vrot.slane %v1151, 5
        %v1154 = vsel %vm1058, %v1149, %v1153
        %v1156 = vshrl.u32 %v1039, 16
        %v1158 = vrot.slane %v1156, 4
        %v1159 = vshll.u32 %v1039, 16
        %v1161 = vrot.slane %v1159, 5
        %v1162 = vor.u32 %v1158, %v1161
        %v1163 = vrot.slane %v1162, 4
        %v1165 = vshll.u32 %v1040, 16
        %v1167 = vrot.slane %v1165, 5
        %v1168 = vsel %vm1058, %v1163, %v1167
        %v1169 = vshrl.u32 %v1040, 16
        %v1171 = vrot.slane %v1169, 4
        %v1172 = vor.u32 %v1171, %v1167
        %v1173 = vrot.slane %v1172, 4
        %v1175 = vshll.u32 %v1052, 16
        %v1177 = vrot.slane %v1175, 5
        %v1178 = vsel %vm1058, %v1173, %v1177
        %v1180 = vshrl.u32 %v1041, 16
        %v1182 = vrot.slane %v1180, 4
        %v1183 = vshll.u32 %v1041, 16
        %v1185 = vrot.slane %v1183, 5
        %v1186 = vor.u32 %v1182, %v1185
        %v1187 = vrot.slane %v1186, 4
        %v1189 = vshll.u32 %v1042, 16
        %v1191 = vrot.slane %v1189, 5
        %v1192 = vsel %vm1058, %v1187, %v1191
        %v1193 = vshrl.u32 %v1042, 16
        %v1195 = vrot.slane %v1193, 4
        %v1196 = vor.u32 %v1195, %v1191
        %v1197 = vrot.slane %v1196, 4
        %v1199 = vshll.u32 %v1053, 16
        %v1201 = vrot.slane %v1199, 5
        %v1202 = vsel %vm1058, %v1197, %v1201
        %v1204 = vshrl.u32 %v1043, 16
        %v1206 = vrot.slane %v1204, 4
        %v1207 = vshll.u32 %v1043, 16
        %v1209 = vrot.slane %v1207, 5
        %v1210 = vor.u32 %v1206, %v1209
        %v1211 = vrot.slane %v1210, 4
        %v1213 = vshll.u32 %v1044, 16
        %v1215 = vrot.slane %v1213, 5
        %v1216 = vsel %vm1058, %v1211, %v1215
        %v1217 = vshrl.u32 %v1044, 16
        %v1219 = vrot.slane %v1217, 4
        %v1220 = vor.u32 %v1219, %v1215
        %v1221 = vrot.slane %v1220, 4
        %v1223 = vshll.u32 %v1054, 16
        %v1225 = vrot.slane %v1223, 5
        %v1226 = vsel %vm1058, %v1221, %v1225
        %v1228 = vshrl.u32 %v1045, 16
        %v1230 = vrot.slane %v1228, 4
        %v1231 = vshll.u32 %v1045, 16
        %v1233 = vrot.slane %v1231, 5
        %v1234 = vor.u32 %v1230, %v1233
        %v1235 = vrot.slane %v1234, 4
        %v1237 = vshll.u32 %v1046, 16
        %v1239 = vrot.slane %v1237, 5
        %v1240 = vsel %vm1058, %v1235, %v1239
        %v1241 = vshrl.u32 %v1046, 16
        %v1243 = vrot.slane %v1241, 4
        %v1244 = vor.u32 %v1243, %v1239
        %v1245 = vrot.slane %v1244, 4
        %v1247 = vshll.u32 %v1055, 16
        %v1249 = vrot.slane %v1247, 5
        %v1250 = vsel %vm1058, %v1245, %v1249
        %s1251 = scalar_lea.vmem %s6, 2
        %v1252 = vld [vmem:[%s1251] sm:$0x3]
        %v1253 = vunpack.c.l.b16 %v1072
        %v1254 = vunpack.c.l.b16 %v1082
        %v1255 = vunpack.c.l.b16 %v1096
        %v1256 = vunpack.c.l.b16 %v1106
        %v1257 = vunpack.c.l.b16 %v1120
        %v1258 = vunpack.c.l.b16 %v1130
        %v1259 = vunpack.c.l.b16 %v1144
        %v1260 = vunpack.c.l.b16 %v1154
        %v1261 = vunpack.c.l.b16 %v1168
        %v1262 = vunpack.c.l.b16 %v1178
        %v1263 = vunpack.c.l.b16 %v1192
        %v1264 = vunpack.c.l.b16 %v1202
        %v1265 = vunpack.c.l.b16 %v1216
        %v1266 = vunpack.c.l.b16 %v1226
        %v1267 = vunpack.c.l.b16 %v1240
        %v1268 = vunpack.c.l.b16 %v1250
        %v1269 = vpack.c.b16 %v1254, %v1253
        %v1270 = vpack.c.b16 %v1256, %v1255
        %v1271 = vpack.c.b16 %v1258, %v1257
        %v1272 = vpack.c.b16 %v1260, %v1259
        %v1273 = vpack.c.b16 %v1262, %v1261
        %v1274 = vpack.c.b16 %v1264, %v1263
        %v1275 = vpack.c.b16 %v1266, %v1265
        %v1276 = vpack.c.b16 %v1268, %v1267
        %v1278 = vsel %vm410, %v1269, 0
        %v1281 = vsel %vm410, %v1270, 0
        %v1284 = vsel %vm410, %v1271, 0
        %v1287 = vsel %vm410, %v1272, 0
        %v1290 = vsel %vm410, %v1273, 0
        %v1293 = vsel %vm410, %v1274, 0
        %v1296 = vsel %vm410, %v1275, 0
        %v1299 = vsel %vm410, %v1276, 0
        %v1302 = vsel %vm435, %v1252, 0
        %1304 = vmatprep.subr.bf16.mxu0 0
        %1305 = vmatpush1.bf16.msra.mxu0 0
        %1306 = vmatprep.subr.bf16.mxu0 0
        %1307 = vmatpush1.bf16.msra.mxu0 0
        %1308 = vmatprep.subr.bf16.mxu0 0
        %1309 = vmatpush1.bf16.msra.mxu0 0
        %1310 = vmatprep.subr.bf16.mxu0 0
        %1311 = vmatpush1.bf16.msra.mxu0 0
        %1312 = vmatprep.subr.bf16.mxu0 0
        %1313 = vmatpush1.bf16.msra.mxu0 0
        %1314 = vmatprep.subr.bf16.mxu0 0
        %1315 = vmatpush1.bf16.msra.mxu0 0
        %1316 = vmatprep.subr.bf16.mxu0 0
        %1317 = vmatpush1.bf16.msra.mxu0 0
        %1318 = vmatprep.subr.bf16.mxu0 0
        %1319 = vmatpush1.bf16.msra.mxu0 %v1302
        %1320 = vmatprep.subr.bf16.mxu0 0
        %1321 = vmatpush2.bf16.msra.mxu0 0
        %1322 = vmatprep.subr.bf16.mxu0 0
        %1323 = vmatpush2.bf16.msra.mxu0 0
        %1324 = vmatprep.subr.bf16.mxu0 0
        %1325 = vmatpush2.bf16.msra.mxu0 0
        %1326 = vmatprep.subr.bf16.mxu0 0
        %1327 = vmatpush2.bf16.msra.mxu0 0
        %1328 = vmatprep.subr.bf16.mxu0 0
        %1329 = vmatpush2.bf16.msra.mxu0 0
        %1330 = vmatprep.subr.bf16.mxu0 0
        %1331 = vmatpush2.bf16.msra.mxu0 0
        %1332 = vmatprep.subr.bf16.mxu0 0
        %1333 = vmatpush2.bf16.msra.mxu0 0
        %1334 = vmatprep.subr.bf16.mxu0 0
        %1335 = vmatpush2.bf16.msra.mxu0 0
        %1336 = vmatprep.mubr.bf16.mxu0 0
        %1337 = vmatmul.mubr.bf16.gmra.mxu0 %v1278
        %v1338 = vpop.f32.mrf.mxu0
        %v1339 = vadd.f32 0.0, %v1338
        %v1340 = vpop.f32.mrf.mxu0
        %v1341 = vpop.f32.mrf.mxu0
        %v1342 = vadd.f32 0.0, %v1341
        %v1343 = vpop.f32.mrf.mxu0
        %1344 = vmatprep.mubr.bf16.mxu0 0
        %1345 = vmatmul.mubr.bf16.gmra.mxu0 %v1281
        %v1346 = vpop.f32.mrf.mxu0
        %v1347 = vadd.f32 0.0, %v1346
        %v1348 = vpop.f32.mrf.mxu0
        %v1349 = vpop.f32.mrf.mxu0
        %v1350 = vadd.f32 0.0, %v1349
        %v1351 = vpop.f32.mrf.mxu0
        %1352 = vmatprep.mubr.bf16.mxu0 0
        %1353 = vmatmul.mubr.bf16.gmra.mxu0 %v1284
        %v1354 = vpop.f32.mrf.mxu0
        %v1355 = vadd.f32 0.0, %v1354
        %v1356 = vpop.f32.mrf.mxu0
        %v1357 = vpop.f32.mrf.mxu0
        %v1358 = vadd.f32 0.0, %v1357
        %v1359 = vpop.f32.mrf.mxu0
        %1360 = vmatprep.mubr.bf16.mxu0 0
        %1361 = vmatmul.mubr.bf16.gmra.mxu0 %v1287
        %v1362 = vpop.f32.mrf.mxu0
        %v1363 = vadd.f32 0.0, %v1362
        %v1364 = vpop.f32.mrf.mxu0
        %v1365 = vpop.f32.mrf.mxu0
        %v1366 = vadd.f32 0.0, %v1365
        %v1367 = vpop.f32.mrf.mxu0
        %1368 = vmatprep.mubr.bf16.mxu0 0
        %1369 = vmatmul.mubr.bf16.gmra.mxu0 %v1290
        %v1370 = vpop.f32.mrf.mxu0
        %v1371 = vadd.f32 0.0, %v1370
        %v1372 = vpop.f32.mrf.mxu0
        %v1373 = vpop.f32.mrf.mxu0
        %v1374 = vadd.f32 0.0, %v1373
        %v1375 = vpop.f32.mrf.mxu0
        %1376 = vmatprep.mubr.bf16.mxu0 0
        %1377 = vmatmul.mubr.bf16.gmra.mxu0 %v1293
        %v1378 = vpop.f32.mrf.mxu0
        %v1379 = vadd.f32 0.0, %v1378
        %v1380 = vpop.f32.mrf.mxu0
        %v1381 = vpop.f32.mrf.mxu0
        %v1382 = vadd.f32 0.0, %v1381
        %v1383 = vpop.f32.mrf.mxu0
        %1384 = vmatprep.mubr.bf16.mxu0 0
        %1385 = vmatmul.mubr.bf16.gmra.mxu0 %v1296
        %v1386 = vpop.f32.mrf.mxu0
        %v1387 = vadd.f32 0.0, %v1386
        %v1388 = vpop.f32.mrf.mxu0
        %v1389 = vpop.f32.mrf.mxu0
        %v1390 = vadd.f32 0.0, %v1389
        %v1391 = vpop.f32.mrf.mxu0
        %1392 = vmatprep.mubr.bf16.mxu0 0
        %1393 = vmatmul.mubr.bf16.gmra.mxu0 %v1299
        %v1394 = vpop.f32.mrf.mxu0
        %v1395 = vadd.f32 0.0, %v1394
        %v1396 = vpop.f32.mrf.mxu0
        %v1397 = vpop.f32.mrf.mxu0
        %v1398 = vadd.f32 0.0, %v1397
        %v1399 = vpop.f32.mrf.mxu0
        %1400 = vdwg.mxu0
        %v1417 = vunpack.c.l.b16 %v1031
        %v1418 = vunpack.c.l.b16 %v1032
        %v1419 = vunpack.c.l.b16 %v1033
        %v1420 = vunpack.c.l.b16 %v1034
        %v1421 = vunpack.c.l.b16 %v1035
        %v1422 = vunpack.c.l.b16 %v1036
        %v1423 = vunpack.c.l.b16 %v1037
        %v1424 = vunpack.c.l.b16 %v1038
        %v1425 = vunpack.c.l.b16 %v1039
        %v1426 = vunpack.c.l.b16 %v1040
        %v1427 = vunpack.c.l.b16 %v1041
        %v1428 = vunpack.c.l.b16 %v1042
        %v1429 = vunpack.c.l.b16 %v1043
        %v1430 = vunpack.c.l.b16 %v1044
        %v1431 = vunpack.c.l.b16 %v1045
        %v1432 = vunpack.c.l.b16 %v1046
        %v1433 = vpack.c.b16 %v1418, %v1417
        %v1434 = vpack.c.b16 %v1420, %v1419
        %v1435 = vpack.c.b16 %v1422, %v1421
        %v1436 = vpack.c.b16 %v1424, %v1423
        %v1437 = vpack.c.b16 %v1426, %v1425
        %v1438 = vpack.c.b16 %v1428, %v1427
        %v1439 = vpack.c.b16 %v1430, %v1429
        %v1440 = vpack.c.b16 %v1432, %v1431
        %v1442 = vsel %vm410, %v1433, 0
        %v1445 = vsel %vm410, %v1434, 0
        %v1448 = vsel %vm410, %v1435, 0
        %v1451 = vsel %vm410, %v1436, 0
        %v1454 = vsel %vm410, %v1437, 0
        %v1457 = vsel %vm410, %v1438, 0
        %v1460 = vsel %vm410, %v1439, 0
        %v1463 = vsel %vm410, %v1440, 0
        %v1466 = vsel %vm435, %v1047, 0
        %1468 = vmatprep.subr.bf16.mxu0 0
        %1469 = vmatpush1.bf16.msra.mxu0 0
        %1470 = vmatprep.subr.bf16.mxu0 0
        %1471 = vmatpush1.bf16.msra.mxu0 0
        %1472 = vmatprep.subr.bf16.mxu0 0
        %1473 = vmatpush1.bf16.msra.mxu0 0
        %1474 = vmatprep.subr.bf16.mxu0 0
        %1475 = vmatpush1.bf16.msra.mxu0 0
        %1476 = vmatprep.subr.bf16.mxu0 0
        %1477 = vmatpush1.bf16.msra.mxu0 0
        %1478 = vmatprep.subr.bf16.mxu0 0
        %1479 = vmatpush1.bf16.msra.mxu0 0
        %1480 = vmatprep.subr.bf16.mxu0 0
        %1481 = vmatpush1.bf16.msra.mxu0 0
        %1482 = vmatprep.subr.bf16.mxu0 0
        %1483 = vmatpush1.bf16.msra.mxu0 %v1466
        %1484 = vmatprep.subr.bf16.mxu0 0
        %1485 = vmatpush2.bf16.msra.mxu0 0
        %1486 = vmatprep.subr.bf16.mxu0 0
        %1487 = vmatpush2.bf16.msra.mxu0 0
        %1488 = vmatprep.subr.bf16.mxu0 0
        %1489 = vmatpush2.bf16.msra.mxu0 0
        %1490 = vmatprep.subr.bf16.mxu0 0
        %1491 = vmatpush2.bf16.msra.mxu0 0
        %1492 = vmatprep.subr.bf16.mxu0 0
        %1493 = vmatpush2.bf16.msra.mxu0 0
        %1494 = vmatprep.subr.bf16.mxu0 0
        %1495 = vmatpush2.bf16.msra.mxu0 0
        %1496 = vmatprep.subr.bf16.mxu0 0
        %1497 = vmatpush2.bf16.msra.mxu0 0
        %1498 = vmatprep.subr.bf16.mxu0 0
        %1499 = vmatpush2.bf16.msra.mxu0 0
        %1500 = vmatprep.mubr.bf16.mxu0 0
        %1501 = vmatmul.mubr.bf16.gmra.mxu0 %v1442
        %v1502 = vpop.f32.mrf.mxu0
        %v1503 = vadd.f32 %v1339, %v1502
        %v1504 = vpop.f32.mrf.mxu0
        %v1505 = vpop.f32.mrf.mxu0
        %v1506 = vadd.f32 %v1342, %v1505
        %v1507 = vpop.f32.mrf.mxu0
        %1508 = vmatprep.mubr.bf16.mxu0 0
        %1509 = vmatmul.mubr.bf16.gmra.mxu0 %v1445
        %v1510 = vpop.f32.mrf.mxu0
        %v1511 = vadd.f32 %v1347, %v1510
        %v1512 = vpop.f32.mrf.mxu0
        %v1513 = vpop.f32.mrf.mxu0
        %v1514 = vadd.f32 %v1350, %v1513
        %v1515 = vpop.f32.mrf.mxu0
        %1516 = vmatprep.mubr.bf16.mxu0 0
        %1517 = vmatmul.mubr.bf16.gmra.mxu0 %v1448
        %v1518 = vpop.f32.mrf.mxu0
        %v1519 = vadd.f32 %v1355, %v1518
        %v1520 = vpop.f32.mrf.mxu0
        %v1521 = vpop.f32.mrf.mxu0
        %v1522 = vadd.f32 %v1358, %v1521
        %v1523 = vpop.f32.mrf.mxu0
        %1524 = vmatprep.mubr.bf16.mxu0 0
        %1525 = vmatmul.mubr.bf16.gmra.mxu0 %v1451
        %v1526 = vpop.f32.mrf.mxu0
        %v1527 = vadd.f32 %v1363, %v1526
        %v1528 = vpop.f32.mrf.mxu0
        %v1529 = vpop.f32.mrf.mxu0
        %v1530 = vadd.f32 %v1366, %v1529
        %v1531 = vpop.f32.mrf.mxu0
        %1532 = vmatprep.mubr.bf16.mxu0 0
        %1533 = vmatmul.mubr.bf16.gmra.mxu0 %v1454
        %v1534 = vpop.f32.mrf.mxu0
        %v1535 = vadd.f32 %v1371, %v1534
        %v1536 = vpop.f32.mrf.mxu0
        %v1537 = vpop.f32.mrf.mxu0
        %v1538 = vadd.f32 %v1374, %v1537
        %v1539 = vpop.f32.mrf.mxu0
        %1540 = vmatprep.mubr.bf16.mxu0 0
        %1541 = vmatmul.mubr.bf16.gmra.mxu0 %v1457
        %v1542 = vpop.f32.mrf.mxu0
        %v1543 = vadd.f32 %v1379, %v1542
        %v1544 = vpop.f32.mrf.mxu0
        %v1545 = vpop.f32.mrf.mxu0
        %v1546 = vadd.f32 %v1382, %v1545
        %v1547 = vpop.f32.mrf.mxu0
        %1548 = vmatprep.mubr.bf16.mxu0 0
        %1549 = vmatmul.mubr.bf16.gmra.mxu0 %v1460
        %v1550 = vpop.f32.mrf.mxu0
        %v1551 = vadd.f32 %v1387, %v1550
        %v1552 = vpop.f32.mrf.mxu0
        %v1553 = vpop.f32.mrf.mxu0
        %v1554 = vadd.f32 %v1390, %v1553
        %v1555 = vpop.f32.mrf.mxu0
        %1556 = vmatprep.mubr.bf16.mxu0 0
        %1557 = vmatmul.mubr.bf16.gmra.mxu0 %v1463
        %v1558 = vpop.f32.mrf.mxu0
        %v1559 = vadd.f32 %v1395, %v1558
        %v1560 = vpop.f32.mrf.mxu0
        %v1561 = vpop.f32.mrf.mxu0
        %v1562 = vadd.f32 %v1398, %v1561
        %v1563 = vpop.f32.mrf.mxu0
        %1564 = vdwg.mxu0
        %v1565 = vld [vmem:[#allocation2] sm:$0xe]
        %v1566 = vld [vmem:[#allocation2 + $0xc] sm:$0xe]
        %v1567 = vld [vmem:[#allocation2 + $0x18] sm:$0xe]
        %v1568 = vld [vmem:[#allocation2 + $0x24] sm:$0xe]
        %v1569 = vld [vmem:[#allocation2 + $0x30] sm:$0xe]
        %v1570 = vld [vmem:[#allocation2 + $0x3c] sm:$0xe]
        %v1571 = vld [vmem:[#allocation2 + $0x48] sm:$0xe]
        %v1572 = vld [vmem:[#allocation2 + $0x54] sm:$0xe]
        %vm1589 = vcmask 1042432
        %vm1590 = vcmask 1046532
        %vm1591 = vmor %vm1589, %vm1590
        %v1592 = vrot.slane %v1565, 5
        %v1593 = vrot.slane %v1592, 4
        %v1594 = vrot.slane %v1032, 5
        %v1595 = vsel %vm1591, %v1593, %v1594
        %v1596 = vrot.slane %v1594, 4
        %v1597 = vrot.slane %v1048, 5
        %v1598 = vsel %vm1591, %v1596, %v1597
        %v1599 = vrot.slane %v1566, 5
        %v1600 = vrot.slane %v1599, 4
        %v1601 = vrot.slane %v1034, 5
        %v1602 = vsel %vm1591, %v1600, %v1601
        %v1603 = vrot.slane %v1601, 4
        %v1604 = vrot.slane %v1049, 5
        %v1605 = vsel %vm1591, %v1603, %v1604
        %v1606 = vrot.slane %v1567, 5
        %v1607 = vrot.slane %v1606, 4
        %v1608 = vrot.slane %v1036, 5
        %v1609 = vsel %vm1591, %v1607, %v1608
        %v1610 = vrot.slane %v1608, 4
        %v1611 = vrot.slane %v1050, 5
        %v1612 = vsel %vm1591, %v1610, %v1611
        %v1613 = vrot.slane %v1568, 5
        %v1614 = vrot.slane %v1613, 4
        %v1615 = vrot.slane %v1038, 5
        %v1616 = vsel %vm1591, %v1614, %v1615
        %v1617 = vrot.slane %v1615, 4
        %v1618 = vrot.slane %v1051, 5
        %v1619 = vsel %vm1591, %v1617, %v1618
        %v1620 = vrot.slane %v1569, 5
        %v1621 = vrot.slane %v1620, 4
        %v1622 = vrot.slane %v1040, 5
        %v1623 = vsel %vm1591, %v1621, %v1622
        %v1624 = vrot.slane %v1622, 4
        %v1625 = vrot.slane %v1052, 5
        %v1626 = vsel %vm1591, %v1624, %v1625
        %v1627 = vrot.slane %v1570, 5
        %v1628 = vrot.slane %v1627, 4
        %v1629 = vrot.slane %v1042, 5
        %v1630 = vsel %vm1591, %v1628, %v1629
        %v1631 = vrot.slane %v1629, 4
        %v1632 = vrot.slane %v1053, 5
        %v1633 = vsel %vm1591, %v1631, %v1632
        %v1634 = vrot.slane %v1571, 5
        %v1635 = vrot.slane %v1634, 4
        %v1636 = vrot.slane %v1044, 5
        %v1637 = vsel %vm1591, %v1635, %v1636
        %v1638 = vrot.slane %v1636, 4
        %v1639 = vrot.slane %v1054, 5
        %v1640 = vsel %vm1591, %v1638, %v1639
        %v1641 = vrot.slane %v1572, 5
        %v1642 = vrot.slane %v1641, 4
        %v1643 = vrot.slane %v1046, 5
        %v1644 = vsel %vm1591, %v1642, %v1643
        %v1645 = vrot.slane %v1643, 4
        %v1646 = vrot.slane %v1055, 5
        %v1647 = vsel %vm1591, %v1645, %v1646
        %s1648 = scalar_lea.vmem %s6, 4
        %v1649 = vld [vmem:[%s1648] sm:$0x3]
        %v1650 = vunpack.c.l.b16 %v1595
        %v1651 = vunpack.c.l.b16 %v1598
        %v1652 = vunpack.c.l.b16 %v1602
        %v1653 = vunpack.c.l.b16 %v1605
        %v1654 = vunpack.c.l.b16 %v1609
        %v1655 = vunpack.c.l.b16 %v1612
        %v1656 = vunpack.c.l.b16 %v1616
        %v1657 = vunpack.c.l.b16 %v1619
        %v1658 = vunpack.c.l.b16 %v1623
        %v1659 = vunpack.c.l.b16 %v1626
        %v1660 = vunpack.c.l.b16 %v1630
        %v1661 = vunpack.c.l.b16 %v1633
        %v1662 = vunpack.c.l.b16 %v1637
        %v1663 = vunpack.c.l.b16 %v1640
        %v1664 = vunpack.c.l.b16 %v1644
        %v1665 = vunpack.c.l.b16 %v1647
        %v1666 = vpack.c.b16 %v1651, %v1650
        %v1667 = vpack.c.b16 %v1653, %v1652
        %v1668 = vpack.c.b16 %v1655, %v1654
        %v1669 = vpack.c.b16 %v1657, %v1656
        %v1670 = vpack.c.b16 %v1659, %v1658
        %v1671 = vpack.c.b16 %v1661, %v1660
        %v1672 = vpack.c.b16 %v1663, %v1662
        %v1673 = vpack.c.b16 %v1665, %v1664
        %v1675 = vsel %vm410, %v1666, 0
        %v1678 = vsel %vm410, %v1667, 0
        %v1681 = vsel %vm410, %v1668, 0
        %v1684 = vsel %vm410, %v1669, 0
        %v1687 = vsel %vm410, %v1670, 0
        %v1690 = vsel %vm410, %v1671, 0
        %v1693 = vsel %vm410, %v1672, 0
        %v1696 = vsel %vm410, %v1673, 0
        %v1699 = vsel %vm435, %v1649, 0
        %1701 = vmatprep.subr.bf16.mxu0 0
        %1702 = vmatpush1.bf16.msra.mxu0 0
        %1703 = vmatprep.subr.bf16.mxu0 0
        %1704 = vmatpush1.bf16.msra.mxu0 0
        %1705 = vmatprep.subr.bf16.mxu0 0
        %1706 = vmatpush1.bf16.msra.mxu0 0
        %1707 = vmatprep.subr.bf16.mxu0 0
        %1708 = vmatpush1.bf16.msra.mxu0 0
        %1709 = vmatprep.subr.bf16.mxu0 0
        %1710 = vmatpush1.bf16.msra.mxu0 0
        %1711 = vmatprep.subr.bf16.mxu0 0
        %1712 = vmatpush1.bf16.msra.mxu0 0
        %1713 = vmatprep.subr.bf16.mxu0 0
        %1714 = vmatpush1.bf16.msra.mxu0 0
        %1715 = vmatprep.subr.bf16.mxu0 0
        %1716 = vmatpush1.bf16.msra.mxu0 %v1699
        %1717 = vmatprep.subr.bf16.mxu0 0
        %1718 = vmatpush2.bf16.msra.mxu0 0
        %1719 = vmatprep.subr.bf16.mxu0 0
        %1720 = vmatpush2.bf16.msra.mxu0 0
        %1721 = vmatprep.subr.bf16.mxu0 0
        %1722 = vmatpush2.bf16.msra.mxu0 0
        %1723 = vmatprep.subr.bf16.mxu0 0
        %1724 = vmatpush2.bf16.msra.mxu0 0
        %1725 = vmatprep.subr.bf16.mxu0 0
        %1726 = vmatpush2.bf16.msra.mxu0 0
        %1727 = vmatprep.subr.bf16.mxu0 0
        %1728 = vmatpush2.bf16.msra.mxu0 0
        %1729 = vmatprep.subr.bf16.mxu0 0
        %1730 = vmatpush2.bf16.msra.mxu0 0
        %1731 = vmatprep.subr.bf16.mxu0 0
        %1732 = vmatpush2.bf16.msra.mxu0 0
        %1733 = vmatprep.mubr.bf16.mxu0 0
        %1734 = vmatmul.mubr.bf16.gmra.mxu0 %v1675
        %v1735 = vpop.f32.mrf.mxu0
        %v1736 = vadd.f32 0.0, %v1735
        %v1737 = vpop.f32.mrf.mxu0
        %v1738 = vpop.f32.mrf.mxu0
        %v1739 = vadd.f32 0.0, %v1738
        %v1740 = vpop.f32.mrf.mxu0
        %1741 = vmatprep.mubr.bf16.mxu0 0
        %1742 = vmatmul.mubr.bf16.gmra.mxu0 %v1678
        %v1743 = vpop.f32.mrf.mxu0
        %v1744 = vadd.f32 0.0, %v1743
        %v1745 = vpop.f32.mrf.mxu0
        %v1746 = vpop.f32.mrf.mxu0
        %v1747 = vadd.f32 0.0, %v1746
        %v1748 = vpop.f32.mrf.mxu0
        %1749 = vmatprep.mubr.bf16.mxu0 0
        %1750 = vmatmul.mubr.bf16.gmra.mxu0 %v1681
        %v1751 = vpop.f32.mrf.mxu0
        %v1752 = vadd.f32 0.0, %v1751
        %v1753 = vpop.f32.mrf.mxu0
        %v1754 = vpop.f32.mrf.mxu0
        %v1755 = vadd.f32 0.0, %v1754
        %v1756 = vpop.f32.mrf.mxu0
        %1757 = vmatprep.mubr.bf16.mxu0 0
        %1758 = vmatmul.mubr.bf16.gmra.mxu0 %v1684
        %v1759 = vpop.f32.mrf.mxu0
        %v1760 = vadd.f32 0.0, %v1759
        %v1761 = vpop.f32.mrf.mxu0
        %v1762 = vpop.f32.mrf.mxu0
        %v1763 = vadd.f32 0.0, %v1762
        %v1764 = vpop.f32.mrf.mxu0
        %1765 = vmatprep.mubr.bf16.mxu0 0
        %1766 = vmatmul.mubr.bf16.gmra.mxu0 %v1687
        %v1767 = vpop.f32.mrf.mxu0
        %v1768 = vadd.f32 0.0, %v1767
        %v1769 = vpop.f32.mrf.mxu0
        %v1770 = vpop.f32.mrf.mxu0
        %v1771 = vadd.f32 0.0, %v1770
        %v1772 = vpop.f32.mrf.mxu0
        %1773 = vmatprep.mubr.bf16.mxu0 0
        %1774 = vmatmul.mubr.bf16.gmra.mxu0 %v1690
        %v1775 = vpop.f32.mrf.mxu0
        %v1776 = vadd.f32 0.0, %v1775
        %v1777 = vpop.f32.mrf.mxu0
        %v1778 = vpop.f32.mrf.mxu0
        %v1779 = vadd.f32 0.0, %v1778
        %v1780 = vpop.f32.mrf.mxu0
        %1781 = vmatprep.mubr.bf16.mxu0 0
        %1782 = vmatmul.mubr.bf16.gmra.mxu0 %v1693
        %v1783 = vpop.f32.mrf.mxu0
        %v1784 = vadd.f32 0.0, %v1783
        %v1785 = vpop.f32.mrf.mxu0
        %v1786 = vpop.f32.mrf.mxu0
        %v1787 = vadd.f32 0.0, %v1786
        %v1788 = vpop.f32.mrf.mxu0
        %1789 = vmatprep.mubr.bf16.mxu0 0
        %1790 = vmatmul.mubr.bf16.gmra.mxu0 %v1696
        %v1791 = vpop.f32.mrf.mxu0
        %v1792 = vadd.f32 0.0, %v1791
        %v1793 = vpop.f32.mrf.mxu0
        %v1794 = vpop.f32.mrf.mxu0
        %v1795 = vadd.f32 0.0, %v1794
        %v1796 = vpop.f32.mrf.mxu0
        %1797 = vdwg.mxu0
        %v1798 = vadd.f32 %v1503, %v1736
        %v1799 = vadd.f32 %v1506, %v1739
        %v1800 = vadd.f32 %v1511, %v1744
        %v1801 = vadd.f32 %v1514, %v1747
        %v1802 = vadd.f32 %v1519, %v1752
        %v1803 = vadd.f32 %v1522, %v1755
        %v1804 = vadd.f32 %v1527, %v1760
        %v1805 = vadd.f32 %v1530, %v1763
        %v1806 = vadd.f32 %v1535, %v1768
        %v1807 = vadd.f32 %v1538, %v1771
        %v1808 = vadd.f32 %v1543, %v1776
        %v1809 = vadd.f32 %v1546, %v1779
        %v1810 = vadd.f32 %v1551, %v1784
        %v1811 = vadd.f32 %v1554, %v1787
        %v1812 = vadd.f32 %v1559, %v1792
        %v1813 = vadd.f32 %v1562, %v1795
        %v1814 = vld [vmem:[%s974] sm:$0xf]
        %v1815 = vld [vmem:[%s974 + $0x4] sm:$0xf]
        %v1816 = vld [vmem:[%s974 + $0xc] sm:$0xf]
        %v1817 = vld [vmem:[%s974 + $0x10] sm:$0xf]
        %v1818 = vld [vmem:[%s974 + $0x18] sm:$0xf]
        %v1819 = vld [vmem:[%s974 + $0x1c] sm:$0xf]
        %v1820 = vld [vmem:[%s974 + $0x24] sm:$0xf]
        %v1821 = vld [vmem:[%s974 + $0x28] sm:$0xf]
        %v1822 = vld [vmem:[%s974 + $0x30] sm:$0xf]
        %v1823 = vld [vmem:[%s974 + $0x34] sm:$0xf]
        %v1824 = vld [vmem:[%s974 + $0x3c] sm:$0xf]
        %v1825 = vld [vmem:[%s974 + $0x40] sm:$0xf]
        %v1826 = vld [vmem:[%s974 + $0x48] sm:$0xf]
        %v1827 = vld [vmem:[%s974 + $0x4c] sm:$0xf]
        %v1828 = vld [vmem:[%s974 + $0x54] sm:$0xf]
        %v1829 = vld [vmem:[%s974 + $0x58] sm:$0xf]
        %s1830 = scalar_lea.vmem %s6, 6
        %v1831 = vld [vmem:[%s1830] sm:$0x3]
        %v1848 = vunpack.c.l.b16 %v1814
        %v1849 = vunpack.c.l.b16 %v1815
        %v1850 = vunpack.c.l.b16 %v1816
        %v1851 = vunpack.c.l.b16 %v1817
        %v1852 = vunpack.c.l.b16 %v1818
        %v1853 = vunpack.c.l.b16 %v1819
        %v1854 = vunpack.c.l.b16 %v1820
        %v1855 = vunpack.c.l.b16 %v1821
        %v1856 = vunpack.c.l.b16 %v1822
        %v1857 = vunpack.c.l.b16 %v1823
        %v1858 = vunpack.c.l.b16 %v1824
        %v1859 = vunpack.c.l.b16 %v1825
        %v1860 = vunpack.c.l.b16 %v1826
        %v1861 = vunpack.c.l.b16 %v1827
        %v1862 = vunpack.c.l.b16 %v1828
        %v1863 = vunpack.c.l.b16 %v1829
        %v1864 = vpack.c.b16 %v1849, %v1848
        %v1865 = vpack.c.b16 %v1851, %v1850
        %v1866 = vpack.c.b16 %v1853, %v1852
        %v1867 = vpack.c.b16 %v1855, %v1854
        %v1868 = vpack.c.b16 %v1857, %v1856
        %v1869 = vpack.c.b16 %v1859, %v1858
        %v1870 = vpack.c.b16 %v1861, %v1860
        %v1871 = vpack.c.b16 %v1863, %v1862
        %v1873 = vsel %vm410, %v1864, 0
        %v1876 = vsel %vm410, %v1865, 0
        %v1879 = vsel %vm410, %v1866, 0
        %v1882 = vsel %vm410, %v1867, 0
        %v1885 = vsel %vm410, %v1868, 0
        %v1888 = vsel %vm410, %v1869, 0
        %v1891 = vsel %vm410, %v1870, 0
        %v1894 = vsel %vm410, %v1871, 0
        %v1897 = vsel %vm435, %v1831, 0
        %1899 = vmatprep.subr.bf16.mxu0 0
        %1900 = vmatpush1.bf16.msra.mxu0 0
        %1901 = vmatprep.subr.bf16.mxu0 0
        %1902 = vmatpush1.bf16.msra.mxu0 0
        %1903 = vmatprep.subr.bf16.mxu0 0
        %1904 = vmatpush1.bf16.msra.mxu0 0
        %1905 = vmatprep.subr.bf16.mxu0 0
        %1906 = vmatpush1.bf16.msra.mxu0 0
        %1907 = vmatprep.subr.bf16.mxu0 0
        %1908 = vmatpush1.bf16.msra.mxu0 0
        %1909 = vmatprep.subr.bf16.mxu0 0
        %1910 = vmatpush1.bf16.msra.mxu0 0
        %1911 = vmatprep.subr.bf16.mxu0 0
        %1912 = vmatpush1.bf16.msra.mxu0 0
        %1913 = vmatprep.subr.bf16.mxu0 0
        %1914 = vmatpush1.bf16.msra.mxu0 %v1897
        %1915 = vmatprep.subr.bf16.mxu0 0
        %1916 = vmatpush2.bf16.msra.mxu0 0
        %1917 = vmatprep.subr.bf16.mxu0 0
        %1918 = vmatpush2.bf16.msra.mxu0 0
        %1919 = vmatprep.subr.bf16.mxu0 0
        %1920 = vmatpush2.bf16.msra.mxu0 0
        %1921 = vmatprep.subr.bf16.mxu0 0
        %1922 = vmatpush2.bf16.msra.mxu0 0
        %1923 = vmatprep.subr.bf16.mxu0 0
        %1924 = vmatpush2.bf16.msra.mxu0 0
        %1925 = vmatprep.subr.bf16.mxu0 0
        %1926 = vmatpush2.bf16.msra.mxu0 0
        %1927 = vmatprep.subr.bf16.mxu0 0
        %1928 = vmatpush2.bf16.msra.mxu0 0
        %1929 = vmatprep.subr.bf16.mxu0 0
        %1930 = vmatpush2.bf16.msra.mxu0 0
        %1931 = vmatprep.mubr.bf16.mxu0 0
        %1932 = vmatmul.mubr.bf16.gmra.mxu0 %v1873
        %v1933 = vpop.f32.mrf.mxu0
        %v1934 = vadd.f32 0.0, %v1933
        %v1935 = vpop.f32.mrf.mxu0
        %v1936 = vpop.f32.mrf.mxu0
        %v1937 = vadd.f32 0.0, %v1936
        %v1938 = vpop.f32.mrf.mxu0
        %1939 = vmatprep.mubr.bf16.mxu0 0
        %1940 = vmatmul.mubr.bf16.gmra.mxu0 %v1876
        %v1941 = vpop.f32.mrf.mxu0
        %v1942 = vadd.f32 0.0, %v1941
        %v1943 = vpop.f32.mrf.mxu0
        %v1944 = vpop.f32.mrf.mxu0
        %v1945 = vadd.f32 0.0, %v1944
        %v1946 = vpop.f32.mrf.mxu0
        %1947 = vmatprep.mubr.bf16.mxu0 0
        %1948 = vmatmul.mubr.bf16.gmra.mxu0 %v1879
        %v1949 = vpop.f32.mrf.mxu0
        %v1950 = vadd.f32 0.0, %v1949
        %v1951 = vpop.f32.mrf.mxu0
        %v1952 = vpop.f32.mrf.mxu0
        %v1953 = vadd.f32 0.0, %v1952
        %v1954 = vpop.f32.mrf.mxu0
        %1955 = vmatprep.mubr.bf16.mxu0 0
        %1956 = vmatmul.mubr.bf16.gmra.mxu0 %v1882
        %v1957 = vpop.f32.mrf.mxu0
        %v1958 = vadd.f32 0.0, %v1957
        %v1959 = vpop.f32.mrf.mxu0
        %v1960 = vpop.f32.mrf.mxu0
        %v1961 = vadd.f32 0.0, %v1960
        %v1962 = vpop.f32.mrf.mxu0
        %1963 = vmatprep.mubr.bf16.mxu0 0
        %1964 = vmatmul.mubr.bf16.gmra.mxu0 %v1885
        %v1965 = vpop.f32.mrf.mxu0
        %v1966 = vadd.f32 0.0, %v1965
        %v1967 = vpop.f32.mrf.mxu0
        %v1968 = vpop.f32.mrf.mxu0
        %v1969 = vadd.f32 0.0, %v1968
        %v1970 = vpop.f32.mrf.mxu0
        %1971 = vmatprep.mubr.bf16.mxu0 0
        %1972 = vmatmul.mubr.bf16.gmra.mxu0 %v1888
        %v1973 = vpop.f32.mrf.mxu0
        %v1974 = vadd.f32 0.0, %v1973
        %v1975 = vpop.f32.mrf.mxu0
        %v1976 = vpop.f32.mrf.mxu0
        %v1977 = vadd.f32 0.0, %v1976
        %v1978 = vpop.f32.mrf.mxu0
        %1979 = vmatprep.mubr.bf16.mxu0 0
        %1980 = vmatmul.mubr.bf16.gmra.mxu0 %v1891
        %v1981 = vpop.f32.mrf.mxu0
        %v1982 = vadd.f32 0.0, %v1981
        %v1983 = vpop.f32.mrf.mxu0
        %v1984 = vpop.f32.mrf.mxu0
        %v1985 = vadd.f32 0.0, %v1984
        %v1986 = vpop.f32.mrf.mxu0
        %1987 = vmatprep.mubr.bf16.mxu0 0
        %1988 = vmatmul.mubr.bf16.gmra.mxu0 %v1894
        %v1989 = vpop.f32.mrf.mxu0
        %v1990 = vadd.f32 0.0, %v1989
        %v1991 = vpop.f32.mrf.mxu0
        %v1992 = vpop.f32.mrf.mxu0
        %v1993 = vadd.f32 0.0, %v1992
        %v1994 = vpop.f32.mrf.mxu0
        %1995 = vdwg.mxu0
        %v1996 = vadd.f32 %v1798, %v1934
        %v1997 = vadd.f32 %v1799, %v1937
        %v1998 = vadd.f32 %v1800, %v1942
        %v1999 = vadd.f32 %v1801, %v1945
        %v2000 = vadd.f32 %v1802, %v1950
        %v2001 = vadd.f32 %v1803, %v1953
        %v2002 = vadd.f32 %v1804, %v1958
        %v2003 = vadd.f32 %v1805, %v1961
        %v2004 = vadd.f32 %v1806, %v1966
        %v2005 = vadd.f32 %v1807, %v1969
        %v2006 = vadd.f32 %v1808, %v1974
        %v2007 = vadd.f32 %v1809, %v1977
        %v2008 = vadd.f32 %v1810, %v1982
        %v2009 = vadd.f32 %v1811, %v1985
        %v2010 = vadd.f32 %v1812, %v1990
        %v2011 = vadd.f32 %v1813, %v1993
        %v2012 = vld [vmem:[%s974] sm:$0xf]
        %v2013 = vld [vmem:[%s974 + $0x4] sm:$0xf]
        %v2014 = vld [vmem:[%s974 + $0x8] sm:$0x1]
        %v2015 = vld [vmem:[%s974 + $0xc] sm:$0xf]
        %v2016 = vld [vmem:[%s974 + $0x10] sm:$0xf]
        %v2017 = vld [vmem:[%s974 + $0x14] sm:$0x1]
        %v2018 = vld [vmem:[%s974 + $0x18] sm:$0xf]
        %v2019 = vld [vmem:[%s974 + $0x1c] sm:$0xf]
        %v2020 = vld [vmem:[%s974 + $0x20] sm:$0x1]
        %v2021 = vld [vmem:[%s974 + $0x24] sm:$0xf]
        %v2022 = vld [vmem:[%s974 + $0x28] sm:$0xf]
        %v2023 = vld [vmem:[%s974 + $0x2c] sm:$0x1]
        %v2024 = vld [vmem:[%s974 + $0x30] sm:$0xf]
        %v2025 = vld [vmem:[%s974 + $0x34] sm:$0xf]
        %v2026 = vld [vmem:[%s974 + $0x38] sm:$0x1]
        %v2027 = vld [vmem:[%s974 + $0x3c] sm:$0xf]
        %v2028 = vld [vmem:[%s974 + $0x40] sm:$0xf]
        %v2029 = vld [vmem:[%s974 + $0x44] sm:$0x1]
        %v2030 = vld [vmem:[%s974 + $0x48] sm:$0xf]
        %v2031 = vld [vmem:[%s974 + $0x4c] sm:$0xf]
        %v2032 = vld [vmem:[%s974 + $0x50] sm:$0x1]
        %v2033 = vld [vmem:[%s974 + $0x54] sm:$0xf]
        %v2034 = vld [vmem:[%s974 + $0x58] sm:$0xf]
        %v2035 = vld [vmem:[%s974 + $0x5c] sm:$0x1]
        %v2037 = vshrl.u32 %v2012, 16
        %v2039 = vrot.slane %v2037, 4
        %v2040 = vshll.u32 %v2012, 16
        %v2042 = vrot.slane %v2040, 5
        %v2043 = vor.u32 %v2039, %v2042
        %v2044 = vrot.slane %v2043, 4
        %v2046 = vshll.u32 %v2013, 16
        %v2048 = vrot.slane %v2046, 5
        %v2049 = vsel %vm1058, %v2044, %v2048
        %v2050 = vshrl.u32 %v2013, 16
        %v2052 = vrot.slane %v2050, 4
        %v2053 = vor.u32 %v2052, %v2048
        %v2054 = vrot.slane %v2053, 4
        %v2056 = vshll.u32 %v2014, 16
        %v2058 = vrot.slane %v2056, 5
        %v2059 = vsel %vm1058, %v2054, %v2058
        %v2061 = vshrl.u32 %v2015, 16
        %v2063 = vrot.slane %v2061, 4
        %v2064 = vshll.u32 %v2015, 16
        %v2066 = vrot.slane %v2064, 5
        %v2067 = vor.u32 %v2063, %v2066
        %v2068 = vrot.slane %v2067, 4
        %v2070 = vshll.u32 %v2016, 16
        %v2072 = vrot.slane %v2070, 5
        %v2073 = vsel %vm1058, %v2068, %v2072
        %v2074 = vshrl.u32 %v2016, 16
        %v2076 = vrot.slane %v2074, 4
        %v2077 = vor.u32 %v2076, %v2072
        %v2078 = vrot.slane %v2077, 4
        %v2080 = vshll.u32 %v2017, 16
        %v2082 = vrot.slane %v2080, 5
        %v2083 = vsel %vm1058, %v2078, %v2082
        %v2085 = vshrl.u32 %v2018, 16
        %v2087 = vrot.slane %v2085, 4
        %v2088 = vshll.u32 %v2018, 16
        %v2090 = vrot.slane %v2088, 5
        %v2091 = vor.u32 %v2087, %v2090
        %v2092 = vrot.slane %v2091, 4
        %v2094 = vshll.u32 %v2019, 16
        %v2096 = vrot.slane %v2094, 5
        %v2097 = vsel %vm1058, %v2092, %v2096
        %v2098 = vshrl.u32 %v2019, 16
        %v2100 = vrot.slane %v2098, 4
        %v2101 = vor.u32 %v2100, %v2096
        %v2102 = vrot.slane %v2101, 4
        %v2104 = vshll.u32 %v2020, 16
        %v2106 = vrot.slane %v2104, 5
        %v2107 = vsel %vm1058, %v2102, %v2106
        %v2109 = vshrl.u32 %v2021, 16
        %v2111 = vrot.slane %v2109, 4
        %v2112 = vshll.u32 %v2021, 16
        %v2114 = vrot.slane %v2112, 5
        %v2115 = vor.u32 %v2111, %v2114
        %v2116 = vrot.slane %v2115, 4
        %v2118 = vshll.u32 %v2022, 16
        %v2120 = vrot.slane %v2118, 5
        %v2121 = vsel %vm1058, %v2116, %v2120
        %v2122 = vshrl.u32 %v2022, 16
        %v2124 = vrot.slane %v2122, 4
        %v2125 = vor.u32 %v2124, %v2120
        %v2126 = vrot.slane %v2125, 4
        %v2128 = vshll.u32 %v2023, 16
        %v2130 = vrot.slane %v2128, 5
        %v2131 = vsel %vm1058, %v2126, %v2130
        %v2133 = vshrl.u32 %v2024, 16
        %v2135 = vrot.slane %v2133, 4
        %v2136 = vshll.u32 %v2024, 16
        %v2138 = vrot.slane %v2136, 5
        %v2139 = vor.u32 %v2135, %v2138
        %v2140 = vrot.slane %v2139, 4
        %v2142 = vshll.u32 %v2025, 16
        %v2144 = vrot.slane %v2142, 5
        %v2145 = vsel %vm1058, %v2140, %v2144
        %v2146 = vshrl.u32 %v2025, 16
        %v2148 = vrot.slane %v2146, 4
        %v2149 = vor.u32 %v2148, %v2144
        %v2150 = vrot.slane %v2149, 4
        %v2152 = vshll.u32 %v2026, 16
        %v2154 = vrot.slane %v2152, 5
        %v2155 = vsel %vm1058, %v2150, %v2154
        %v2157 = vshrl.u32 %v2027, 16
        %v2159 = vrot.slane %v2157, 4
        %v2160 = vshll.u32 %v2027, 16
        %v2162 = vrot.slane %v2160, 5
        %v2163 = vor.u32 %v2159, %v2162
        %v2164 = vrot.slane %v2163, 4
        %v2166 = vshll.u32 %v2028, 16
        %v2168 = vrot.slane %v2166, 5
        %v2169 = vsel %vm1058, %v2164, %v2168
        %v2170 = vshrl.u32 %v2028, 16
        %v2172 = vrot.slane %v2170, 4
        %v2173 = vor.u32 %v2172, %v2168
        %v2174 = vrot.slane %v2173, 4
        %v2176 = vshll.u32 %v2029, 16
        %v2178 = vrot.slane %v2176, 5
        %v2179 = vsel %vm1058, %v2174, %v2178
        %v2181 = vshrl.u32 %v2030, 16
        %v2183 = vrot.slane %v2181, 4
        %v2184 = vshll.u32 %v2030, 16
        %v2186 = vrot.slane %v2184, 5
        %v2187 = vor.u32 %v2183, %v2186
        %v2188 = vrot.slane %v2187, 4
        %v2190 = vshll.u32 %v2031, 16
        %v2192 = vrot.slane %v2190, 5
        %v2193 = vsel %vm1058, %v2188, %v2192
        %v2194 = vshrl.u32 %v2031, 16
        %v2196 = vrot.slane %v2194, 4
        %v2197 = vor.u32 %v2196, %v2192
        %v2198 = vrot.slane %v2197, 4
        %v2200 = vshll.u32 %v2032, 16
        %v2202 = vrot.slane %v2200, 5
        %v2203 = vsel %vm1058, %v2198, %v2202
        %v2205 = vshrl.u32 %v2033, 16
        %v2207 = vrot.slane %v2205, 4
        %v2208 = vshll.u32 %v2033, 16
        %v2210 = vrot.slane %v2208, 5
        %v2211 = vor.u32 %v2207, %v2210
        %v2212 = vrot.slane %v2211, 4
        %v2214 = vshll.u32 %v2034, 16
        %v2216 = vrot.slane %v2214, 5
        %v2217 = vsel %vm1058, %v2212, %v2216
        %v2218 = vshrl.u32 %v2034, 16
        %v2220 = vrot.slane %v2218, 4
        %v2221 = vor.u32 %v2220, %v2216
        %v2222 = vrot.slane %v2221, 4
        %v2224 = vshll.u32 %v2035, 16
        %v2226 = vrot.slane %v2224, 5
        %v2227 = vsel %vm1058, %v2222, %v2226
        %s2228 = scalar_lea.vmem %s6, 8
        %v2229 = vld [vmem:[%s2228] sm:$0x3]
        %v2230 = vunpack.c.l.b16 %v2049
        %v2231 = vunpack.c.l.b16 %v2059
        %v2232 = vunpack.c.l.b16 %v2073
        %v2233 = vunpack.c.l.b16 %v2083
        %v2234 = vunpack.c.l.b16 %v2097
        %v2235 = vunpack.c.l.b16 %v2107
        %v2236 = vunpack.c.l.b16 %v2121
        %v2237 = vunpack.c.l.b16 %v2131
        %v2238 = vunpack.c.l.b16 %v2145
        %v2239 = vunpack.c.l.b16 %v2155
        %v2240 = vunpack.c.l.b16 %v2169
        %v2241 = vunpack.c.l.b16 %v2179
        %v2242 = vunpack.c.l.b16 %v2193
        %v2243 = vunpack.c.l.b16 %v2203
        %v2244 = vunpack.c.l.b16 %v2217
        %v2245 = vunpack.c.l.b16 %v2227
        %v2246 = vpack.c.b16 %v2231, %v2230
        %v2247 = vpack.c.b16 %v2233, %v2232
        %v2248 = vpack.c.b16 %v2235, %v2234
        %v2249 = vpack.c.b16 %v2237, %v2236
        %v2250 = vpack.c.b16 %v2239, %v2238
        %v2251 = vpack.c.b16 %v2241, %v2240
        %v2252 = vpack.c.b16 %v2243, %v2242
        %v2253 = vpack.c.b16 %v2245, %v2244
        %v2255 = vsel %vm410, %v2246, 0
        %v2258 = vsel %vm410, %v2247, 0
        %v2261 = vsel %vm410, %v2248, 0
        %v2264 = vsel %vm410, %v2249, 0
        %v2267 = vsel %vm410, %v2250, 0
        %v2270 = vsel %vm410, %v2251, 0
        %v2273 = vsel %vm410, %v2252, 0
        %v2276 = vsel %vm410, %v2253, 0
        %v2279 = vsel %vm435, %v2229, 0
        %2281 = vmatprep.subr.bf16.mxu0 0
        %2282 = vmatpush1.bf16.msra.mxu0 0
        %2283 = vmatprep.subr.bf16.mxu0 0
        %2284 = vmatpush1.bf16.msra.mxu0 0
        %2285 = vmatprep.subr.bf16.mxu0 0
        %2286 = vmatpush1.bf16.msra.mxu0 0
        %2287 = vmatprep.subr.bf16.mxu0 0
        %2288 = vmatpush1.bf16.msra.mxu0 0
        %2289 = vmatprep.subr.bf16.mxu0 0
        %2290 = vmatpush1.bf16.msra.mxu0 0
        %2291 = vmatprep.subr.bf16.mxu0 0
        %2292 = vmatpush1.bf16.msra.mxu0 0
        %2293 = vmatprep.subr.bf16.mxu0 0
        %2294 = vmatpush1.bf16.msra.mxu0 0
        %2295 = vmatprep.subr.bf16.mxu0 0
        %2296 = vmatpush1.bf16.msra.mxu0 %v2279
        %2297 = vmatprep.subr.bf16.mxu0 0
        %2298 = vmatpush2.bf16.msra.mxu0 0
        %2299 = vmatprep.subr.bf16.mxu0 0
        %2300 = vmatpush2.bf16.msra.mxu0 0
        %2301 = vmatprep.subr.bf16.mxu0 0
        %2302 = vmatpush2.bf16.msra.mxu0 0
        %2303 = vmatprep.subr.bf16.mxu0 0
        %2304 = vmatpush2.bf16.msra.mxu0 0
        %2305 = vmatprep.subr.bf16.mxu0 0
        %2306 = vmatpush2.bf16.msra.mxu0 0
        %2307 = vmatprep.subr.bf16.mxu0 0
        %2308 = vmatpush2.bf16.msra.mxu0 0
        %2309 = vmatprep.subr.bf16.mxu0 0
        %2310 = vmatpush2.bf16.msra.mxu0 0
        %2311 = vmatprep.subr.bf16.mxu0 0
        %2312 = vmatpush2.bf16.msra.mxu0 0
        %2313 = vmatprep.mubr.bf16.mxu0 0
        %2314 = vmatmul.mubr.bf16.gmra.mxu0 %v2255
        %v2315 = vpop.f32.mrf.mxu0
        %v2316 = vadd.f32 0.0, %v2315
        %v2317 = vpop.f32.mrf.mxu0
        %v2318 = vpop.f32.mrf.mxu0
        %v2319 = vadd.f32 0.0, %v2318
        %v2320 = vpop.f32.mrf.mxu0
        %2321 = vmatprep.mubr.bf16.mxu0 0
        %2322 = vmatmul.mubr.bf16.gmra.mxu0 %v2258
        %v2323 = vpop.f32.mrf.mxu0
        %v2324 = vadd.f32 0.0, %v2323
        %v2325 = vpop.f32.mrf.mxu0
        %v2326 = vpop.f32.mrf.mxu0
        %v2327 = vadd.f32 0.0, %v2326
        %v2328 = vpop.f32.mrf.mxu0
        %2329 = vmatprep.mubr.bf16.mxu0 0
        %2330 = vmatmul.mubr.bf16.gmra.mxu0 %v2261
        %v2331 = vpop.f32.mrf.mxu0
        %v2332 = vadd.f32 0.0, %v2331
        %v2333 = vpop.f32.mrf.mxu0
        %v2334 = vpop.f32.mrf.mxu0
        %v2335 = vadd.f32 0.0, %v2334
        %v2336 = vpop.f32.mrf.mxu0
        %2337 = vmatprep.mubr.bf16.mxu0 0
        %2338 = vmatmul.mubr.bf16.gmra.mxu0 %v2264
        %v2339 = vpop.f32.mrf.mxu0
        %v2340 = vadd.f32 0.0, %v2339
        %v2341 = vpop.f32.mrf.mxu0
        %v2342 = vpop.f32.mrf.mxu0
        %v2343 = vadd.f32 0.0, %v2342
        %v2344 = vpop.f32.mrf.mxu0
        %2345 = vmatprep.mubr.bf16.mxu0 0
        %2346 = vmatmul.mubr.bf16.gmra.mxu0 %v2267
        %v2347 = vpop.f32.mrf.mxu0
        %v2348 = vadd.f32 0.0, %v2347
        %v2349 = vpop.f32.mrf.mxu0
        %v2350 = vpop.f32.mrf.mxu0
        %v2351 = vadd.f32 0.0, %v2350
        %v2352 = vpop.f32.mrf.mxu0
        %2353 = vmatprep.mubr.bf16.mxu0 0
        %2354 = vmatmul.mubr.bf16.gmra.mxu0 %v2270
        %v2355 = vpop.f32.mrf.mxu0
        %v2356 = vadd.f32 0.0, %v2355
        %v2357 = vpop.f32.mrf.mxu0
        %v2358 = vpop.f32.mrf.mxu0
        %v2359 = vadd.f32 0.0, %v2358
        %v2360 = vpop.f32.mrf.mxu0
        %2361 = vmatprep.mubr.bf16.mxu0 0
        %2362 = vmatmul.mubr.bf16.gmra.mxu0 %v2273
        %v2363 = vpop.f32.mrf.mxu0
        %v2364 = vadd.f32 0.0, %v2363
        %v2365 = vpop.f32.mrf.mxu0
        %v2366 = vpop.f32.mrf.mxu0
        %v2367 = vadd.f32 0.0, %v2366
        %v2368 = vpop.f32.mrf.mxu0
        %2369 = vmatprep.mubr.bf16.mxu0 0
        %2370 = vmatmul.mubr.bf16.gmra.mxu0 %v2276
        %v2371 = vpop.f32.mrf.mxu0
        %v2372 = vadd.f32 0.0, %v2371
        %v2373 = vpop.f32.mrf.mxu0
        %v2374 = vpop.f32.mrf.mxu0
        %v2375 = vadd.f32 0.0, %v2374
        %v2376 = vpop.f32.mrf.mxu0
        %2377 = vdwg.mxu0
        %v2378 = vadd.f32 %v1996, %v2316
        %v2379 = vadd.f32 %v1997, %v2319
        %v2380 = vadd.f32 %v1998, %v2324
        %v2381 = vadd.f32 %v1999, %v2327
        %v2382 = vadd.f32 %v2000, %v2332
        %v2383 = vadd.f32 %v2001, %v2335
        %v2384 = vadd.f32 %v2002, %v2340
        %v2385 = vadd.f32 %v2003, %v2343
        %v2386 = vadd.f32 %v2004, %v2348
        %v2387 = vadd.f32 %v2005, %v2351
        %v2388 = vadd.f32 %v2006, %v2356
        %v2389 = vadd.f32 %v2007, %v2359
        %v2390 = vadd.f32 %v2008, %v2364
        %v2391 = vadd.f32 %v2009, %v2367
        %v2392 = vadd.f32 %v2010, %v2372
        %v2393 = vadd.f32 %v2011, %v2375
        %v2394 = vld [vmem:[%s4] sm:$0x3]
        %v2395 = vld [vmem:[%s974] sm:$0xe]
        %v2396 = vld [vmem:[%s974 + $0xc] sm:$0xe]
        %v2397 = vld [vmem:[%s974 + $0x18] sm:$0xe]
        %v2398 = vld [vmem:[%s974 + $0x24] sm:$0xe]
        %v2399 = vld [vmem:[%s974 + $0x30] sm:$0xe]
        %v2400 = vld [vmem:[%s974 + $0x3c] sm:$0xe]
        %v2401 = vld [vmem:[%s974 + $0x48] sm:$0xe]
        %v2402 = vld [vmem:[%s974 + $0x54] sm:$0xe]
        %v2427 = vrot.slane %v2395, 5
        %v2428 = vrot.slane %v2427, 4
        %v2429 = vrot.slane %v2013, 5
        %v2430 = vsel %vm1591, %v2428, %v2429
        %v2431 = vrot.slane %v2429, 4
        %v2432 = vrot.slane %v2014, 5
        %v2433 = vsel %vm1591, %v2431, %v2432
        %v2434 = vrot.slane %v2396, 5
        %v2435 = vrot.slane %v2434, 4
        %v2436 = vrot.slane %v2016, 5
        %v2437 = vsel %vm1591, %v2435, %v2436
        %v2438 = vrot.slane %v2436, 4
        %v2439 = vrot.slane %v2017, 5
        %v2440 = vsel %vm1591, %v2438, %v2439
        %v2441 = vrot.slane %v2397, 5
        %v2442 = vrot.slane %v2441, 4
        %v2443 = vrot.slane %v2019, 5
        %v2444 = vsel %vm1591, %v2442, %v2443
        %v2445 = vrot.slane %v2443, 4
        %v2446 = vrot.slane %v2020, 5
        %v2447 = vsel %vm1591, %v2445, %v2446
        %v2448 = vrot.slane %v2398, 5
        %v2449 = vrot.slane %v2448, 4
        %v2450 = vrot.slane %v2022, 5
        %v2451 = vsel %vm1591, %v2449, %v2450
        %v2452 = vrot.slane %v2450, 4
        %v2453 = vrot.slane %v2023, 5
        %v2454 = vsel %vm1591, %v2452, %v2453
        %v2455 = vrot.slane %v2399, 5
        %v2456 = vrot.slane %v2455, 4
        %v2457 = vrot.slane %v2025, 5
        %v2458 = vsel %vm1591, %v2456, %v2457
        %v2459 = vrot.slane %v2457, 4
        %v2460 = vrot.slane %v2026, 5
        %v2461 = vsel %vm1591, %v2459, %v2460
        %v2462 = vrot.slane %v2400, 5
        %v2463 = vrot.slane %v2462, 4
        %v2464 = vrot.slane %v2028, 5
        %v2465 = vsel %vm1591, %v2463, %v2464
        %v2466 = vrot.slane %v2464, 4
        %v2467 = vrot.slane %v2029, 5
        %v2468 = vsel %vm1591, %v2466, %v2467
        %v2469 = vrot.slane %v2401, 5
        %v2470 = vrot.slane %v2469, 4
        %v2471 = vrot.slane %v2031, 5
        %v2472 = vsel %vm1591, %v2470, %v2471
        %v2473 = vrot.slane %v2471, 4
        %v2474 = vrot.slane %v2032, 5
        %v2475 = vsel %vm1591, %v2473, %v2474
        %v2476 = vrot.slane %v2402, 5
        %v2477 = vrot.slane %v2476, 4
        %v2478 = vrot.slane %v2034, 5
        %v2479 = vsel %vm1591, %v2477, %v2478
        %v2480 = vrot.slane %v2478, 4
        %v2481 = vrot.slane %v2035, 5
        %v2482 = vsel %vm1591, %v2480, %v2481
        %s2483 = scalar_lea.vmem %s6, 10
        %v2484 = vld [vmem:[%s2483] sm:$0x3]
        %v2485 = vunpack.c.l.b16 %v2430
        %v2486 = vunpack.c.l.b16 %v2433
        %v2487 = vunpack.c.l.b16 %v2437
        %v2488 = vunpack.c.l.b16 %v2440
        %v2489 = vunpack.c.l.b16 %v2444
        %v2490 = vunpack.c.l.b16 %v2447
        %v2491 = vunpack.c.l.b16 %v2451
        %v2492 = vunpack.c.l.b16 %v2454
        %v2493 = vunpack.c.l.b16 %v2458
        %v2494 = vunpack.c.l.b16 %v2461
        %v2495 = vunpack.c.l.b16 %v2465
        %v2496 = vunpack.c.l.b16 %v2468
        %v2497 = vunpack.c.l.b16 %v2472
        %v2498 = vunpack.c.l.b16 %v2475
        %v2499 = vunpack.c.l.b16 %v2479
        %v2500 = vunpack.c.l.b16 %v2482
        %v2501 = vpack.c.b16 %v2486, %v2485
        %v2502 = vpack.c.b16 %v2488, %v2487
        %v2503 = vpack.c.b16 %v2490, %v2489
        %v2504 = vpack.c.b16 %v2492, %v2491
        %v2505 = vpack.c.b16 %v2494, %v2493
        %v2506 = vpack.c.b16 %v2496, %v2495
        %v2507 = vpack.c.b16 %v2498, %v2497
        %v2508 = vpack.c.b16 %v2500, %v2499
        %v2510 = vsel %vm410, %v2501, 0
        %v2513 = vsel %vm410, %v2502, 0
        %v2516 = vsel %vm410, %v2503, 0
        %v2519 = vsel %vm410, %v2504, 0
        %v2522 = vsel %vm410, %v2505, 0
        %v2525 = vsel %vm410, %v2506, 0
        %v2528 = vsel %vm410, %v2507, 0
        %v2531 = vsel %vm410, %v2508, 0
        %v2534 = vsel %vm435, %v2484, 0
        %2536 = vmatprep.subr.bf16.mxu0 0
        %2537 = vmatpush1.bf16.msra.mxu0 0
        %2538 = vmatprep.subr.bf16.mxu0 0
        %2539 = vmatpush1.bf16.msra.mxu0 0
        %2540 = vmatprep.subr.bf16.mxu0 0
        %2541 = vmatpush1.bf16.msra.mxu0 0
        %2542 = vmatprep.subr.bf16.mxu0 0
        %2543 = vmatpush1.bf16.msra.mxu0 0
        %2544 = vmatprep.subr.bf16.mxu0 0
        %2545 = vmatpush1.bf16.msra.mxu0 0
        %2546 = vmatprep.subr.bf16.mxu0 0
        %2547 = vmatpush1.bf16.msra.mxu0 0
        %2548 = vmatprep.subr.bf16.mxu0 0
        %2549 = vmatpush1.bf16.msra.mxu0 0
        %2550 = vmatprep.subr.bf16.mxu0 0
        %2551 = vmatpush1.bf16.msra.mxu0 %v2534
        %2552 = vmatprep.subr.bf16.mxu0 0
        %2553 = vmatpush2.bf16.msra.mxu0 0
        %2554 = vmatprep.subr.bf16.mxu0 0
        %2555 = vmatpush2.bf16.msra.mxu0 0
        %2556 = vmatprep.subr.bf16.mxu0 0
        %2557 = vmatpush2.bf16.msra.mxu0 0
        %2558 = vmatprep.subr.bf16.mxu0 0
        %2559 = vmatpush2.bf16.msra.mxu0 0
        %2560 = vmatprep.subr.bf16.mxu0 0
        %2561 = vmatpush2.bf16.msra.mxu0 0
        %2562 = vmatprep.subr.bf16.mxu0 0
        %2563 = vmatpush2.bf16.msra.mxu0 0
        %2564 = vmatprep.subr.bf16.mxu0 0
        %2565 = vmatpush2.bf16.msra.mxu0 0
        %2566 = vmatprep.subr.bf16.mxu0 0
        %2567 = vmatpush2.bf16.msra.mxu0 0
        %2568 = vmatprep.mubr.bf16.mxu0 0
        %2569 = vmatmul.mubr.bf16.gmra.mxu0 %v2510
        %v2570 = vpop.f32.mrf.mxu0
        %v2571 = vadd.f32 0.0, %v2570
        %v2572 = vpop.f32.mrf.mxu0
        %v2573 = vpop.f32.mrf.mxu0
        %v2574 = vadd.f32 0.0, %v2573
        %v2575 = vpop.f32.mrf.mxu0
        %2576 = vmatprep.mubr.bf16.mxu0 0
        %2577 = vmatmul.mubr.bf16.gmra.mxu0 %v2513
        %v2578 = vpop.f32.mrf.mxu0
        %v2579 = vadd.f32 0.0, %v2578
        %v2580 = vpop.f32.mrf.mxu0
        %v2581 = vpop.f32.mrf.mxu0
        %v2582 = vadd.f32 0.0, %v2581
        %v2583 = vpop.f32.mrf.mxu0
        %2584 = vmatprep.mubr.bf16.mxu0 0
        %2585 = vmatmul.mubr.bf16.gmra.mxu0 %v2516
        %v2586 = vpop.f32.mrf.mxu0
        %v2587 = vadd.f32 0.0, %v2586
        %v2588 = vpop.f32.mrf.mxu0
        %v2589 = vpop.f32.mrf.mxu0
        %v2590 = vadd.f32 0.0, %v2589
        %v2591 = vpop.f32.mrf.mxu0
        %2592 = vmatprep.mubr.bf16.mxu0 0
        %2593 = vmatmul.mubr.bf16.gmra.mxu0 %v2519
        %v2594 = vpop.f32.mrf.mxu0
        %v2595 = vadd.f32 0.0, %v2594
        %v2596 = vpop.f32.mrf.mxu0
        %v2597 = vpop.f32.mrf.mxu0
        %v2598 = vadd.f32 0.0, %v2597
        %v2599 = vpop.f32.mrf.mxu0
        %2600 = vmatprep.mubr.bf16.mxu0 0
        %2601 = vmatmul.mubr.bf16.gmra.mxu0 %v2522
        %v2602 = vpop.f32.mrf.mxu0
        %v2603 = vadd.f32 0.0, %v2602
        %v2604 = vpop.f32.mrf.mxu0
        %v2605 = vpop.f32.mrf.mxu0
        %v2606 = vadd.f32 0.0, %v2605
        %v2607 = vpop.f32.mrf.mxu0
        %2608 = vmatprep.mubr.bf16.mxu0 0
        %2609 = vmatmul.mubr.bf16.gmra.mxu0 %v2525
        %v2610 = vpop.f32.mrf.mxu0
        %v2611 = vadd.f32 0.0, %v2610
        %v2612 = vpop.f32.mrf.mxu0
        %v2613 = vpop.f32.mrf.mxu0
        %v2614 = vadd.f32 0.0, %v2613
        %v2615 = vpop.f32.mrf.mxu0
        %2616 = vmatprep.mubr.bf16.mxu0 0
        %2617 = vmatmul.mubr.bf16.gmra.mxu0 %v2528
        %v2618 = vpop.f32.mrf.mxu0
        %v2619 = vadd.f32 0.0, %v2618
        %v2620 = vpop.f32.mrf.mxu0
        %v2621 = vpop.f32.mrf.mxu0
        %v2622 = vadd.f32 0.0, %v2621
        %v2623 = vpop.f32.mrf.mxu0
        %2624 = vmatprep.mubr.bf16.mxu0 0
        %2625 = vmatmul.mubr.bf16.gmra.mxu0 %v2531
        %v2626 = vpop.f32.mrf.mxu0
        %v2627 = vadd.f32 0.0, %v2626
        %v2628 = vpop.f32.mrf.mxu0
        %v2629 = vpop.f32.mrf.mxu0
        %v2630 = vadd.f32 0.0, %v2629
        %v2631 = vpop.f32.mrf.mxu0
        %2632 = vdwg.mxu0
        %v2633 = vadd.f32 %v2378, %v2571
        %v2634 = vadd.f32 %v2379, %v2574
        %v2635 = vadd.f32 %v2380, %v2579
        %v2636 = vadd.f32 %v2381, %v2582
        %v2637 = vadd.f32 %v2382, %v2587
        %v2638 = vadd.f32 %v2383, %v2590
        %v2639 = vadd.f32 %v2384, %v2595
        %v2640 = vadd.f32 %v2385, %v2598
        %v2641 = vadd.f32 %v2386, %v2603
        %v2642 = vadd.f32 %v2387, %v2606
        %v2643 = vadd.f32 %v2388, %v2611
        %v2644 = vadd.f32 %v2389, %v2614
        %v2645 = vadd.f32 %v2390, %v2619
        %v2646 = vadd.f32 %v2391, %v2622
        %v2647 = vadd.f32 %v2392, %v2627
        %v2648 = vadd.f32 %v2393, %v2630
        %s2649 = scalar_lea.vmem [#allocation2], 24
        %v2650 = vld [vmem:[%s2649] sm:$0xf]
        %v2651 = vld [vmem:[%s2649 + $0x4] sm:$0xf]
        %v2652 = vld [vmem:[%s2649 + $0xc] sm:$0xf]
        %v2653 = vld [vmem:[%s2649 + $0x10] sm:$0xf]
        %v2654 = vld [vmem:[%s2649 + $0x18] sm:$0xf]
        %v2655 = vld [vmem:[%s2649 + $0x1c] sm:$0xf]
        %v2656 = vld [vmem:[%s2649 + $0x24] sm:$0xf]
        %v2657 = vld [vmem:[%s2649 + $0x28] sm:$0xf]
        %v2658 = vld [vmem:[%s2649 + $0x30] sm:$0xf]
        %v2659 = vld [vmem:[%s2649 + $0x34] sm:$0xf]
        %v2660 = vld [vmem:[%s2649 + $0x3c] sm:$0xf]
        %v2661 = vld [vmem:[%s2649 + $0x40] sm:$0xf]
        %v2662 = vld [vmem:[%s2649 + $0x48] sm:$0xf]
        %v2663 = vld [vmem:[%s2649 + $0x4c] sm:$0xf]
        %v2664 = vld [vmem:[%s2649 + $0x54] sm:$0xf]
        %v2665 = vld [vmem:[%s2649 + $0x58] sm:$0xf]
        %s2666 = scalar_lea.vmem %s6, 12
        %v2667 = vld [vmem:[%s2666] sm:$0x3]
        %v2684 = vunpack.c.l.b16 %v2650
        %v2685 = vunpack.c.l.b16 %v2651
        %v2686 = vunpack.c.l.b16 %v2652
        %v2687 = vunpack.c.l.b16 %v2653
        %v2688 = vunpack.c.l.b16 %v2654
        %v2689 = vunpack.c.l.b16 %v2655
        %v2690 = vunpack.c.l.b16 %v2656
        %v2691 = vunpack.c.l.b16 %v2657
        %v2692 = vunpack.c.l.b16 %v2658
        %v2693 = vunpack.c.l.b16 %v2659
        %v2694 = vunpack.c.l.b16 %v2660
        %v2695 = vunpack.c.l.b16 %v2661
        %v2696 = vunpack.c.l.b16 %v2662
        %v2697 = vunpack.c.l.b16 %v2663
        %v2698 = vunpack.c.l.b16 %v2664
        %v2699 = vunpack.c.l.b16 %v2665
        %v2700 = vpack.c.b16 %v2685, %v2684
        %v2701 = vpack.c.b16 %v2687, %v2686
        %v2702 = vpack.c.b16 %v2689, %v2688
        %v2703 = vpack.c.b16 %v2691, %v2690
        %v2704 = vpack.c.b16 %v2693, %v2692
        %v2705 = vpack.c.b16 %v2695, %v2694
        %v2706 = vpack.c.b16 %v2697, %v2696
        %v2707 = vpack.c.b16 %v2699, %v2698
        %v2709 = vsel %vm410, %v2700, 0
        %v2712 = vsel %vm410, %v2701, 0
        %v2715 = vsel %vm410, %v2702, 0
        %v2718 = vsel %vm410, %v2703, 0
        %v2721 = vsel %vm410, %v2704, 0
        %v2724 = vsel %vm410, %v2705, 0
        %v2727 = vsel %vm410, %v2706, 0
        %v2730 = vsel %vm410, %v2707, 0
        %v2733 = vsel %vm435, %v2667, 0
        %2735 = vmatprep.subr.bf16.mxu0 0
        %2736 = vmatpush1.bf16.msra.mxu0 0
        %2737 = vmatprep.subr.bf16.mxu0 0
        %2738 = vmatpush1.bf16.msra.mxu0 0
        %2739 = vmatprep.subr.bf16.mxu0 0
        %2740 = vmatpush1.bf16.msra.mxu0 0
        %2741 = vmatprep.subr.bf16.mxu0 0
        %2742 = vmatpush1.bf16.msra.mxu0 0
        %2743 = vmatprep.subr.bf16.mxu0 0
        %2744 = vmatpush1.bf16.msra.mxu0 0
        %2745 = vmatprep.subr.bf16.mxu0 0
        %2746 = vmatpush1.bf16.msra.mxu0 0
        %2747 = vmatprep.subr.bf16.mxu0 0
        %2748 = vmatpush1.bf16.msra.mxu0 0
        %2749 = vmatprep.subr.bf16.mxu0 0
        %2750 = vmatpush1.bf16.msra.mxu0 %v2733
        %2751 = vmatprep.subr.bf16.mxu0 0
        %2752 = vmatpush2.bf16.msra.mxu0 0
        %2753 = vmatprep.subr.bf16.mxu0 0
        %2754 = vmatpush2.bf16.msra.mxu0 0
        %2755 = vmatprep.subr.bf16.mxu0 0
        %2756 = vmatpush2.bf16.msra.mxu0 0
        %2757 = vmatprep.subr.bf16.mxu0 0
        %2758 = vmatpush2.bf16.msra.mxu0 0
        %2759 = vmatprep.subr.bf16.mxu0 0
        %2760 = vmatpush2.bf16.msra.mxu0 0
        %2761 = vmatprep.subr.bf16.mxu0 0
        %2762 = vmatpush2.bf16.msra.mxu0 0
        %2763 = vmatprep.subr.bf16.mxu0 0
        %2764 = vmatpush2.bf16.msra.mxu0 0
        %2765 = vmatprep.subr.bf16.mxu0 0
        %2766 = vmatpush2.bf16.msra.mxu0 0
        %2767 = vmatprep.mubr.bf16.mxu0 0
        %2768 = vmatmul.mubr.bf16.gmra.mxu0 %v2709
        %v2769 = vpop.f32.mrf.mxu0
        %v2770 = vadd.f32 0.0, %v2769
        %v2771 = vpop.f32.mrf.mxu0
        %v2772 = vpop.f32.mrf.mxu0
        %v2773 = vadd.f32 0.0, %v2772
        %v2774 = vpop.f32.mrf.mxu0
        %2775 = vmatprep.mubr.bf16.mxu0 0
        %2776 = vmatmul.mubr.bf16.gmra.mxu0 %v2712
        %v2777 = vpop.f32.mrf.mxu0
        %v2778 = vadd.f32 0.0, %v2777
        %v2779 = vpop.f32.mrf.mxu0
        %v2780 = vpop.f32.mrf.mxu0
        %v2781 = vadd.f32 0.0, %v2780
        %v2782 = vpop.f32.mrf.mxu0
        %2783 = vmatprep.mubr.bf16.mxu0 0
        %2784 = vmatmul.mubr.bf16.gmra.mxu0 %v2715
        %v2785 = vpop.f32.mrf.mxu0
        %v2786 = vadd.f32 0.0, %v2785
        %v2787 = vpop.f32.mrf.mxu0
        %v2788 = vpop.f32.mrf.mxu0
        %v2789 = vadd.f32 0.0, %v2788
        %v2790 = vpop.f32.mrf.mxu0
        %2791 = vmatprep.mubr.bf16.mxu0 0
        %2792 = vmatmul.mubr.bf16.gmra.mxu0 %v2718
        %v2793 = vpop.f32.mrf.mxu0
        %v2794 = vadd.f32 0.0, %v2793
        %v2795 = vpop.f32.mrf.mxu0
        %v2796 = vpop.f32.mrf.mxu0
        %v2797 = vadd.f32 0.0, %v2796
        %v2798 = vpop.f32.mrf.mxu0
        %2799 = vmatprep.mubr.bf16.mxu0 0
        %2800 = vmatmul.mubr.bf16.gmra.mxu0 %v2721
        %v2801 = vpop.f32.mrf.mxu0
        %v2802 = vadd.f32 0.0, %v2801
        %v2803 = vpop.f32.mrf.mxu0
        %v2804 = vpop.f32.mrf.mxu0
        %v2805 = vadd.f32 0.0, %v2804
        %v2806 = vpop.f32.mrf.mxu0
        %2807 = vmatprep.mubr.bf16.mxu0 0
        %2808 = vmatmul.mubr.bf16.gmra.mxu0 %v2724
        %v2809 = vpop.f32.mrf.mxu0
        %v2810 = vadd.f32 0.0, %v2809
        %v2811 = vpop.f32.mrf.mxu0
        %v2812 = vpop.f32.mrf.mxu0
        %v2813 = vadd.f32 0.0, %v2812
        %v2814 = vpop.f32.mrf.mxu0
        %2815 = vmatprep.mubr.bf16.mxu0 0
        %2816 = vmatmul.mubr.bf16.gmra.mxu0 %v2727
        %v2817 = vpop.f32.mrf.mxu0
        %v2818 = vadd.f32 0.0, %v2817
        %v2819 = vpop.f32.mrf.mxu0
        %v2820 = vpop.f32.mrf.mxu0
        %v2821 = vadd.f32 0.0, %v2820
        %v2822 = vpop.f32.mrf.mxu0
        %2823 = vmatprep.mubr.bf16.mxu0 0
        %2824 = vmatmul.mubr.bf16.gmra.mxu0 %v2730
        %v2825 = vpop.f32.mrf.mxu0
        %v2826 = vadd.f32 0.0, %v2825
        %v2827 = vpop.f32.mrf.mxu0
        %v2828 = vpop.f32.mrf.mxu0
        %v2829 = vadd.f32 0.0, %v2828
        %v2830 = vpop.f32.mrf.mxu0
        %2831 = vdwg.mxu0
        %v2832 = vadd.f32 %v2633, %v2770
        %v2833 = vadd.f32 %v2634, %v2773
        %v2834 = vadd.f32 %v2635, %v2778
        %v2835 = vadd.f32 %v2636, %v2781
        %v2836 = vadd.f32 %v2637, %v2786
        %v2837 = vadd.f32 %v2638, %v2789
        %v2838 = vadd.f32 %v2639, %v2794
        %v2839 = vadd.f32 %v2640, %v2797
        %v2840 = vadd.f32 %v2641, %v2802
        %v2841 = vadd.f32 %v2642, %v2805
        %v2842 = vadd.f32 %v2643, %v2810
        %v2843 = vadd.f32 %v2644, %v2813
        %v2844 = vadd.f32 %v2645, %v2818
        %v2845 = vadd.f32 %v2646, %v2821
        %v2846 = vadd.f32 %v2647, %v2826
        %v2847 = vadd.f32 %v2648, %v2829
        %v2848 = vld [vmem:[%s2649] sm:$0xf]
        %v2849 = vld [vmem:[%s2649 + $0x4] sm:$0xf]
        %v2850 = vld [vmem:[%s2649 + $0x8] sm:$0x1]
        %v2851 = vld [vmem:[%s2649 + $0xc] sm:$0xf]
        %v2852 = vld [vmem:[%s2649 + $0x10] sm:$0xf]
        %v2853 = vld [vmem:[%s2649 + $0x14] sm:$0x1]
        %v2854 = vld [vmem:[%s2649 + $0x18] sm:$0xf]
        %v2855 = vld [vmem:[%s2649 + $0x1c] sm:$0xf]
        %v2856 = vld [vmem:[%s2649 + $0x20] sm:$0x1]
        %v2857 = vld [vmem:[%s2649 + $0x24] sm:$0xf]
        %v2858 = vld [vmem:[%s2649 + $0x28] sm:$0xf]
        %v2859 = vld [vmem:[%s2649 + $0x2c] sm:$0x1]
        %v2860 = vld [vmem:[%s2649 + $0x30] sm:$0xf]
        %v2861 = vld [vmem:[%s2649 + $0x34] sm:$0xf]
        %v2862 = vld [vmem:[%s2649 + $0x38] sm:$0x1]
        %v2863 = vld [vmem:[%s2649 + $0x3c] sm:$0xf]
        %v2864 = vld [vmem:[%s2649 + $0x40] sm:$0xf]
        %v2865 = vld [vmem:[%s2649 + $0x44] sm:$0x1]
        %v2866 = vld [vmem:[%s2649 + $0x48] sm:$0xf]
        %v2867 = vld [vmem:[%s2649 + $0x4c] sm:$0xf]
        %v2868 = vld [vmem:[%s2649 + $0x50] sm:$0x1]
        %v2869 = vld [vmem:[%s2649 + $0x54] sm:$0xf]
        %v2870 = vld [vmem:[%s2649 + $0x58] sm:$0xf]
        %v2871 = vld [vmem:[%s2649 + $0x5c] sm:$0x1]
        %v2873 = vshrl.u32 %v2848, 16
        %v2875 = vrot.slane %v2873, 4
        %v2876 = vshll.u32 %v2848, 16
        %v2878 = vrot.slane %v2876, 5
        %v2879 = vor.u32 %v2875, %v2878
        %v2880 = vrot.slane %v2879, 4
        %v2882 = vshll.u32 %v2849, 16
        %v2884 = vrot.slane %v2882, 5
        %v2885 = vsel %vm1058, %v2880, %v2884
        %v2886 = vshrl.u32 %v2849, 16
        %v2888 = vrot.slane %v2886, 4
        %v2889 = vor.u32 %v2888, %v2884
        %v2890 = vrot.slane %v2889, 4
        %v2892 = vshll.u32 %v2850, 16
        %v2894 = vrot.slane %v2892, 5
        %v2895 = vsel %vm1058, %v2890, %v2894
        %v2897 = vshrl.u32 %v2851, 16
        %v2899 = vrot.slane %v2897, 4
        %v2900 = vshll.u32 %v2851, 16
        %v2902 = vrot.slane %v2900, 5
        %v2903 = vor.u32 %v2899, %v2902
        %v2904 = vrot.slane %v2903, 4
        %v2906 = vshll.u32 %v2852, 16
        %v2908 = vrot.slane %v2906, 5
        %v2909 = vsel %vm1058, %v2904, %v2908
        %v2910 = vshrl.u32 %v2852, 16
        %v2912 = vrot.slane %v2910, 4
        %v2913 = vor.u32 %v2912, %v2908
        %v2914 = vrot.slane %v2913, 4
        %v2916 = vshll.u32 %v2853, 16
        %v2918 = vrot.slane %v2916, 5
        %v2919 = vsel %vm1058, %v2914, %v2918
        %v2921 = vshrl.u32 %v2854, 16
        %v2923 = vrot.slane %v2921, 4
        %v2924 = vshll.u32 %v2854, 16
        %v2926 = vrot.slane %v2924, 5
        %v2927 = vor.u32 %v2923, %v2926
        %v2928 = vrot.slane %v2927, 4
        %v2930 = vshll.u32 %v2855, 16
        %v2932 = vrot.slane %v2930, 5
        %v2933 = vsel %vm1058, %v2928, %v2932
        %v2934 = vshrl.u32 %v2855, 16
        %v2936 = vrot.slane %v2934, 4
        %v2937 = vor.u32 %v2936, %v2932
        %v2938 = vrot.slane %v2937, 4
        %v2940 = vshll.u32 %v2856, 16
        %v2942 = vrot.slane %v2940, 5
        %v2943 = vsel %vm1058, %v2938, %v2942
        %v2945 = vshrl.u32 %v2857, 16
        %v2947 = vrot.slane %v2945, 4
        %v2948 = vshll.u32 %v2857, 16
        %v2950 = vrot.slane %v2948, 5
        %v2951 = vor.u32 %v2947, %v2950
        %v2952 = vrot.slane %v2951, 4
        %v2954 = vshll.u32 %v2858, 16
        %v2956 = vrot.slane %v2954, 5
        %v2957 = vsel %vm1058, %v2952, %v2956
        %v2958 = vshrl.u32 %v2858, 16
        %v2960 = vrot.slane %v2958, 4
        %v2961 = vor.u32 %v2960, %v2956
        %v2962 = vrot.slane %v2961, 4
        %v2964 = vshll.u32 %v2859, 16
        %v2966 = vrot.slane %v2964, 5
        %v2967 = vsel %vm1058, %v2962, %v2966
        %v2969 = vshrl.u32 %v2860, 16
        %v2971 = vrot.slane %v2969, 4
        %v2972 = vshll.u32 %v2860, 16
        %v2974 = vrot.slane %v2972, 5
        %v2975 = vor.u32 %v2971, %v2974
        %v2976 = vrot.slane %v2975, 4
        %v2978 = vshll.u32 %v2861, 16
        %v2980 = vrot.slane %v2978, 5
        %v2981 = vsel %vm1058, %v2976, %v2980
        %v2982 = vshrl.u32 %v2861, 16
        %v2984 = vrot.slane %v2982, 4
        %v2985 = vor.u32 %v2984, %v2980
        %v2986 = vrot.slane %v2985, 4
        %v2988 = vshll.u32 %v2862, 16
        %v2990 = vrot.slane %v2988, 5
        %v2991 = vsel %vm1058, %v2986, %v2990
        %v2993 = vshrl.u32 %v2863, 16
        %v2995 = vrot.slane %v2993, 4
        %v2996 = vshll.u32 %v2863, 16
        %v2998 = vrot.slane %v2996, 5
        %v2999 = vor.u32 %v2995, %v2998
        %v3000 = vrot.slane %v2999, 4
        %v3002 = vshll.u32 %v2864, 16
        %v3004 = vrot.slane %v3002, 5
        %v3005 = vsel %vm1058, %v3000, %v3004
        %v3006 = vshrl.u32 %v2864, 16
        %v3008 = vrot.slane %v3006, 4
        %v3009 = vor.u32 %v3008, %v3004
        %v3010 = vrot.slane %v3009, 4
        %v3012 = vshll.u32 %v2865, 16
        %v3014 = vrot.slane %v3012, 5
        %v3015 = vsel %vm1058, %v3010, %v3014
        %v3017 = vshrl.u32 %v2866, 16
        %v3019 = vrot.slane %v3017, 4
        %v3020 = vshll.u32 %v2866, 16
        %v3022 = vrot.slane %v3020, 5
        %v3023 = vor.u32 %v3019, %v3022
        %v3024 = vrot.slane %v3023, 4
        %v3026 = vshll.u32 %v2867, 16
        %v3028 = vrot.slane %v3026, 5
        %v3029 = vsel %vm1058, %v3024, %v3028
        %v3030 = vshrl.u32 %v2867, 16
        %v3032 = vrot.slane %v3030, 4
        %v3033 = vor.u32 %v3032, %v3028
        %v3034 = vrot.slane %v3033, 4
        %v3036 = vshll.u32 %v2868, 16
        %v3038 = vrot.slane %v3036, 5
        %v3039 = vsel %vm1058, %v3034, %v3038
        %v3041 = vshrl.u32 %v2869, 16
        %v3043 = vrot.slane %v3041, 4
        %v3044 = vshll.u32 %v2869, 16
        %v3046 = vrot.slane %v3044, 5
        %v3047 = vor.u32 %v3043, %v3046
        %v3048 = vrot.slane %v3047, 4
        %v3050 = vshll.u32 %v2870, 16
        %v3052 = vrot.slane %v3050, 5
        %v3053 = vsel %vm1058, %v3048, %v3052
        %v3054 = vshrl.u32 %v2870, 16
        %v3056 = vrot.slane %v3054, 4
        %v3057 = vor.u32 %v3056, %v3052
        %v3058 = vrot.slane %v3057, 4
        %v3060 = vshll.u32 %v2871, 16
        %v3062 = vrot.slane %v3060, 5
        %v3063 = vsel %vm1058, %v3058, %v3062
        %s3064 = scalar_lea.vmem %s6, 14
        %v3065 = vld [vmem:[%s3064] sm:$0x3]
        %v3066 = vunpack.c.l.b16 %v2885
        %v3067 = vunpack.c.l.b16 %v2895
        %v3068 = vunpack.c.l.b16 %v2909
        %v3069 = vunpack.c.l.b16 %v2919
        %v3070 = vunpack.c.l.b16 %v2933
        %v3071 = vunpack.c.l.b16 %v2943
        %v3072 = vunpack.c.l.b16 %v2957
        %v3073 = vunpack.c.l.b16 %v2967
        %v3074 = vunpack.c.l.b16 %v2981
        %v3075 = vunpack.c.l.b16 %v2991
        %v3076 = vunpack.c.l.b16 %v3005
        %v3077 = vunpack.c.l.b16 %v3015
        %v3078 = vunpack.c.l.b16 %v3029
        %v3079 = vunpack.c.l.b16 %v3039
        %v3080 = vunpack.c.l.b16 %v3053
        %v3081 = vunpack.c.l.b16 %v3063
        %v3082 = vpack.c.b16 %v3067, %v3066
        %v3083 = vpack.c.b16 %v3069, %v3068
        %v3084 = vpack.c.b16 %v3071, %v3070
        %v3085 = vpack.c.b16 %v3073, %v3072
        %v3086 = vpack.c.b16 %v3075, %v3074
        %v3087 = vpack.c.b16 %v3077, %v3076
        %v3088 = vpack.c.b16 %v3079, %v3078
        %v3089 = vpack.c.b16 %v3081, %v3080
        %v3091 = vsel %vm410, %v3082, 0
        %v3094 = vsel %vm410, %v3083, 0
        %v3097 = vsel %vm410, %v3084, 0
        %v3100 = vsel %vm410, %v3085, 0
        %v3103 = vsel %vm410, %v3086, 0
        %v3106 = vsel %vm410, %v3087, 0
        %v3109 = vsel %vm410, %v3088, 0
        %v3112 = vsel %vm410, %v3089, 0
        %v3115 = vsel %vm435, %v3065, 0
        %3117 = vmatprep.subr.bf16.mxu0 0
        %3118 = vmatpush1.bf16.msra.mxu0 0
        %3119 = vmatprep.subr.bf16.mxu0 0
        %3120 = vmatpush1.bf16.msra.mxu0 0
        %3121 = vmatprep.subr.bf16.mxu0 0
        %3122 = vmatpush1.bf16.msra.mxu0 0
        %3123 = vmatprep.subr.bf16.mxu0 0
        %3124 = vmatpush1.bf16.msra.mxu0 0
        %3125 = vmatprep.subr.bf16.mxu0 0
        %3126 = vmatpush1.bf16.msra.mxu0 0
        %3127 = vmatprep.subr.bf16.mxu0 0
        %3128 = vmatpush1.bf16.msra.mxu0 0
        %3129 = vmatprep.subr.bf16.mxu0 0
        %3130 = vmatpush1.bf16.msra.mxu0 0
        %3131 = vmatprep.subr.bf16.mxu0 0
        %3132 = vmatpush1.bf16.msra.mxu0 %v3115
        %3133 = vmatprep.subr.bf16.mxu0 0
        %3134 = vmatpush2.bf16.msra.mxu0 0
        %3135 = vmatprep.subr.bf16.mxu0 0
        %3136 = vmatpush2.bf16.msra.mxu0 0
        %3137 = vmatprep.subr.bf16.mxu0 0
        %3138 = vmatpush2.bf16.msra.mxu0 0
        %3139 = vmatprep.subr.bf16.mxu0 0
        %3140 = vmatpush2.bf16.msra.mxu0 0
        %3141 = vmatprep.subr.bf16.mxu0 0
        %3142 = vmatpush2.bf16.msra.mxu0 0
        %3143 = vmatprep.subr.bf16.mxu0 0
        %3144 = vmatpush2.bf16.msra.mxu0 0
        %3145 = vmatprep.subr.bf16.mxu0 0
        %3146 = vmatpush2.bf16.msra.mxu0 0
        %3147 = vmatprep.subr.bf16.mxu0 0
        %3148 = vmatpush2.bf16.msra.mxu0 0
        %3149 = vmatprep.mubr.bf16.mxu0 0
        %3150 = vmatmul.mubr.bf16.gmra.mxu0 %v3091
        %v3151 = vpop.f32.mrf.mxu0
        %v3152 = vadd.f32 0.0, %v3151
        %v3153 = vpop.f32.mrf.mxu0
        %v3154 = vpop.f32.mrf.mxu0
        %v3155 = vadd.f32 0.0, %v3154
        %v3156 = vpop.f32.mrf.mxu0
        %3157 = vmatprep.mubr.bf16.mxu0 0
        %3158 = vmatmul.mubr.bf16.gmra.mxu0 %v3094
        %v3159 = vpop.f32.mrf.mxu0
        %v3160 = vadd.f32 0.0, %v3159
        %v3161 = vpop.f32.mrf.mxu0
        %v3162 = vpop.f32.mrf.mxu0
        %v3163 = vadd.f32 0.0, %v3162
        %v3164 = vpop.f32.mrf.mxu0
        %3165 = vmatprep.mubr.bf16.mxu0 0
        %3166 = vmatmul.mubr.bf16.gmra.mxu0 %v3097
        %v3167 = vpop.f32.mrf.mxu0
        %v3168 = vadd.f32 0.0, %v3167
        %v3169 = vpop.f32.mrf.mxu0
        %v3170 = vpop.f32.mrf.mxu0
        %v3171 = vadd.f32 0.0, %v3170
        %v3172 = vpop.f32.mrf.mxu0
        %3173 = vmatprep.mubr.bf16.mxu0 0
        %3174 = vmatmul.mubr.bf16.gmra.mxu0 %v3100
        %v3175 = vpop.f32.mrf.mxu0
        %v3176 = vadd.f32 0.0, %v3175
        %v3177 = vpop.f32.mrf.mxu0
        %v3178 = vpop.f32.mrf.mxu0
        %v3179 = vadd.f32 0.0, %v3178
        %v3180 = vpop.f32.mrf.mxu0
        %3181 = vmatprep.mubr.bf16.mxu0 0
        %3182 = vmatmul.mubr.bf16.gmra.mxu0 %v3103
        %v3183 = vpop.f32.mrf.mxu0
        %v3184 = vadd.f32 0.0, %v3183
        %v3185 = vpop.f32.mrf.mxu0
        %v3186 = vpop.f32.mrf.mxu0
        %v3187 = vadd.f32 0.0, %v3186
        %v3188 = vpop.f32.mrf.mxu0
        %3189 = vmatprep.mubr.bf16.mxu0 0
        %3190 = vmatmul.mubr.bf16.gmra.mxu0 %v3106
        %v3191 = vpop.f32.mrf.mxu0
        %v3192 = vadd.f32 0.0, %v3191
        %v3193 = vpop.f32.mrf.mxu0
        %v3194 = vpop.f32.mrf.mxu0
        %v3195 = vadd.f32 0.0, %v3194
        %v3196 = vpop.f32.mrf.mxu0
        %3197 = vmatprep.mubr.bf16.mxu0 0
        %3198 = vmatmul.mubr.bf16.gmra.mxu0 %v3109
        %v3199 = vpop.f32.mrf.mxu0
        %v3200 = vadd.f32 0.0, %v3199
        %v3201 = vpop.f32.mrf.mxu0
        %v3202 = vpop.f32.mrf.mxu0
        %v3203 = vadd.f32 0.0, %v3202
        %v3204 = vpop.f32.mrf.mxu0
        %3205 = vmatprep.mubr.bf16.mxu0 0
        %3206 = vmatmul.mubr.bf16.gmra.mxu0 %v3112
        %v3207 = vpop.f32.mrf.mxu0
        %v3208 = vadd.f32 0.0, %v3207
        %v3209 = vpop.f32.mrf.mxu0
        %v3210 = vpop.f32.mrf.mxu0
        %v3211 = vadd.f32 0.0, %v3210
        %v3212 = vpop.f32.mrf.mxu0
        %3213 = vdwg.mxu0
        %v3214 = vadd.f32 %v2832, %v3152
        %v3215 = vadd.f32 %v2833, %v3155
        %v3216 = vadd.f32 %v2834, %v3160
        %v3217 = vadd.f32 %v2835, %v3163
        %v3218 = vadd.f32 %v2836, %v3168
        %v3219 = vadd.f32 %v2837, %v3171
        %v3220 = vadd.f32 %v2838, %v3176
        %v3221 = vadd.f32 %v2839, %v3179
        %v3222 = vadd.f32 %v2840, %v3184
        %v3223 = vadd.f32 %v2841, %v3187
        %v3224 = vadd.f32 %v2842, %v3192
        %v3225 = vadd.f32 %v2843, %v3195
        %v3226 = vadd.f32 %v2844, %v3200
        %v3227 = vadd.f32 %v2845, %v3203
        %v3228 = vadd.f32 %v2846, %v3208
        %v3229 = vadd.f32 %v2847, %v3211
        %v3230 = vld [vmem:[%s2649] sm:$0xe]
        %v3231 = vld [vmem:[%s2649 + $0xc] sm:$0xe]
        %v3232 = vld [vmem:[%s2649 + $0x18] sm:$0xe]
        %v3233 = vld [vmem:[%s2649 + $0x24] sm:$0xe]
        %v3234 = vld [vmem:[%s2649 + $0x30] sm:$0xe]
        %v3235 = vld [vmem:[%s2649 + $0x3c] sm:$0xe]
        %v3236 = vld [vmem:[%s2649 + $0x48] sm:$0xe]
        %v3237 = vld [vmem:[%s2649 + $0x54] sm:$0xe]
        %v3262 = vrot.slane %v3230, 5
        %v3263 = vrot.slane %v3262, 4
        %v3264 = vrot.slane %v2849, 5
        %v3265 = vsel %vm1591, %v3263, %v3264
        %v3266 = vrot.slane %v3264, 4
        %v3267 = vrot.slane %v2850, 5
        %v3268 = vsel %vm1591, %v3266, %v3267
        %v3269 = vrot.slane %v3231, 5
        %v3270 = vrot.slane %v3269, 4
        %v3271 = vrot.slane %v2852, 5
        %v3272 = vsel %vm1591, %v3270, %v3271
        %v3273 = vrot.slane %v3271, 4
        %v3274 = vrot.slane %v2853, 5
        %v3275 = vsel %vm1591, %v3273, %v3274
        %v3276 = vrot.slane %v3232, 5
        %v3277 = vrot.slane %v3276, 4
        %v3278 = vrot.slane %v2855, 5
        %v3279 = vsel %vm1591, %v3277, %v3278
        %v3280 = vrot.slane %v3278, 4
        %v3281 = vrot.slane %v2856, 5
        %v3282 = vsel %vm1591, %v3280, %v3281
        %v3283 = vrot.slane %v3233, 5
        %v3284 = vrot.slane %v3283, 4
        %v3285 = vrot.slane %v2858, 5
        %v3286 = vsel %vm1591, %v3284, %v3285
        %v3287 = vrot.slane %v3285, 4
        %v3288 = vrot.slane %v2859, 5
        %v3289 = vsel %vm1591, %v3287, %v3288
        %v3290 = vrot.slane %v3234, 5
        %v3291 = vrot.slane %v3290, 4
        %v3292 = vrot.slane %v2861, 5
        %v3293 = vsel %vm1591, %v3291, %v3292
        %v3294 = vrot.slane %v3292, 4
        %v3295 = vrot.slane %v2862, 5
        %v3296 = vsel %vm1591, %v3294, %v3295
        %v3297 = vrot.slane %v3235, 5
        %v3298 = vrot.slane %v3297, 4
        %v3299 = vrot.slane %v2864, 5
        %v3300 = vsel %vm1591, %v3298, %v3299
        %v3301 = vrot.slane %v3299, 4
        %v3302 = vrot.slane %v2865, 5
        %v3303 = vsel %vm1591, %v3301, %v3302
        %v3304 = vrot.slane %v3236, 5
        %v3305 = vrot.slane %v3304, 4
        %v3306 = vrot.slane %v2867, 5
        %v3307 = vsel %vm1591, %v3305, %v3306
        %v3308 = vrot.slane %v3306, 4
        %v3309 = vrot.slane %v2868, 5
        %v3310 = vsel %vm1591, %v3308, %v3309
        %v3311 = vrot.slane %v3237, 5
        %v3312 = vrot.slane %v3311, 4
        %v3313 = vrot.slane %v2870, 5
        %v3314 = vsel %vm1591, %v3312, %v3313
        %v3315 = vrot.slane %v3313, 4
        %v3316 = vrot.slane %v2871, 5
        %v3317 = vsel %vm1591, %v3315, %v3316
        %s3318 = scalar_lea.vmem %s6, 16
        %v3319 = vld [vmem:[%s3318] sm:$0x3]
        %v3320 = vunpack.c.l.b16 %v3265
        %v3321 = vunpack.c.l.b16 %v3268
        %v3322 = vunpack.c.l.b16 %v3272
        %v3323 = vunpack.c.l.b16 %v3275
        %v3324 = vunpack.c.l.b16 %v3279
        %v3325 = vunpack.c.l.b16 %v3282
        %v3326 = vunpack.c.l.b16 %v3286
        %v3327 = vunpack.c.l.b16 %v3289
        %v3328 = vunpack.c.l.b16 %v3293
        %v3329 = vunpack.c.l.b16 %v3296
        %v3330 = vunpack.c.l.b16 %v3300
        %v3331 = vunpack.c.l.b16 %v3303
        %v3332 = vunpack.c.l.b16 %v3307
        %v3333 = vunpack.c.l.b16 %v3310
        %v3334 = vunpack.c.l.b16 %v3314
        %v3335 = vunpack.c.l.b16 %v3317
        %v3336 = vpack.c.b16 %v3321, %v3320
        %v3337 = vpack.c.b16 %v3323, %v3322
        %v3338 = vpack.c.b16 %v3325, %v3324
        %v3339 = vpack.c.b16 %v3327, %v3326
        %v3340 = vpack.c.b16 %v3329, %v3328
        %v3341 = vpack.c.b16 %v3331, %v3330
        %v3342 = vpack.c.b16 %v3333, %v3332
        %v3343 = vpack.c.b16 %v3335, %v3334
        %v3345 = vsel %vm410, %v3336, 0
        %v3348 = vsel %vm410, %v3337, 0
        %v3351 = vsel %vm410, %v3338, 0
        %v3354 = vsel %vm410, %v3339, 0
        %v3357 = vsel %vm410, %v3340, 0
        %v3360 = vsel %vm410, %v3341, 0
        %v3363 = vsel %vm410, %v3342, 0
        %v3366 = vsel %vm410, %v3343, 0
        %v3369 = vsel %vm435, %v3319, 0
        %3371 = vmatprep.subr.bf16.mxu0 0
        %3372 = vmatpush1.bf16.msra.mxu0 0
        %3373 = vmatprep.subr.bf16.mxu0 0
        %3374 = vmatpush1.bf16.msra.mxu0 0
        %3375 = vmatprep.subr.bf16.mxu0 0
        %3376 = vmatpush1.bf16.msra.mxu0 0
        %3377 = vmatprep.subr.bf16.mxu0 0
        %3378 = vmatpush1.bf16.msra.mxu0 0
        %3379 = vmatprep.subr.bf16.mxu0 0
        %3380 = vmatpush1.bf16.msra.mxu0 0
        %3381 = vmatprep.subr.bf16.mxu0 0
        %3382 = vmatpush1.bf16.msra.mxu0 0
        %3383 = vmatprep.subr.bf16.mxu0 0
        %3384 = vmatpush1.bf16.msra.mxu0 0
        %3385 = vmatprep.subr.bf16.mxu0 0
        %3386 = vmatpush1.bf16.msra.mxu0 %v3369
        %3387 = vmatprep.subr.bf16.mxu0 0
        %3388 = vmatpush2.bf16.msra.mxu0 0
        %3389 = vmatprep.subr.bf16.mxu0 0
        %3390 = vmatpush2.bf16.msra.mxu0 0
        %3391 = vmatprep.subr.bf16.mxu0 0
        %3392 = vmatpush2.bf16.msra.mxu0 0
        %3393 = vmatprep.subr.bf16.mxu0 0
        %3394 = vmatpush2.bf16.msra.mxu0 0
        %3395 = vmatprep.subr.bf16.mxu0 0
        %3396 = vmatpush2.bf16.msra.mxu0 0
        %3397 = vmatprep.subr.bf16.mxu0 0
        %3398 = vmatpush2.bf16.msra.mxu0 0
        %3399 = vmatprep.subr.bf16.mxu0 0
        %3400 = vmatpush2.bf16.msra.mxu0 0
        %3401 = vmatprep.subr.bf16.mxu0 0
        %3402 = vmatpush2.bf16.msra.mxu0 0
        %3403 = vmatprep.mubr.bf16.mxu0 0
        %3404 = vmatmul.mubr.bf16.gmra.mxu0 %v3345
        %v3405 = vpop.f32.mrf.mxu0
        %v3406 = vadd.f32 0.0, %v3405
        %v3407 = vpop.f32.mrf.mxu0
        %v3408 = vpop.f32.mrf.mxu0
        %v3409 = vadd.f32 0.0, %v3408
        %v3410 = vpop.f32.mrf.mxu0
        %3411 = vmatprep.mubr.bf16.mxu0 0
        %3412 = vmatmul.mubr.bf16.gmra.mxu0 %v3348
        %v3413 = vpop.f32.mrf.mxu0
        %v3414 = vadd.f32 0.0, %v3413
        %v3415 = vpop.f32.mrf.mxu0
        %v3416 = vpop.f32.mrf.mxu0
        %v3417 = vadd.f32 0.0, %v3416
        %v3418 = vpop.f32.mrf.mxu0
        %3419 = vmatprep.mubr.bf16.mxu0 0
        %3420 = vmatmul.mubr.bf16.gmra.mxu0 %v3351
        %v3421 = vpop.f32.mrf.mxu0
        %v3422 = vadd.f32 0.0, %v3421
        %v3423 = vpop.f32.mrf.mxu0
        %v3424 = vpop.f32.mrf.mxu0
        %v3425 = vadd.f32 0.0, %v3424
        %v3426 = vpop.f32.mrf.mxu0
        %3427 = vmatprep.mubr.bf16.mxu0 0
        %3428 = vmatmul.mubr.bf16.gmra.mxu0 %v3354
        %v3429 = vpop.f32.mrf.mxu0
        %v3430 = vadd.f32 0.0, %v3429
        %v3431 = vpop.f32.mrf.mxu0
        %v3432 = vpop.f32.mrf.mxu0
        %v3433 = vadd.f32 0.0, %v3432
        %v3434 = vpop.f32.mrf.mxu0
        %3435 = vmatprep.mubr.bf16.mxu0 0
        %3436 = vmatmul.mubr.bf16.gmra.mxu0 %v3357
        %v3437 = vpop.f32.mrf.mxu0
        %v3438 = vadd.f32 0.0, %v3437
        %v3439 = vpop.f32.mrf.mxu0
        %v3440 = vpop.f32.mrf.mxu0
        %v3441 = vadd.f32 0.0, %v3440
        %v3442 = vpop.f32.mrf.mxu0
        %3443 = vmatprep.mubr.bf16.mxu0 0
        %3444 = vmatmul.mubr.bf16.gmra.mxu0 %v3360
        %v3445 = vpop.f32.mrf.mxu0
        %v3446 = vadd.f32 0.0, %v3445
        %v3447 = vpop.f32.mrf.mxu0
        %v3448 = vpop.f32.mrf.mxu0
        %v3449 = vadd.f32 0.0, %v3448
        %v3450 = vpop.f32.mrf.mxu0
        %3451 = vmatprep.mubr.bf16.mxu0 0
        %3452 = vmatmul.mubr.bf16.gmra.mxu0 %v3363
        %v3453 = vpop.f32.mrf.mxu0
        %v3454 = vadd.f32 0.0, %v3453
        %v3455 = vpop.f32.mrf.mxu0
        %v3456 = vpop.f32.mrf.mxu0
        %v3457 = vadd.f32 0.0, %v3456
        %v3458 = vpop.f32.mrf.mxu0
        %3459 = vmatprep.mubr.bf16.mxu0 0
        %3460 = vmatmul.mubr.bf16.gmra.mxu0 %v3366
        %v3461 = vpop.f32.mrf.mxu0
        %v3462 = vadd.f32 0.0, %v3461
        %v3463 = vpop.f32.mrf.mxu0
        %v3464 = vpop.f32.mrf.mxu0
        %v3465 = vadd.f32 0.0, %v3464
        %v3466 = vpop.f32.mrf.mxu0
        %3467 = vdwg.mxu0
        %v3468 = vadd.f32 %v3214, %v3406
        %v3469 = vadd.f32 %v3215, %v3409
        %v3470 = vadd.f32 %v3216, %v3414
        %v3471 = vadd.f32 %v3217, %v3417
        %v3472 = vadd.f32 %v3218, %v3422
        %v3473 = vadd.f32 %v3219, %v3425
        %v3474 = vadd.f32 %v3220, %v3430
        %v3475 = vadd.f32 %v3221, %v3433
        %v3476 = vadd.f32 %v3222, %v3438
        %v3477 = vadd.f32 %v3223, %v3441
        %v3478 = vadd.f32 %v3224, %v3446
        %v3479 = vadd.f32 %v3225, %v3449
        %v3480 = vadd.f32 %v3226, %v3454
        %v3481 = vadd.f32 %v3227, %v3457
        %v3482 = vadd.f32 %v3228, %v3462
        %v3483 = vadd.f32 %v3229, %v3465
        %v3484 = vld [vmem:[%s5] sm:$0x1]
        %v3486 = vlaneseq
        %v3487 = vshrl.u32 %v3486, 7
        %v3488 = vsub.s32 0, %v3487
        %v3489 = vrot.slane %v3484, %v3488
        %v3492 = vsel %vm435, %v2394, 0
        %3494 = vmatprep.subr.bf16.mxu0 0
        %3495 = vmatpush1.bf16.msra.mxu0 0
        %3496 = vmatprep.subr.bf16.mxu0 0
        %3497 = vmatpush1.bf16.msra.mxu0 0
        %3498 = vmatprep.subr.bf16.mxu0 0
        %3499 = vmatpush1.bf16.msra.mxu0 0
        %3500 = vmatprep.subr.bf16.mxu0 0
        %3501 = vmatpush1.bf16.msra.mxu0 0
        %3502 = vmatprep.subr.bf16.mxu0 0
        %3503 = vmatpush1.bf16.msra.mxu0 0
        %3504 = vmatprep.subr.bf16.mxu0 0
        %3505 = vmatpush1.bf16.msra.mxu0 0
        %3506 = vmatprep.subr.bf16.mxu0 0
        %3507 = vmatpush1.bf16.msra.mxu0 0
        %3508 = vmatprep.subr.bf16.mxu0 0
        %3509 = vmatpush1.bf16.msra.mxu0 %v3492
        %3510 = vmatprep.subr.bf16.mxu0 0
        %3511 = vmatpush2.bf16.msra.mxu0 0
        %3512 = vmatprep.subr.bf16.mxu0 0
        %3513 = vmatpush2.bf16.msra.mxu0 0
        %3514 = vmatprep.subr.bf16.mxu0 0
        %3515 = vmatpush2.bf16.msra.mxu0 0
        %3516 = vmatprep.subr.bf16.mxu0 0
        %3517 = vmatpush2.bf16.msra.mxu0 0
        %3518 = vmatprep.subr.bf16.mxu0 0
        %3519 = vmatpush2.bf16.msra.mxu0 0
        %3520 = vmatprep.subr.bf16.mxu0 0
        %3521 = vmatpush2.bf16.msra.mxu0 0
        %3522 = vmatprep.subr.bf16.mxu0 0
        %3523 = vmatpush2.bf16.msra.mxu0 0
        %3524 = vmatprep.subr.bf16.mxu0 0
        %3525 = vmatpush2.bf16.msra.mxu0 0
        %3526 = vmatprep.mubr.bf16.mxu0 0
        %3527 = vmatmul.mubr.bf16.gmra.mxu0 %v2255
        %v3528 = vpop.f32.mrf.mxu0
        %v3529 = vadd.f32 %v3489, %v3528
        %v3530 = vpop.f32.mrf.mxu0
        %v3531 = vpop.f32.mrf.mxu0
        %v3532 = vadd.f32 %v3489, %v3531
        %v3533 = vpop.f32.mrf.mxu0
        %3534 = vmatprep.mubr.bf16.mxu0 0
        %3535 = vmatmul.mubr.bf16.gmra.mxu0 %v2258
        %v3536 = vpop.f32.mrf.mxu0
        %v3537 = vadd.f32 %v3489, %v3536
        %v3538 = vpop.f32.mrf.mxu0
        %v3539 = vpop.f32.mrf.mxu0
        %v3540 = vadd.f32 %v3489, %v3539
        %v3541 = vpop.f32.mrf.mxu0
        %3542 = vmatprep.mubr.bf16.mxu0 0
        %3543 = vmatmul.mubr.bf16.gmra.mxu0 %v2261
        %v3544 = vpop.f32.mrf.mxu0
        %v3545 = vadd.f32 %v3489, %v3544
        %v3546 = vpop.f32.mrf.mxu0
        %v3547 = vpop.f32.mrf.mxu0
        %v3548 = vadd.f32 %v3489, %v3547
        %v3549 = vpop.f32.mrf.mxu0
        %3550 = vmatprep.mubr.bf16.mxu0 0
        %3551 = vmatmul.mubr.bf16.gmra.mxu0 %v2264
        %v3552 = vpop.f32.mrf.mxu0
        %v3553 = vadd.f32 %v3489, %v3552
        %v3554 = vpop.f32.mrf.mxu0
        %v3555 = vpop.f32.mrf.mxu0
        %v3556 = vadd.f32 %v3489, %v3555
        %v3557 = vpop.f32.mrf.mxu0
        %3558 = vmatprep.mubr.bf16.mxu0 0
        %3559 = vmatmul.mubr.bf16.gmra.mxu0 %v2267
        %v3560 = vpop.f32.mrf.mxu0
        %v3561 = vadd.f32 %v3489, %v3560
        %v3562 = vpop.f32.mrf.mxu0
        %v3563 = vpop.f32.mrf.mxu0
        %v3564 = vadd.f32 %v3489, %v3563
        %v3565 = vpop.f32.mrf.mxu0
        %3566 = vmatprep.mubr.bf16.mxu0 0
        %3567 = vmatmul.mubr.bf16.gmra.mxu0 %v2270
        %v3568 = vpop.f32.mrf.mxu0
        %v3569 = vadd.f32 %v3489, %v3568
        %v3570 = vpop.f32.mrf.mxu0
        %v3571 = vpop.f32.mrf.mxu0
        %v3572 = vadd.f32 %v3489, %v3571
        %v3573 = vpop.f32.mrf.mxu0
        %3574 = vmatprep.mubr.bf16.mxu0 0
        %3575 = vmatmul.mubr.bf16.gmra.mxu0 %v2273
        %v3576 = vpop.f32.mrf.mxu0
        %v3577 = vadd.f32 %v3489, %v3576
        %v3578 = vpop.f32.mrf.mxu0
        %v3579 = vpop.f32.mrf.mxu0
        %v3580 = vadd.f32 %v3489, %v3579
        %v3581 = vpop.f32.mrf.mxu0
        %3582 = vmatprep.mubr.bf16.mxu0 0
        %3583 = vmatmul.mubr.bf16.gmra.mxu0 %v2276
        %v3584 = vpop.f32.mrf.mxu0
        %v3585 = vadd.f32 %v3489, %v3584
        %v3586 = vpop.f32.mrf.mxu0
        %v3587 = vpop.f32.mrf.mxu0
        %v3588 = vadd.f32 %v3489, %v3587
        %v3589 = vpop.f32.mrf.mxu0
        %3590 = vdwg.mxu0
        %v3591 = vmax.f32 %v3529, 0.0
        %v3592 = vmax.f32 %v3532, 0.0
        %v3593 = vmax.f32 %v3537, 0.0
        %v3594 = vmax.f32 %v3540, 0.0
        %v3595 = vmax.f32 %v3545, 0.0
        %v3596 = vmax.f32 %v3548, 0.0
        %v3597 = vmax.f32 %v3553, 0.0
        %v3598 = vmax.f32 %v3556, 0.0
        %v3599 = vmax.f32 %v3561, 0.0
        %v3600 = vmax.f32 %v3564, 0.0
        %v3601 = vmax.f32 %v3569, 0.0
        %v3602 = vmax.f32 %v3572, 0.0
        %v3603 = vmax.f32 %v3577, 0.0
        %v3604 = vmax.f32 %v3580, 0.0
        %v3605 = vmax.f32 %v3585, 0.0
        %v3606 = vmax.f32 %v3588, 0.0
        %v3607 = vld [vmem:[%s7] sm:$0x1]
        %v3609 = vlaneseq
        %v3610 = vshrl.u32 %v3609, 7
        %v3611 = vsub.s32 0, %v3610
        %v3612 = vrot.slane %v3607, %v3611
        %v3614 = vadd.f32 %v3468, %v3612
        %v3615 = vadd.f32 %v3469, %v3612
        %v3616 = vadd.f32 %v3470, %v3612
        %v3617 = vadd.f32 %v3471, %v3612
        %v3618 = vadd.f32 %v3472, %v3612
        %v3619 = vadd.f32 %v3473, %v3612
        %v3620 = vadd.f32 %v3474, %v3612
        %v3621 = vadd.f32 %v3475, %v3612
        %v3622 = vadd.f32 %v3476, %v3612
        %v3623 = vadd.f32 %v3477, %v3612
        %v3624 = vadd.f32 %v3478, %v3612
        %v3625 = vadd.f32 %v3479, %v3612
        %v3626 = vadd.f32 %v3480, %v3612
        %v3627 = vadd.f32 %v3481, %v3612
        %v3628 = vadd.f32 %v3482, %v3612
        %v3629 = vadd.f32 %v3483, %v3612
        %v3630 = vmax.f32 %v3614, 0.0
        %v3631 = vmax.f32 %v3615, 0.0
        %v3632 = vmax.f32 %v3616, 0.0
        %v3633 = vmax.f32 %v3617, 0.0
        %v3634 = vmax.f32 %v3618, 0.0
        %v3635 = vmax.f32 %v3619, 0.0
        %v3636 = vmax.f32 %v3620, 0.0
        %v3637 = vmax.f32 %v3621, 0.0
        %v3638 = vmax.f32 %v3622, 0.0
        %v3639 = vmax.f32 %v3623, 0.0
        %v3640 = vmax.f32 %v3624, 0.0
        %v3641 = vmax.f32 %v3625, 0.0
        %v3642 = vmax.f32 %v3626, 0.0
        %v3643 = vmax.f32 %v3627, 0.0
        %v3644 = vmax.f32 %v3628, 0.0
        %v3645 = vmax.f32 %v3629, 0.0
        %vm3646 = vcmask 64512
        %3647 = vst.msk [vmem:[%s353] sm:$0xff] %vm3646, %v3591
        %3648 = vst.msk [vmem:[%s353 + $0x8] sm:$0xff] %vm3646, %v3592
        %3649 = vst.msk [vmem:[%s353 + $0x10] sm:$0xff] %vm3646, %v3593
        %3650 = vst.msk [vmem:[%s353 + $0x18] sm:$0xff] %vm3646, %v3594
        %3651 = vst.msk [vmem:[%s353 + $0x20] sm:$0xff] %vm3646, %v3595
        %3652 = vst.msk [vmem:[%s353 + $0x28] sm:$0xff] %vm3646, %v3596
        %3653 = vst.msk [vmem:[%s353 + $0x30] sm:$0xff] %vm3646, %v3597
        %3654 = vst.msk [vmem:[%s353 + $0x38] sm:$0xff] %vm3646, %v3598
        %3655 = vst.msk [vmem:[%s353 + $0x40] sm:$0xff] %vm3646, %v3599
        %3656 = vst.msk [vmem:[%s353 + $0x48] sm:$0xff] %vm3646, %v3600
        %3657 = vst.msk [vmem:[%s353 + $0x50] sm:$0xff] %vm3646, %v3601
        %3658 = vst.msk [vmem:[%s353 + $0x58] sm:$0xff] %vm3646, %v3602
        %3659 = vst.msk [vmem:[%s353 + $0x60] sm:$0xff] %vm3646, %v3603
        %3660 = vst.msk [vmem:[%s353 + $0x68] sm:$0xff] %vm3646, %v3604
        %3661 = vst.msk [vmem:[%s353 + $0x70] sm:$0xff] %vm3646, %v3605
        %3662 = vst.msk [vmem:[%s353 + $0x78] sm:$0xff] %vm3646, %v3606
        %3679 = vrot.lane.b32.xlu0 %v3630, 8
        %v3680 = vpop.permute.xlu0 %3679
        %3681 = vrot.lane.b32.xlu0 %v3631, 8
        %v3682 = vpop.permute.xlu0 %3681
        %3683 = vrot.lane.b32.xlu0 %v3632, 8
        %v3684 = vpop.permute.xlu0 %3683
        %3685 = vrot.lane.b32.xlu0 %v3633, 8
        %v3686 = vpop.permute.xlu0 %3685
        %3687 = vrot.lane.b32.xlu0 %v3634, 8
        %v3688 = vpop.permute.xlu0 %3687
        %3689 = vrot.lane.b32.xlu0 %v3635, 8
        %v3690 = vpop.permute.xlu0 %3689
        %3691 = vrot.lane.b32.xlu0 %v3636, 8
        %v3692 = vpop.permute.xlu0 %3691
        %3693 = vrot.lane.b32.xlu0 %v3637, 8
        %v3694 = vpop.permute.xlu0 %3693
        %3695 = vrot.lane.b32.xlu0 %v3638, 8
        %v3696 = vpop.permute.xlu0 %3695
        %3697 = vrot.lane.b32.xlu0 %v3639, 8
        %v3698 = vpop.permute.xlu0 %3697
        %3699 = vrot.lane.b32.xlu0 %v3640, 8
        %v3700 = vpop.permute.xlu0 %3699
        %3701 = vrot.lane.b32.xlu0 %v3641, 8
        %v3702 = vpop.permute.xlu0 %3701
        %3703 = vrot.lane.b32.xlu0 %v3642, 8
        %v3704 = vpop.permute.xlu0 %3703
        %3705 = vrot.lane.b32.xlu0 %v3643, 8
        %v3706 = vpop.permute.xlu0 %3705
        %3707 = vrot.lane.b32.xlu0 %v3644, 8
        %v3708 = vpop.permute.xlu0 %3707
        %3709 = vrot.lane.b32.xlu0 %v3645, 8
        %v3710 = vpop.permute.xlu0 %3709
        %vm3727 = vcmask 130112
        %3728 = vst.msk [vmem:[%s353] sm:$0xff] %vm3727, %v3680
        %3729 = vst.msk [vmem:[%s353 + $0x8] sm:$0xff] %vm3727, %v3682
        %3730 = vst.msk [vmem:[%s353 + $0x10] sm:$0xff] %vm3727, %v3684
        %3731 = vst.msk [vmem:[%s353 + $0x18] sm:$0xff] %vm3727, %v3686
        %3732 = vst.msk [vmem:[%s353 + $0x20] sm:$0xff] %vm3727, %v3688
        %3733 = vst.msk [vmem:[%s353 + $0x28] sm:$0xff] %vm3727, %v3690
        %3734 = vst.msk [vmem:[%s353 + $0x30] sm:$0xff] %vm3727, %v3692
        %3735 = vst.msk [vmem:[%s353 + $0x38] sm:$0xff] %vm3727, %v3694
        %3736 = vst.msk [vmem:[%s353 + $0x40] sm:$0xff] %vm3727, %v3696
        %3737 = vst.msk [vmem:[%s353 + $0x48] sm:$0xff] %vm3727, %v3698
        %3738 = vst.msk [vmem:[%s353 + $0x50] sm:$0xff] %vm3727, %v3700
        %3739 = vst.msk [vmem:[%s353 + $0x58] sm:$0xff] %vm3727, %v3702
        %3740 = vst.msk [vmem:[%s353 + $0x60] sm:$0xff] %vm3727, %v3704
        %3741 = vst.msk [vmem:[%s353 + $0x68] sm:$0xff] %vm3727, %v3706
        %3742 = vst.msk [vmem:[%s353 + $0x70] sm:$0xff] %vm3727, %v3708
        %3743 = vst.msk [vmem:[%s353 + $0x78] sm:$0xff] %vm3727, %v3710
        %s3744 = sand.u32 %s226, 1
        %s3745 = scalar_lea.sflag [#allocation4], %s3744
        %s3746 = sand.u32 %s226, 1
        %s3747 = smul.addr %s3746, 128
        %s3748 = scalar_lea.vmem [#allocation3], %s3747
        // Predicated region
        $region53: #{tpu_custom_call.1} parent=51 // pred_check
          %p3749 = pneg %p236
        $region54: #{tpu_custom_call.1} parent=51 // pred_check_branch
          %3751 = sbr.rel (%p3749) target = $region56
        $region55: #{tpu_custom_call.1} parent=51 // pred_region
          %s3752 = smul.u32 8, %s27
          %s3754 = ssub.s32 2048, 2048
          %3755 = vsyncadd %s3745, %s3754
          %s3756 = smul.addr %s3752, 2
          %s3757 = smul.addr %s26, 32
          %s3758 = sadd.s32 %s3756, %s3757
          %s3759 = smul.addr %s3758, 128
          %s3760 = scalar_lea.hbm %s8, %s3759
          %s3761 = sshll.u32 %s3748, 4
          %s3762 = int_to_ptr.vmem [resolvable:$true] %s3761
          %3767 = dma.vmem_to_hbm [thread:$0]  %s3762, 2048, %s3760, %s3745, 128, 128, 8
        $region56: #{tpu_custom_call.1} parent=51 // pred_fallthru
          _
      $region52: #{tpu_custom_call.1} parent=5 // pred_fallthru
        _
      %p3768 = scmp.le.s32.totalorder 2, %s17
      // Predicated region
      $region57: #{tpu_custom_call.1} parent=5 // pred_check
        %p3769 = pneg %p3768
      $region58: #{tpu_custom_call.1} parent=5 // pred_check_branch
        %3771 = sbr.rel (%p3769) target = $region60
      $region59: #{tpu_custom_call.1} parent=5 // pred_region
        %s3772 = ssub.s32 %s17, 2
        // Predicated region
        $region61: #{tpu_custom_call.1} parent=59 // pred_check
          %p3773 = pneg %p242
        $region62: #{tpu_custom_call.1} parent=59 // pred_check_branch
          %3775 = sbr.rel (%p3773) target = $region64
        $region63: #{tpu_custom_call.1} parent=59 // pred_region
          %s3776 = sand.u32 %s227, 1
          %s3777 = scalar_lea.sflag [#allocation4], %s3776
          %s3778 = sand.u32 %s227, 1
          %s3779 = smul.addr %s3778, 128
          %s3780 = scalar_lea.vmem [#allocation3], %s3779
          %3781 = dma.done %s3777, 2048
        $region64: #{tpu_custom_call.1} parent=59 // pred_fallthru
          _
      $region60: #{tpu_custom_call.1} parent=5 // pred_fallthru
        _
    $region6: #{tpu_custom_call.1} parent=1 // loop_footer
      %s21 = sadd.s32 1, %s17
    $region7: #{tpu_custom_call.1} parent=1 // loop_footer_branch
      %16 = sbr.rel target = $region3
    $region8: #{tpu_custom_call.1} parent=1 // loop_exit
      _
    %3782 = vsyncpa [#allocation4], 1
    %s3783 = scalar_lea.sflag [#allocation4], 1
    %3784 = vsyncpa %s3783, 1

</llo_original>
